<compile_context>
chip_gen: v6e
topology: v6e:2x2x1
jax: 0.10.0
libtpu: 0.0.40
codegen_flags: <defaults>
</compile_context>

<pallas_src>
import functools

import jax
import jax.numpy as jnp
from jax.experimental import pallas as pl
from jax.experimental.pallas import tpu as pltpu


# ----------------------------- helpers --------------------------------------

def _round_up(x, m):
    return -(-x // m) * m


def _sublanes(dtype):
    # f32 tiles pack 8 rows per vreg, bf16 16, (u)int8/fp8 32.
    return 8 * max(4 // jnp.dtype(dtype).itemsize, 1)


def _col_bytes(rows, dtype):
    """VMEM bytes one column of a (rows, C) tile occupies (sublane-padded)."""
    return _round_up(rows, _sublanes(dtype)) * jnp.dtype(dtype).itemsize


def _padded_tile_bytes(rows, cols, dtype):
    """VMEM bytes of a (rows, cols) tile after (sublane, lane) padding."""
    return _col_bytes(rows, dtype) * _round_up(cols, 128)


def _default_cap_bytes():
    """Generation-aware cap for the double-buffered LUT-tile working set."""
    try:
        vmem = pltpu.get_tpu_info().vmem_capacity_bytes
    except Exception:  # info unavailable (interpret mode, old runtime, ...)
        vmem = 64 << 20
    # 6 MiB (double-buffered, padded) sits comfortably inside every
    # generation's default scoped-VMEM budget (v5e 16 MiB, v6e/v7x 32 MiB).
    return int(min(6 << 20, vmem // 8))


def _pick_lut_tile(padded_out, col_bytes, cap_bytes):
    """Largest 128-multiple divisor of padded_out whose tiles fit cap_bytes."""
    max_cols = max(cap_bytes // max(col_bytes, 1), 128)
    if padded_out <= max_cols:
        return padded_out                      # single grid step
    n = padded_out // 128
    best, i = 1, 1
    while i * i <= n:
        if n % i == 0:
            for d in (i, n // i):
                if d * 128 <= max_cols and d > best:
                    best = d
        i += 1
    return best * 128


# ------------------------------ kernel --------------------------------------

def _lut4d_kernel(x_ref, xl_ref, wgt_ref, bg_ref, wbt_ref,
                  w_out_ref, luts_out_ref):
    # Fused weights generator (exact): 0.9*x + 0.1*x_l blended first, then a
    # single small matmul + bias.  Recomputed every grid step (no cross-step
    # scratch carry) so the LUT-tile axis is safely megacore-"parallel".
    xb = 0.9 * x_ref[...] + 0.1 * xl_ref[...]
    w = jnp.dot(xb, wgt_ref[...], preferred_element_type=jnp.float32)
    w = w + bg_ref[...]
    w_out_ref[...] = w.astype(w_out_ref.dtype)

    # Basis-LUT projection for this output tile: w @ Wb^T[:, tile].
    # w is cast to the bank's storage dtype (bf16 by default) so the MXU runs
    # its native bf16 path with f32 accumulation.
    luts_out_ref[...] = jnp.dot(
        w.astype(wbt_ref.dtype), wbt_ref[...],
        preferred_element_type=jnp.float32,
    ).astype(luts_out_ref.dtype)


# --------------------------- param preparation ------------------------------

def prepare_lut4d_params(wg, bg, wb, lut_dtype=jnp.bfloat16):
    """One-time (model-load) conversion of torch-layout Linear params.

    Args:
        wg: (n_ranks, n_feats)  weights_generator.weight (torch layout).
        bg: (n_ranks,)          weights_generator.bias.
        wb: (out_dim, n_ranks)  basis_luts_bank.weight (torch layout, no bias).
        lut_dtype: storage dtype of the basis-LUT bank.  bf16 (default) halves
            the dominant HBM read with negligible LUT error; pass jnp.float32
            for bit-faithful behaviour.
            # On v7x an fp8 (e4m3) bank with a per-rank scale folded into w
            # would quarter the read — validate LUT accuracy before enabling.
    Returns:
        wg_t (n_feats, n_ranks), bg_row (1, n_ranks),
        wb_t (n_ranks, out_dim padded to a multiple of 128).
    """
    wg_t = jnp.asarray(wg, dtype=jnp.float32).T
    bg_row = jnp.asarray(bg, dtype=jnp.float32).reshape(1, -1)
    wb_t = jnp.asarray(wb, dtype=lut_dtype).T          # (n_ranks, out_dim)
    out_dim = wb_t.shape[1]
    padded = _round_up(out_dim, 128)
    if padded != out_dim:                               # one-time zero pad
        wb_t = jnp.pad(wb_t, ((0, 0), (0, padded - out_dim)))
    return wg_t, bg_row, wb_t


# ------------------------------ wrapper -------------------------------------

@functools.partial(
    jax.jit,
    static_argnames=("n_channels", "n_colors", "n_vertices", "tn", "luts_dtype"),
)
def lut4d_generator(x, x_l, wg_t, bg_row, wb_t, *,
                    n_channels, n_colors, n_vertices,
                    tn=None, luts_dtype=jnp.float32):
    """Pallas implementation of LUT4DGenerator.forward.

    Args:
        x, x_l: (B, n_feats) float32 image-representation vectors.  Stack as
            many image pairs as possible along B — the basis-LUT HBM read and
            the per-call overhead are amortized across the batch.
        wg_t, bg_row, wb_t: matmul-ready params from `prepare_lut4d_params`.
        tn: LUT-tile width override (multiple of 128 dividing the padded
            out_dim).  None picks the largest tile that fits the VMEM cap.
        luts_dtype: output dtype of the LUT tensor (bf16 halves the writeback
            if the downstream LUT-application kernel tolerates it).
    Returns:
        weights: (B, n_ranks) float32
        luts:    (B, n_colors, n_vertices, ..., n_vertices) luts_dtype
    """
    B, n_feats = x.shape
    n_ranks = wg_t.shape[1]
    out_dim = n_colors * n_vertices ** n_channels
    padded_out = wb_t.shape[1]
    assert wg_t.shape == (n_feats, n_ranks)
    assert bg_row.shape == (1, n_ranks)
    assert padded_out == _round_up(out_dim, 128), (
        "wb_t must come from prepare_lut4d_params (out_dim padded to 128)")

    if tn is None:
        # Padded VMEM bytes per output column, double-buffered wb_t + luts.
        col_bytes = 2 * (_col_bytes(n_ranks, wb_t.dtype)
                         + _col_bytes(B, luts_dtype))
        tn = _pick_lut_tile(padded_out, col_bytes, _default_cap_bytes())
    assert padded_out % tn == 0 and (tn == padded_out or tn % 128 == 0)
    num_tiles = padded_out // tn

    # Explicit VMEM budget from the padded, double-buffered working set so the
    # default scoped-VMEM limits never bind (v5e 16 MiB / v6e,v7x 32 MiB).
    ws = 2 * (
        2 * _padded_tile_bytes(B, n_feats, jnp.float32)        # x, x_l
        + _padded_tile_bytes(n_feats, n_ranks, jnp.float32)    # Wg^T
        + _padded_tile_bytes(1, n_ranks, jnp.float32)          # bias row
        + _padded_tile_bytes(n_ranks, tn, wb_t.dtype)          # Wb^T tile
        + _padded_tile_bytes(B, n_ranks, jnp.float32)          # weights block
        + _padded_tile_bytes(B, tn, luts_dtype)                # luts tile
    )
    vmem_limit = int(min(32 << 20, max(8 << 20, ws + (2 << 20))))

    lut_itemsize = jnp.dtype(wb_t.dtype).itemsize
    out_itemsize = jnp.dtype(luts_dtype).itemsize
    cost = pl.CostEstimate(
        flops=2 * B * n_ranks * (num_tiles * n_feats + padded_out),
        transcendentals=0,
        bytes_accessed=(
            (x.size + x_l.size + wg_t.size + bg_row.size) * 4
            + wb_t.size * lut_itemsize
            + num_tiles * B * n_ranks * 4
            + B * padded_out * out_itemsize),
    )

    weights_rep, luts_flat = pl.pallas_call(
        _lut4d_kernel,
        out_shape=(
            jax.ShapeDtypeStruct((num_tiles, B, n_ranks), jnp.float32),
            jax.ShapeDtypeStruct((B, padded_out), luts_dtype),
        ),
        grid=(num_tiles,),
        in_specs=[
            pl.BlockSpec((B, n_feats), lambda j: (0, 0)),         # x    (resident)
            pl.BlockSpec((B, n_feats), lambda j: (0, 0)),         # x_l  (resident)
            pl.BlockSpec((n_feats, n_ranks), lambda j: (0, 0)),   # Wg^T (resident)
            pl.BlockSpec((1, n_ranks), lambda j: (0, 0)),         # bias (resident)
            pl.BlockSpec((n_ranks, tn), lambda j: (0, j)),        # Wb^T tile
        ],
        out_specs=(
            # Each grid step writes its own (identical) weights block —
            # injective over the grid, so "parallel" is safe on v7x megacore.
            pl.BlockSpec((None, B, n_ranks), lambda j: (j, 0, 0)),
            pl.BlockSpec((B, tn), lambda j: (0, j)),              # luts tile
        ),
        compiler_params=pltpu.CompilerParams(
            dimension_semantics=("parallel",),
            vmem_limit_bytes=vmem_limit,
        ),
        cost_estimate=cost,
    )(x, x_l, wg_t, bg_row, wb_t)

    weights = weights_rep[0]
    luts = luts_flat[:, :out_dim].reshape(
        B, n_colors, *((n_vertices,) * n_channels))
    return weights, luts


# ------------------------------ reference -----------------------------------

def _reference(x, x_l, wg, bg, wb, *, n_channels, n_colors, n_vertices):
    wx = x @ wg.T + bg
    wl = x_l @ wg.T + bg
    w = 0.1 * wl + 0.9 * wx
    luts = w @ wb.T
    luts = luts.reshape(x.shape[0], n_colors, *((n_vertices,) * n_channels))
    return w, luts


# -------------------------------- demo --------------------------------------

if __name__ == "__main__":
    # Module hyper-parameters (small, consistent with the PyTorch module).
    n_channels = 4      # 4D LUT
    n_colors = 3
    n_vertices = 8
    n_feats = 32
    n_ranks = 8
    B = 2
    out_dim = n_colors * n_vertices ** n_channels  # 3 * 8^4 = 12288
    cfg = dict(n_channels=n_channels, n_colors=n_colors, n_vertices=n_vertices)

    key = jax.random.PRNGKey(0)
    kx, kxl, kwg, kbg, kwb = jax.random.split(key, 5)

    # Deterministic synthetic parameters (torch nn.Linear layouts).
    x = jax.random.normal(kx, (B, n_feats), dtype=jnp.float32)
    x_l = jax.random.normal(kxl, (B, n_feats), dtype=jnp.float32)
    wg = jax.random.normal(kwg, (n_ranks, n_feats), dtype=jnp.float32) * 0.1
    bg = jax.random.normal(kbg, (n_ranks,), dtype=jnp.float32) * 0.1
    wb = jax.random.normal(kwb, (out_dim, n_ranks), dtype=jnp.float32) * 0.1

    w_ref, luts_ref = _reference(x, x_l, wg, bg, wb, **cfg)

    def run_and_check(tag, params, tn=None):
        weights, luts = lut4d_generator(x, x_l, *params, tn=tn, **cfg)
        jax.block_until_ready((weights, luts))
        assert weights.shape == (B, n_ranks), tag
        assert luts.shape == (B, n_colors) + (n_vertices,) * n_channels, tag
        # Tolerances cover TPU default matmul precision (bf16 MXU passes) and
        # the bf16 LUT-bank storage; observed differences are ~1e-3..1e-2.
        assert jnp.allclose(weights, w_ref, atol=2e-2, rtol=2e-2), tag
        assert jnp.allclose(luts.astype(jnp.float32), luts_ref,
                            atol=2e-2, rtol=2e-2), tag

    # One-time parameter preparation (model-load time, not per forward).
    params_f32 = prepare_lut4d_params(wg, bg, wb, lut_dtype=jnp.float32)
    params_bf16 = prepare_lut4d_params(wg, bg, wb)          # bf16 default
    jax.block_until_ready((params_f32, params_bf16))

    # 1) f32 LUT bank, auto tile (single grid step for this config).
    run_and_check("f32-bank/single-tile", params_f32)
    # 2) bf16 LUT bank (recommended default), auto tile.
    run_and_check("bf16-bank/single-tile", params_bf16)
    # 3) bf16 bank with a forced small tile: exercises the multi-step,
    #    megacore-"parallel" tiled path (8 tiles of 1536 columns).
    run_and_check("bf16-bank/multi-tile", params_bf16, tn=1536)

    print("KERNEL_OK")
</pallas_src>

<mosaic_0001>
module attributes {stable_mosaic.version = 11 : i64} {
  func.func @_lut4d_kernel(%arg0: i32, %arg1: memref<2x32xf32, #tpu.memory_space<vmem>>, %arg2: memref<2x32xf32, #tpu.memory_space<vmem>>, %arg3: memref<32x8xf32, #tpu.memory_space<vmem>>, %arg4: memref<1x8xf32, #tpu.memory_space<vmem>>, %arg5: memref<8x12288xf32, #tpu.memory_space<vmem>>, %arg6: memref<1x2x8xf32, #tpu.memory_space<vmem>>, %arg7: memref<2x12288xf32, #tpu.memory_space<vmem>>) attributes {dimension_semantics = [#tpu.dimension_semantics<parallel>], iteration_bounds = array<i64: 1>, scalar_prefetch = 0 : i64, scratch_operands = 0 : i64, tpu.core_type = #tpu.core_type<tc>, window_params = [{pipeline_mode = #tpu.pipeline_mode<synchronous>, transform_indices = @transform_0, window_bounds = array<i64: 2, 32>}, {pipeline_mode = #tpu.pipeline_mode<synchronous>, transform_indices = @transform_1, window_bounds = array<i64: 2, 32>}, {pipeline_mode = #tpu.pipeline_mode<synchronous>, transform_indices = @transform_2, window_bounds = array<i64: 32, 8>}, {pipeline_mode = #tpu.pipeline_mode<synchronous>, transform_indices = @transform_3, window_bounds = array<i64: 1, 8>}, {transform_indices = @transform_4, window_bounds = array<i64: 8, 12288>}, {transform_indices = @transform_5, window_bounds = array<i64: 1, 2, 8>}, {transform_indices = @transform_6, window_bounds = array<i64: 2, 12288>}]} {
    %c0 = arith.constant 0 : index
    %c0_0 = arith.constant 0 : index
    %0 = vector.load %arg1[%c0, %c0_0] : memref<2x32xf32, #tpu.memory_space<vmem>>, vector<2x32xf32>
    %cst = arith.constant 0.899999976 : f32
    %1 = vector.broadcast %cst : f32 to vector<2x32xf32>
    %2 = arith.mulf %1, %0 : vector<2x32xf32>
    %c0_1 = arith.constant 0 : index
    %c0_2 = arith.constant 0 : index
    %3 = vector.load %arg2[%c0_1, %c0_2] : memref<2x32xf32, #tpu.memory_space<vmem>>, vector<2x32xf32>
    %cst_3 = arith.constant 1.000000e-01 : f32
    %4 = vector.broadcast %cst_3 : f32 to vector<2x32xf32>
    %5 = arith.mulf %4, %3 : vector<2x32xf32>
    %6 = arith.addf %2, %5 : vector<2x32xf32>
    %c0_4 = arith.constant 0 : index
    %c0_5 = arith.constant 0 : index
    %7 = vector.load %arg3[%c0_4, %c0_5] : memref<32x8xf32, #tpu.memory_space<vmem>>, vector<32x8xf32>
    %cst_6 = arith.constant dense<0.000000e+00> : vector<2x8xf32>
    %8 = tpu.matmul %6, %7, %cst_6 {dimension_numbers = #tpu.dot_dimension_numbers<[1], [0], [0], [1], [0, 0, 1, 1], [], []>} : vector<2x32xf32>, vector<32x8xf32>, vector<2x8xf32> -> vector<2x8xf32>
    %c0_7 = arith.constant 0 : index
    %c0_8 = arith.constant 0 : index
    %9 = vector.load %arg4[%c0_7, %c0_8] : memref<1x8xf32, #tpu.memory_space<vmem>>, vector<1x8xf32>
    %10 = vector.broadcast %9 : vector<1x8xf32> to vector<2x8xf32>
    %11 = arith.addf %8, %10 : vector<2x8xf32>
    %c0_9 = arith.constant 0 : index
    %c0_10 = arith.constant 0 : index
    %c0_11 = arith.constant 0 : index
    %12 = vector.load %arg6[%c0_9, %c0_10, %c0_11] : memref<1x2x8xf32, #tpu.memory_space<vmem>>, vector<1x2x8xf32>
    %13 = vector.shape_cast %12 : vector<1x2x8xf32> to vector<2x8xf32>
    %14 = vector.shape_cast %11 : vector<2x8xf32> to vector<1x2x8xf32>
    tpu.vector_store %arg6[%c0_9, %c0_10, %c0_11], %14 {strides = array<i32>} : memref<1x2x8xf32, #tpu.memory_space<vmem>>, vector<1x2x8xf32>,
    %c0_12 = arith.constant 0 : index
    %c0_13 = arith.constant 0 : index
    %15 = vector.load %arg5[%c0_12, %c0_13] : memref<8x12288xf32, #tpu.memory_space<vmem>>, vector<8x12288xf32>
    %cst_14 = arith.constant dense<0.000000e+00> : vector<2x12288xf32>
    %16 = tpu.matmul %11, %15, %cst_14 {dimension_numbers = #tpu.dot_dimension_numbers<[1], [0], [0], [1], [0, 0, 1, 1], [], []>} : vector<2x8xf32>, vector<8x12288xf32>, vector<2x12288xf32> -> vector<2x12288xf32>
    %c0_15 = arith.constant 0 : index
    %c0_16 = arith.constant 0 : index
    %17 = vector.load %arg7[%c0_15, %c0_16] : memref<2x12288xf32, #tpu.memory_space<vmem>>, vector<2x12288xf32>
    tpu.vector_store %arg7[%c0_15, %c0_16], %16 {strides = array<i32>} : memref<2x12288xf32, #tpu.memory_space<vmem>>, vector<2x12288xf32>,
    return
  }
  func.func @transform_0(%arg0: i32) -> (i32, i32) {
    %c0_i32 = arith.constant 0 : i32
    %c0_i32_0 = arith.constant 0 : i32
    %c0_i32_1 = arith.constant 0 : i32
    return %c0_i32, %c0_i32_0 : i32, i32
  }
  func.func @transform_1(%arg0: i32) -> (i32, i32) {
    %c0_i32 = arith.constant 0 : i32
    %c0_i32_0 = arith.constant 0 : i32
    %c0_i32_1 = arith.constant 0 : i32
    return %c0_i32, %c0_i32_0 : i32, i32
  }
  func.func @transform_2(%arg0: i32) -> (i32, i32) {
    %c0_i32 = arith.constant 0 : i32
    %c0_i32_0 = arith.constant 0 : i32
    %c0_i32_1 = arith.constant 0 : i32
    return %c0_i32, %c0_i32_0 : i32, i32
  }
  func.func @transform_3(%arg0: i32) -> (i32, i32) {
    %c0_i32 = arith.constant 0 : i32
    %c0_i32_0 = arith.constant 0 : i32
    %c0_i32_1 = arith.constant 0 : i32
    return %c0_i32, %c0_i32_0 : i32, i32
  }
  func.func @transform_4(%arg0: i32) -> (i32, i32) {
    %c0_i32 = arith.constant 0 : i32
    %c0_i32_0 = arith.constant 0 : i32
    return %c0_i32, %arg0 : i32, i32
  }
  func.func @transform_5(%arg0: i32) -> (i32, i32, i32) {
    %c0_i32 = arith.constant 0 : i32
    %c0_i32_0 = arith.constant 0 : i32
    %c0_i32_1 = arith.constant 0 : i32
    return %arg0, %c0_i32, %c0_i32_0 : i32, i32, i32
  }
  func.func @transform_6(%arg0: i32) -> (i32, i32) {
    %c0_i32 = arith.constant 0 : i32
    %c0_i32_0 = arith.constant 0 : i32
    return %c0_i32, %arg0 : i32, i32
  }
}

</mosaic_0001>

<llo_original>
// kernel: lut4d_generator.1
$region0: #{lut4d_generator.1}
  #allocation0 [shape = 'u32[]', space=smem, size = 0x4, offset = 0x4, fixed_abs, tag = 'smem constant byte address 0x4 - core index']
  #allocation1 [shape = 'u32[144,128]{1,0:T(1,128)}', space=vmem, size = 0x12000, scoped, tag = 'internal scratch']
  %s0 = inlined_call_operand.hbm [shape: f32[2,32], index: 0, kind: input, shape index: {}]
  %s1 = inlined_call_operand.hbm [shape: f32[2,32], index: 1, kind: input, shape index: {}]
  %s2 = inlined_call_operand.vmem [shape: f32[32,8], index: 2, kind: input, shape index: {}]
  %s3 = inlined_call_operand.hbm [shape: f32[1,8], index: 3, kind: input, shape index: {}]
  %s4 = inlined_call_operand.hbm [shape: f32[8,12288], index: 4, kind: input, shape index: {}]
  %s5 = inlined_call_operand.hbm [shape: f32[1,2,8], index: 5, kind: output, shape index: {0}]
  %s6 = inlined_call_operand.vmem [shape: f32[2,12288], index: 6, kind: output, shape index: {1}]
  %7 = xla_tuple %s5, %s6
  %s8 = sld [smem:[#allocation0]]
  $region54: #{lut4d_generator.1} parent=0
    _
  %s10 = ssub.s32 1, %s8
  %s11 = scalar_select 0, %s10, %s8
  $region1: #{lut4d_generator.1} parent=0
    #allocation2 [shape = 'u8[1024]{0}', space=vmem, size = 0x400, scoped, tag = 'input window, operand 0, single buffered']
    #allocation3 [shape = 's32[1]{0}', space=sflag, size = 0x4, scoped, tag = 'scoped memory for lut4d_generator.1']
    #allocation4 [shape = 's32[1]{0}', space=sflag, size = 0x4, scoped, tag = 'scoped memory for lut4d_generator.1']
    #allocation5 [shape = 'u8[1024]{0}', space=vmem, size = 0x400, scoped, tag = 'input window, operand 1, single buffered']
    #allocation6 [shape = 's32[1]{0}', space=sflag, size = 0x4, scoped, tag = 'scoped memory for lut4d_generator.1']
    #allocation7 [shape = 'u8[512]{0}', space=vmem, size = 0x400, scoped, tag = 'input window, operand 3, single buffered']
    #allocation8 [shape = 'u8[393216]{0}', space=vmem, size = 0x60000, scoped, tag = 'input window, operand 4, single buffered']
    #allocation9 [shape = 's32[1]{0}', space=sflag, size = 0x4, scoped, tag = 'scoped memory for lut4d_generator.1']
    #allocation10 [shape = 'u8[1024]{0}', space=vmem, size = 0x400, scoped, tag = 'output window, operand 0, single buffered']
    %12 = vsyncpa [#allocation3], 0
    %13 = vsyncpa [#allocation6], 0
    %14 = vsyncpa [#allocation9], 0
    %15 = vsyncpa [#allocation4], 0
    // Predicated region
    $region2: #{lut4d_generator.1} parent=1 // pred_check
      _
    $region3: #{lut4d_generator.1} parent=1 // pred_check_branch
      %17 = sbr.rel (0) target = $region5
    $region4: #{lut4d_generator.1} parent=1 // pred_region
      %s19 = ssub.s32 32, 32
      %20 = vsyncadd [#allocation3], %s19
      %s22 = sshll.u32 [#allocation2], 4
      %s23 = int_to_ptr.vmem [resolvable:$true] %s22
      %25 = dma.hbm_to_vmem [thread:$0]  %s0, 32, %s23, [#allocation3]
    $region5: #{lut4d_generator.1} parent=1 // pred_fallthru
      _
    // Predicated region
    $region6: #{lut4d_generator.1} parent=1 // pred_check
      _
    $region7: #{lut4d_generator.1} parent=1 // pred_check_branch
      %27 = sbr.rel (0) target = $region9
    $region8: #{lut4d_generator.1} parent=1 // pred_region
      %s29 = ssub.s32 32, 32
      %30 = vsyncadd [#allocation6], %s29
      %s32 = sshll.u32 [#allocation5], 4
      %s33 = int_to_ptr.vmem [resolvable:$true] %s32
      %35 = dma.hbm_to_vmem [thread:$0]  %s1, 32, %s33, [#allocation6]
    $region9: #{lut4d_generator.1} parent=1 // pred_fallthru
      _
    // Predicated region
    $region10: #{lut4d_generator.1} parent=1 // pred_check
      _
    $region11: #{lut4d_generator.1} parent=1 // pred_check_branch
      %37 = sbr.rel (0) target = $region13
    $region12: #{lut4d_generator.1} parent=1 // pred_region
      _
    $region13: #{lut4d_generator.1} parent=1 // pred_fallthru
      _
    // Predicated region
    $region14: #{lut4d_generator.1} parent=1 // pred_check
      _
    $region15: #{lut4d_generator.1} parent=1 // pred_check_branch
      %39 = sbr.rel (0) target = $region17
    $region16: #{lut4d_generator.1} parent=1 // pred_region
      %s41 = ssub.s32 16, 16
      %42 = vsyncadd [#allocation6], %s41
      %s44 = sshll.u32 [#allocation7], 4
      %s45 = int_to_ptr.vmem [resolvable:$true] %s44
      %47 = dma.hbm_to_vmem [thread:$0]  %s3, 16, %s45, [#allocation6]
    $region17: #{lut4d_generator.1} parent=1 // pred_fallthru
      _
    // Predicated region
    $region18: #{lut4d_generator.1} parent=1 // pred_check
      _
    $region19: #{lut4d_generator.1} parent=1 // pred_check_branch
      %49 = sbr.rel (0) target = $region21
    $region20: #{lut4d_generator.1} parent=1 // pred_region
      %s51 = ssub.s32 12288, 12288
      %52 = vsyncadd [#allocation9], %s51
      %s54 = sshll.u32 [#allocation8], 4
      %s55 = int_to_ptr.vmem [resolvable:$true] %s54
      %57 = dma.hbm_to_vmem [thread:$0]  %s4, 12288, %s55, [#allocation9]
    $region21: #{lut4d_generator.1} parent=1 // pred_fallthru
      _
    // Predicated region
    $region22: #{lut4d_generator.1} parent=1 // pred_check
      _
    $region23: #{lut4d_generator.1} parent=1 // pred_check_branch
      %59 = sbr.rel (0) target = $region25
    $region24: #{lut4d_generator.1} parent=1 // pred_region
      %60 = dma.done [#allocation3], 32
    $region25: #{lut4d_generator.1} parent=1 // pred_fallthru
      _
    // Predicated region
    $region26: #{lut4d_generator.1} parent=1 // pred_check
      _
    $region27: #{lut4d_generator.1} parent=1 // pred_check_branch
      %62 = sbr.rel (0) target = $region29
    $region28: #{lut4d_generator.1} parent=1 // pred_region
      %63 = dma.done [#allocation6], 32
    $region29: #{lut4d_generator.1} parent=1 // pred_fallthru
      _
    // Predicated region
    $region30: #{lut4d_generator.1} parent=1 // pred_check
      _
    $region31: #{lut4d_generator.1} parent=1 // pred_check_branch
      %65 = sbr.rel (0) target = $region33
    $region32: #{lut4d_generator.1} parent=1 // pred_region
      %66 = dma.done [#allocation6], 16
    $region33: #{lut4d_generator.1} parent=1 // pred_fallthru
      _
    // Predicated region
    $region34: #{lut4d_generator.1} parent=1 // pred_check
      _
    $region35: #{lut4d_generator.1} parent=1 // pred_check_branch
      %68 = sbr.rel (0) target = $region37
    $region36: #{lut4d_generator.1} parent=1 // pred_region
      %69 = dma.done [#allocation9], 12288
    $region37: #{lut4d_generator.1} parent=1 // pred_fallthru
      _
    %v70 = vld [vmem:[#allocation2] sm:$0x3]
    %v71 = vmul.f32 %v70, 0.9
    %v72 = vld [vmem:[#allocation5] sm:$0x3]
    %v73 = vmul.f32 %v72, 0.1
    %v74 = vadd.f32 %v71, %v73
    %v75 = vld [vmem:[%s2] sm:$0xff]
    %v76 = vld [vmem:[%s2 + $0x8] sm:$0xff]
    %v77 = vld [vmem:[%s2 + $0x10] sm:$0xff]
    %v78 = vld [vmem:[%s2 + $0x18] sm:$0xff]
    %v79 = vld [vmem:[#allocation7] sm:$0x1]
    %v81 = vlaneseq
    %v82 = vshrl.u32 %v81, 7
    %v83 = vsub.s32 0, %v82
    %v84 = vrot.slane %v79, %v83
    %vm86 = vcmask 261120
    %v88 = vsel %vm86, %v74, 0
    %90 = vmatprep.subr.mxu0 0.0
    %91 = vmatpush1.msra.mxu0 0.0
    %92 = vmatprep.subr.mxu0 0.0
    %93 = vmatpush1.msra.mxu0 0.0
    %94 = vmatprep.subr.mxu0 0.0
    %95 = vmatpush1.msra.mxu0 0.0
    %96 = vmatprep.subr.mxu0 0.0
    %97 = vmatpush1.msra.mxu0 0.0
    %98 = vmatprep.subr.mxu0 0.0
    %99 = vmatpush1.msra.mxu0 0.0
    %100 = vmatprep.subr.mxu0 0.0
    %101 = vmatpush1.msra.mxu0 0.0
    %102 = vmatprep.subr.mxu0 0.0
    %103 = vmatpush1.msra.mxu0 0.0
    %104 = vmatprep.subr.mxu0 0.0
    %105 = vmatpush1.msra.mxu0 0.0
    %106 = vmatprep.subr.mxu0 0.0
    %107 = vmatpush1.msra.mxu0 0.0
    %108 = vmatprep.subr.mxu0 0.0
    %109 = vmatpush1.msra.mxu0 0.0
    %110 = vmatprep.subr.mxu0 0.0
    %111 = vmatpush1.msra.mxu0 0.0
    %112 = vmatprep.subr.mxu0 0.0
    %113 = vmatpush1.msra.mxu0 0.0
    %114 = vmatprep.subr.mxu0 0.0
    %115 = vmatpush1.msra.mxu0 %v78
    %116 = vmatprep.subr.mxu0 0.0
    %117 = vmatpush1.msra.mxu0 %v77
    %118 = vmatprep.subr.mxu0 0.0
    %119 = vmatpush1.msra.mxu0 %v76
    %120 = vmatprep.subr.mxu0 0.0
    %121 = vmatpush1.msra.mxu0 %v75
    %122 = vmatprep.subr.mxu0 0.0
    %123 = vmatpush2.msra.mxu0 0.0
    %124 = vmatprep.subr.mxu0 0.0
    %125 = vmatpush2.msra.mxu0 0.0
    %126 = vmatprep.subr.mxu0 0.0
    %127 = vmatpush2.msra.mxu0 0.0
    %128 = vmatprep.subr.mxu0 0.0
    %129 = vmatpush2.msra.mxu0 0.0
    %130 = vmatprep.subr.mxu0 0.0
    %131 = vmatpush2.msra.mxu0 0.0
    %132 = vmatprep.subr.mxu0 0.0
    %133 = vmatpush2.msra.mxu0 0.0
    %134 = vmatprep.subr.mxu0 0.0
    %135 = vmatpush2.msra.mxu0 0.0
    %136 = vmatprep.subr.mxu0 0.0
    %137 = vmatpush2.msra.mxu0 0.0
    %138 = vmatprep.subr.mxu0 0.0
    %139 = vmatpush2.msra.mxu0 0.0
    %140 = vmatprep.subr.mxu0 0.0
    %141 = vmatpush2.msra.mxu0 0.0
    %142 = vmatprep.subr.mxu0 0.0
    %143 = vmatpush2.msra.mxu0 0.0
    %144 = vmatprep.subr.mxu0 0.0
    %145 = vmatpush2.msra.mxu0 0.0
    %146 = vmatprep.subr.mxu0 0.0
    %147 = vmatpush2.msra.mxu0 0.0
    %148 = vmatprep.subr.mxu0 0.0
    %149 = vmatpush2.msra.mxu0 0.0
    %150 = vmatprep.subr.mxu0 0.0
    %151 = vmatpush2.msra.mxu0 0.0
    %152 = vmatprep.subr.mxu0 0.0
    %153 = vmatpush2.msra.mxu0 0.0
    %154 = vmatprep.mubr.f32.mxu0 0.0
    %155 = vmatmul.mubr.f32.gmra.mxu0 %v88
    %v156 = vpop.f32.mrf.mxu0
    %v157 = vadd.f32 %v84, %v156
    %v158 = vpop.f32.mrf.mxu0
    %159 = vdwg.mxu0
    %vm160 = vcmask 58368
    %161 = vst.msk [vmem:[#allocation10] sm:$0x3] %vm160, %v157
    %v162 = vld [vmem:[#allocation8] sm:$0xff]
    %v163 = vld [vmem:[#allocation8 + $0x8] sm:$0xff]
    %v164 = vld [vmem:[#allocation8 + $0x10] sm:$0xff]
    %v165 = vld [vmem:[#allocation8 + $0x18] sm:$0xff]
    %v166 = vld [vmem:[#allocation8 + $0x20] sm:$0xff]
    %v167 = vld [vmem:[#allocation8 + $0x28] sm:$0xff]
    %v168 = vld [vmem:[#allocation8 + $0x30] sm:$0xff]
    %v169 = vld [vmem:[#allocation8 + $0x38] sm:$0xff]
    %v170 = vld [vmem:[#allocation8 + $0x40] sm:$0xff]
    %v171 = vld [vmem:[#allocation8 + $0x48] sm:$0xff]
    %v172 = vld [vmem:[#allocation8 + $0x50] sm:$0xff]
    %v173 = vld [vmem:[#allocation8 + $0x58] sm:$0xff]
    %v174 = vld [vmem:[#allocation8 + $0x60] sm:$0xff]
    %v175 = vld [vmem:[#allocation8 + $0x68] sm:$0xff]
    %v176 = vld [vmem:[#allocation8 + $0x70] sm:$0xff]
    %v177 = vld [vmem:[#allocation8 + $0x78] sm:$0xff]
    %v178 = vld [vmem:[#allocation8 + $0x80] sm:$0xff]
    %v179 = vld [vmem:[#allocation8 + $0x88] sm:$0xff]
    %v180 = vld [vmem:[#allocation8 + $0x90] sm:$0xff]
    %v181 = vld [vmem:[#allocation8 + $0x98] sm:$0xff]
    %v182 = vld [vmem:[#allocation8 + $0xa0] sm:$0xff]
    %v183 = vld [vmem:[#allocation8 + $0xa8] sm:$0xff]
    %v184 = vld [vmem:[#allocation8 + $0xb0] sm:$0xff]
    %v185 = vld [vmem:[#allocation8 + $0xb8] sm:$0xff]
    %v186 = vld [vmem:[#allocation8 + $0xc0] sm:$0xff]
    %v187 = vld [vmem:[#allocation8 + $0xc8] sm:$0xff]
    %v188 = vld [vmem:[#allocation8 + $0xd0] sm:$0xff]
    %v189 = vld [vmem:[#allocation8 + $0xd8] sm:$0xff]
    %v190 = vld [vmem:[#allocation8 + $0xe0] sm:$0xff]
    %v191 = vld [vmem:[#allocation8 + $0xe8] sm:$0xff]
    %v192 = vld [vmem:[#allocation8 + $0xf0] sm:$0xff]
    %v193 = vld [vmem:[#allocation8 + $0xf8] sm:$0xff]
    %v194 = vld [vmem:[#allocation8 + $0x100] sm:$0xff]
    %v195 = vld [vmem:[#allocation8 + $0x108] sm:$0xff]
    %v196 = vld [vmem:[#allocation8 + $0x110] sm:$0xff]
    %v197 = vld [vmem:[#allocation8 + $0x118] sm:$0xff]
    %v198 = vld [vmem:[#allocation8 + $0x120] sm:$0xff]
    %v199 = vld [vmem:[#allocation8 + $0x128] sm:$0xff]
    %v200 = vld [vmem:[#allocation8 + $0x130] sm:$0xff]
    %v201 = vld [vmem:[#allocation8 + $0x138] sm:$0xff]
    %v202 = vld [vmem:[#allocation8 + $0x140] sm:$0xff]
    %v203 = vld [vmem:[#allocation8 + $0x148] sm:$0xff]
    %v204 = vld [vmem:[#allocation8 + $0x150] sm:$0xff]
    %v205 = vld [vmem:[#allocation8 + $0x158] sm:$0xff]
    %v206 = vld [vmem:[#allocation8 + $0x160] sm:$0xff]
    %v207 = vld [vmem:[#allocation8 + $0x168] sm:$0xff]
    %v208 = vld [vmem:[#allocation8 + $0x170] sm:$0xff]
    %v209 = vld [vmem:[#allocation8 + $0x178] sm:$0xff]
    %v210 = vld [vmem:[#allocation8 + $0x180] sm:$0xff]
    %v211 = vld [vmem:[#allocation8 + $0x188] sm:$0xff]
    %v212 = vld [vmem:[#allocation8 + $0x190] sm:$0xff]
    %v213 = vld [vmem:[#allocation8 + $0x198] sm:$0xff]
    %v214 = vld [vmem:[#allocation8 + $0x1a0] sm:$0xff]
    %v215 = vld [vmem:[#allocation8 + $0x1a8] sm:$0xff]
    %v216 = vld [vmem:[#allocation8 + $0x1b0] sm:$0xff]
    %v217 = vld [vmem:[#allocation8 + $0x1b8] sm:$0xff]
    %v218 = vld [vmem:[#allocation8 + $0x1c0] sm:$0xff]
    %v219 = vld [vmem:[#allocation8 + $0x1c8] sm:$0xff]
    %v220 = vld [vmem:[#allocation8 + $0x1d0] sm:$0xff]
    %v221 = vld [vmem:[#allocation8 + $0x1d8] sm:$0xff]
    %v222 = vld [vmem:[#allocation8 + $0x1e0] sm:$0xff]
    %v223 = vld [vmem:[#allocation8 + $0x1e8] sm:$0xff]
    %v224 = vld [vmem:[#allocation8 + $0x1f0] sm:$0xff]
    %v225 = vld [vmem:[#allocation8 + $0x1f8] sm:$0xff]
    %v226 = vld [vmem:[#allocation8 + $0x200] sm:$0xff]
    %v227 = vld [vmem:[#allocation8 + $0x208] sm:$0xff]
    %v228 = vld [vmem:[#allocation8 + $0x210] sm:$0xff]
    %v229 = vld [vmem:[#allocation8 + $0x218] sm:$0xff]
    %v230 = vld [vmem:[#allocation8 + $0x220] sm:$0xff]
    %v231 = vld [vmem:[#allocation8 + $0x228] sm:$0xff]
    %v232 = vld [vmem:[#allocation8 + $0x230] sm:$0xff]
    %v233 = vld [vmem:[#allocation8 + $0x238] sm:$0xff]
    %v234 = vld [vmem:[#allocation8 + $0x240] sm:$0xff]
    %v235 = vld [vmem:[#allocation8 + $0x248] sm:$0xff]
    %v236 = vld [vmem:[#allocation8 + $0x250] sm:$0xff]
    %v237 = vld [vmem:[#allocation8 + $0x258] sm:$0xff]
    %v238 = vld [vmem:[#allocation8 + $0x260] sm:$0xff]
    %v239 = vld [vmem:[#allocation8 + $0x268] sm:$0xff]
    %v240 = vld [vmem:[#allocation8 + $0x270] sm:$0xff]
    %v241 = vld [vmem:[#allocation8 + $0x278] sm:$0xff]
    %v242 = vld [vmem:[#allocation8 + $0x280] sm:$0xff]
    %v243 = vld [vmem:[#allocation8 + $0x288] sm:$0xff]
    %v244 = vld [vmem:[#allocation8 + $0x290] sm:$0xff]
    %v245 = vld [vmem:[#allocation8 + $0x298] sm:$0xff]
    %v246 = vld [vmem:[#allocation8 + $0x2a0] sm:$0xff]
    %v247 = vld [vmem:[#allocation8 + $0x2a8] sm:$0xff]
    %v248 = vld [vmem:[#allocation8 + $0x2b0] sm:$0xff]
    %v249 = vld [vmem:[#allocation8 + $0x2b8] sm:$0xff]
    %v250 = vld [vmem:[#allocation8 + $0x2c0] sm:$0xff]
    %v251 = vld [vmem:[#allocation8 + $0x2c8] sm:$0xff]
    %v252 = vld [vmem:[#allocation8 + $0x2d0] sm:$0xff]
    %v253 = vld [vmem:[#allocation8 + $0x2d8] sm:$0xff]
    %v254 = vld [vmem:[#allocation8 + $0x2e0] sm:$0xff]
    %v255 = vld [vmem:[#allocation8 + $0x2e8] sm:$0xff]
    %v256 = vld [vmem:[#allocation8 + $0x2f0] sm:$0xff]
    %v257 = vld [vmem:[#allocation8 + $0x2f8] sm:$0xff]
    %vm258 = vcmask 64512
    %v260 = vsel %vm258, %v157, 0
    %262 = vmatprep.subr.mxu0 0.0
    %263 = vmatpush1.msra.mxu0 0.0
    %264 = vmatprep.subr.mxu0 0.0
    %265 = vmatpush1.msra.mxu0 0.0
    %266 = vmatprep.subr.mxu0 0.0
    %267 = vmatpush1.msra.mxu0 0.0
    %268 = vmatprep.subr.mxu0 0.0
    %269 = vmatpush1.msra.mxu0 0.0
    %270 = vmatprep.subr.mxu0 0.0
    %271 = vmatpush1.msra.mxu0 0.0
    %272 = vmatprep.subr.mxu0 0.0
    %273 = vmatpush1.msra.mxu0 0.0
    %274 = vmatprep.subr.mxu0 0.0
    %275 = vmatpush1.msra.mxu0 0.0
    %276 = vmatprep.subr.mxu0 0.0
    %277 = vmatpush1.msra.mxu0 0.0
    %278 = vmatprep.subr.mxu0 0.0
    %279 = vmatpush1.msra.mxu0 0.0
    %280 = vmatprep.subr.mxu0 0.0
    %281 = vmatpush1.msra.mxu0 0.0
    %282 = vmatprep.subr.mxu0 0.0
    %283 = vmatpush1.msra.mxu0 0.0
    %284 = vmatprep.subr.mxu0 0.0
    %285 = vmatpush1.msra.mxu0 0.0
    %286 = vmatprep.subr.mxu0 0.0
    %287 = vmatpush1.msra.mxu0 0.0
    %288 = vmatprep.subr.mxu0 0.0
    %289 = vmatpush1.msra.mxu0 0.0
    %290 = vmatprep.subr.mxu0 0.0
    %291 = vmatpush1.msra.mxu0 0.0
    %292 = vmatprep.subr.mxu0 %v163
    %293 = vmatpush1.msra.mxu0 %v162
    %294 = vmatprep.subr.mxu0 0.0
    %295 = vmatpush2.msra.mxu0 0.0
    %296 = vmatprep.subr.mxu0 0.0
    %297 = vmatpush2.msra.mxu0 0.0
    %298 = vmatprep.subr.mxu0 0.0
    %299 = vmatpush2.msra.mxu0 0.0
    %300 = vmatprep.subr.mxu0 0.0
    %301 = vmatpush2.msra.mxu0 0.0
    %302 = vmatprep.subr.mxu0 0.0
    %303 = vmatpush2.msra.mxu0 0.0
    %304 = vmatprep.subr.mxu0 0.0
    %305 = vmatpush2.msra.mxu0 0.0
    %306 = vmatprep.subr.mxu0 0.0
    %307 = vmatpush2.msra.mxu0 0.0
    %308 = vmatprep.subr.mxu0 0.0
    %309 = vmatpush2.msra.mxu0 0.0
    %310 = vmatprep.subr.mxu0 0.0
    %311 = vmatpush2.msra.mxu0 0.0
    %312 = vmatprep.subr.mxu0 0.0
    %313 = vmatpush2.msra.mxu0 0.0
    %314 = vmatprep.subr.mxu0 0.0
    %315 = vmatpush2.msra.mxu0 0.0
    %316 = vmatprep.subr.mxu0 0.0
    %317 = vmatpush2.msra.mxu0 0.0
    %318 = vmatprep.subr.mxu0 0.0
    %319 = vmatpush2.msra.mxu0 0.0
    %320 = vmatprep.subr.mxu0 0.0
    %321 = vmatpush2.msra.mxu0 0.0
    %322 = vmatprep.subr.mxu0 0.0
    %323 = vmatpush2.msra.mxu0 0.0
    %324 = vmatprep.subr.mxu0 0.0
    %325 = vmatpush2.msra.mxu0 0.0
    %326 = vmatprep.mubr.f32.mxu0 0.0
    %327 = vmatmul.mubr.f32.gmra.mxu0 %v260
    %v328 = vpop.f32.mrf.mxu0
    %v329 = vadd.f32 0.0, %v328
    %v330 = vpop.f32.mrf.mxu0
    %v331 = vadd.f32 0.0, %v330
    %332 = vdwg.mxu0
    %333 = vmatprep.subr.mxu0 0.0
    %334 = vmatpush1.msra.mxu0 0.0
    %335 = vmatprep.subr.mxu0 0.0
    %336 = vmatpush1.msra.mxu0 0.0
    %337 = vmatprep.subr.mxu0 0.0
    %338 = vmatpush1.msra.mxu0 0.0
    %339 = vmatprep.subr.mxu0 0.0
    %340 = vmatpush1.msra.mxu0 0.0
    %341 = vmatprep.subr.mxu0 0.0
    %342 = vmatpush1.msra.mxu0 0.0
    %343 = vmatprep.subr.mxu0 0.0
    %344 = vmatpush1.msra.mxu0 0.0
    %345 = vmatprep.subr.mxu0 0.0
    %346 = vmatpush1.msra.mxu0 0.0
    %347 = vmatprep.subr.mxu0 0.0
    %348 = vmatpush1.msra.mxu0 0.0
    %349 = vmatprep.subr.mxu0 0.0
    %350 = vmatpush1.msra.mxu0 0.0
    %351 = vmatprep.subr.mxu0 0.0
    %352 = vmatpush1.msra.mxu0 0.0
    %353 = vmatprep.subr.mxu0 0.0
    %354 = vmatpush1.msra.mxu0 0.0
    %355 = vmatprep.subr.mxu0 0.0
    %356 = vmatpush1.msra.mxu0 0.0
    %357 = vmatprep.subr.mxu0 0.0
    %358 = vmatpush1.msra.mxu0 0.0
    %359 = vmatprep.subr.mxu0 0.0
    %360 = vmatpush1.msra.mxu0 0.0
    %361 = vmatprep.subr.mxu0 0.0
    %362 = vmatpush1.msra.mxu0 0.0
    %363 = vmatprep.subr.mxu0 %v165
    %364 = vmatpush1.msra.mxu0 %v164
    %365 = vmatprep.subr.mxu0 0.0
    %366 = vmatpush2.msra.mxu0 0.0
    %367 = vmatprep.subr.mxu0 0.0
    %368 = vmatpush2.msra.mxu0 0.0
    %369 = vmatprep.subr.mxu0 0.0
    %370 = vmatpush2.msra.mxu0 0.0
    %371 = vmatprep.subr.mxu0 0.0
    %372 = vmatpush2.msra.mxu0 0.0
    %373 = vmatprep.subr.mxu0 0.0
    %374 = vmatpush2.msra.mxu0 0.0
    %375 = vmatprep.subr.mxu0 0.0
    %376 = vmatpush2.msra.mxu0 0.0
    %377 = vmatprep.subr.mxu0 0.0
    %378 = vmatpush2.msra.mxu0 0.0
    %379 = vmatprep.subr.mxu0 0.0
    %380 = vmatpush2.msra.mxu0 0.0
    %381 = vmatprep.subr.mxu0 0.0
    %382 = vmatpush2.msra.mxu0 0.0
    %383 = vmatprep.subr.mxu0 0.0
    %384 = vmatpush2.msra.mxu0 0.0
    %385 = vmatprep.subr.mxu0 0.0
    %386 = vmatpush2.msra.mxu0 0.0
    %387 = vmatprep.subr.mxu0 0.0
    %388 = vmatpush2.msra.mxu0 0.0
    %389 = vmatprep.subr.mxu0 0.0
    %390 = vmatpush2.msra.mxu0 0.0
    %391 = vmatprep.subr.mxu0 0.0
    %392 = vmatpush2.msra.mxu0 0.0
    %393 = vmatprep.subr.mxu0 0.0
    %394 = vmatpush2.msra.mxu0 0.0
    %395 = vmatprep.subr.mxu0 0.0
    %396 = vmatpush2.msra.mxu0 0.0
    %397 = vmatprep.mubr.f32.mxu0 0.0
    %398 = vmatmul.mubr.f32.gmra.mxu0 %v260
    %v399 = vpop.f32.mrf.mxu0
    %v400 = vadd.f32 0.0, %v399
    %v401 = vpop.f32.mrf.mxu0
    %v402 = vadd.f32 0.0, %v401
    %403 = vdwg.mxu0
    %404 = vmatprep.subr.mxu0 0.0
    %405 = vmatpush1.msra.mxu0 0.0
    %406 = vmatprep.subr.mxu0 0.0
    %407 = vmatpush1.msra.mxu0 0.0
    %408 = vmatprep.subr.mxu0 0.0
    %409 = vmatpush1.msra.mxu0 0.0
    %410 = vmatprep.subr.mxu0 0.0
    %411 = vmatpush1.msra.mxu0 0.0
    %412 = vmatprep.subr.mxu0 0.0
    %413 = vmatpush1.msra.mxu0 0.0
    %414 = vmatprep.subr.mxu0 0.0
    %415 = vmatpush1.msra.mxu0 0.0
    %416 = vmatprep.subr.mxu0 0.0
    %417 = vmatpush1.msra.mxu0 0.0
    %418 = vmatprep.subr.mxu0 0.0
    %419 = vmatpush1.msra.mxu0 0.0
    %420 = vmatprep.subr.mxu0 0.0
    %421 = vmatpush1.msra.mxu0 0.0
    %422 = vmatprep.subr.mxu0 0.0
    %423 = vmatpush1.msra.mxu0 0.0
    %424 = vmatprep.subr.mxu0 0.0
    %425 = vmatpush1.msra.mxu0 0.0
    %426 = vmatprep.subr.mxu0 0.0
    %427 = vmatpush1.msra.mxu0 0.0
    %428 = vmatprep.subr.mxu0 0.0
    %429 = vmatpush1.msra.mxu0 0.0
    %430 = vmatprep.subr.mxu0 0.0
    %431 = vmatpush1.msra.mxu0 0.0
    %432 = vmatprep.subr.mxu0 0.0
    %433 = vmatpush1.msra.mxu0 0.0
    %434 = vmatprep.subr.mxu0 %v167
    %435 = vmatpush1.msra.mxu0 %v166
    %436 = vmatprep.subr.mxu0 0.0
    %437 = vmatpush2.msra.mxu0 0.0
    %438 = vmatprep.subr.mxu0 0.0
    %439 = vmatpush2.msra.mxu0 0.0
    %440 = vmatprep.subr.mxu0 0.0
    %441 = vmatpush2.msra.mxu0 0.0
    %442 = vmatprep.subr.mxu0 0.0
    %443 = vmatpush2.msra.mxu0 0.0
    %444 = vmatprep.subr.mxu0 0.0
    %445 = vmatpush2.msra.mxu0 0.0
    %446 = vmatprep.subr.mxu0 0.0
    %447 = vmatpush2.msra.mxu0 0.0
    %448 = vmatprep.subr.mxu0 0.0
    %449 = vmatpush2.msra.mxu0 0.0
    %450 = vmatprep.subr.mxu0 0.0
    %451 = vmatpush2.msra.mxu0 0.0
    %452 = vmatprep.subr.mxu0 0.0
    %453 = vmatpush2.msra.mxu0 0.0
    %454 = vmatprep.subr.mxu0 0.0
    %455 = vmatpush2.msra.mxu0 0.0
    %456 = vmatprep.subr.mxu0 0.0
    %457 = vmatpush2.msra.mxu0 0.0
    %458 = vmatprep.subr.mxu0 0.0
    %459 = vmatpush2.msra.mxu0 0.0
    %460 = vmatprep.subr.mxu0 0.0
    %461 = vmatpush2.msra.mxu0 0.0
    %462 = vmatprep.subr.mxu0 0.0
    %463 = vmatpush2.msra.mxu0 0.0
    %464 = vmatprep.subr.mxu0 0.0
    %465 = vmatpush2.msra.mxu0 0.0
    %466 = vmatprep.subr.mxu0 0.0
    %467 = vmatpush2.msra.mxu0 0.0
    %468 = vmatprep.mubr.f32.mxu0 0.0
    %469 = vmatmul.mubr.f32.gmra.mxu0 %v260
    %v470 = vpop.f32.mrf.mxu0
    %v471 = vadd.f32 0.0, %v470
    %v472 = vpop.f32.mrf.mxu0
    %v473 = vadd.f32 0.0, %v472
    %474 = vdwg.mxu0
    %475 = vmatprep.subr.mxu0 0.0
    %476 = vmatpush1.msra.mxu0 0.0
    %477 = vmatprep.subr.mxu0 0.0
    %478 = vmatpush1.msra.mxu0 0.0
    %479 = vmatprep.subr.mxu0 0.0
    %480 = vmatpush1.msra.mxu0 0.0
    %481 = vmatprep.subr.mxu0 0.0
    %482 = vmatpush1.msra.mxu0 0.0
    %483 = vmatprep.subr.mxu0 0.0
    %484 = vmatpush1.msra.mxu0 0.0
    %485 = vmatprep.subr.mxu0 0.0
    %486 = vmatpush1.msra.mxu0 0.0
    %487 = vmatprep.subr.mxu0 0.0
    %488 = vmatpush1.msra.mxu0 0.0
    %489 = vmatprep.subr.mxu0 0.0
    %490 = vmatpush1.msra.mxu0 0.0
    %491 = vmatprep.subr.mxu0 0.0
    %492 = vmatpush1.msra.mxu0 0.0
    %493 = vmatprep.subr.mxu0 0.0
    %494 = vmatpush1.msra.mxu0 0.0
    %495 = vmatprep.subr.mxu0 0.0
    %496 = vmatpush1.msra.mxu0 0.0
    %497 = vmatprep.subr.mxu0 0.0
    %498 = vmatpush1.msra.mxu0 0.0
    %499 = vmatprep.subr.mxu0 0.0
    %500 = vmatpush1.msra.mxu0 0.0
    %501 = vmatprep.subr.mxu0 0.0
    %502 = vmatpush1.msra.mxu0 0.0
    %503 = vmatprep.subr.mxu0 0.0
    %504 = vmatpush1.msra.mxu0 0.0
    %505 = vmatprep.subr.mxu0 %v169
    %506 = vmatpush1.msra.mxu0 %v168
    %507 = vmatprep.subr.mxu0 0.0
    %508 = vmatpush2.msra.mxu0 0.0
    %509 = vmatprep.subr.mxu0 0.0
    %510 = vmatpush2.msra.mxu0 0.0
    %511 = vmatprep.subr.mxu0 0.0
    %512 = vmatpush2.msra.mxu0 0.0
    %513 = vmatprep.subr.mxu0 0.0
    %514 = vmatpush2.msra.mxu0 0.0
    %515 = vmatprep.subr.mxu0 0.0
    %516 = vmatpush2.msra.mxu0 0.0
    %517 = vmatprep.subr.mxu0 0.0
    %518 = vmatpush2.msra.mxu0 0.0
    %519 = vmatprep.subr.mxu0 0.0
    %520 = vmatpush2.msra.mxu0 0.0
    %521 = vmatprep.subr.mxu0 0.0
    %522 = vmatpush2.msra.mxu0 0.0
    %523 = vmatprep.subr.mxu0 0.0
    %524 = vmatpush2.msra.mxu0 0.0
    %525 = vmatprep.subr.mxu0 0.0
    %526 = vmatpush2.msra.mxu0 0.0
    %527 = vmatprep.subr.mxu0 0.0
    %528 = vmatpush2.msra.mxu0 0.0
    %529 = vmatprep.subr.mxu0 0.0
    %530 = vmatpush2.msra.mxu0 0.0
    %531 = vmatprep.subr.mxu0 0.0
    %532 = vmatpush2.msra.mxu0 0.0
    %533 = vmatprep.subr.mxu0 0.0
    %534 = vmatpush2.msra.mxu0 0.0
    %535 = vmatprep.subr.mxu0 0.0
    %536 = vmatpush2.msra.mxu0 0.0
    %537 = vmatprep.subr.mxu0 0.0
    %538 = vmatpush2.msra.mxu0 0.0
    %539 = vmatprep.mubr.f32.mxu0 0.0
    %540 = vmatmul.mubr.f32.gmra.mxu0 %v260
    %v541 = vpop.f32.mrf.mxu0
    %v542 = vadd.f32 0.0, %v541
    %v543 = vpop.f32.mrf.mxu0
    %v544 = vadd.f32 0.0, %v543
    %545 = vdwg.mxu0
    %546 = vmatprep.subr.mxu0 0.0
    %547 = vmatpush1.msra.mxu0 0.0
    %548 = vmatprep.subr.mxu0 0.0
    %549 = vmatpush1.msra.mxu0 0.0
    %550 = vmatprep.subr.mxu0 0.0
    %551 = vmatpush1.msra.mxu0 0.0
    %552 = vmatprep.subr.mxu0 0.0
    %553 = vmatpush1.msra.mxu0 0.0
    %554 = vmatprep.subr.mxu0 0.0
    %555 = vmatpush1.msra.mxu0 0.0
    %556 = vmatprep.subr.mxu0 0.0
    %557 = vmatpush1.msra.mxu0 0.0
    %558 = vmatprep.subr.mxu0 0.0
    %559 = vmatpush1.msra.mxu0 0.0
    %560 = vmatprep.subr.mxu0 0.0
    %561 = vmatpush1.msra.mxu0 0.0
    %562 = vmatprep.subr.mxu0 0.0
    %563 = vmatpush1.msra.mxu0 0.0
    %564 = vmatprep.subr.mxu0 0.0
    %565 = vmatpush1.msra.mxu0 0.0
    %566 = vmatprep.subr.mxu0 0.0
    %567 = vmatpush1.msra.mxu0 0.0
    %568 = vmatprep.subr.mxu0 0.0
    %569 = vmatpush1.msra.mxu0 0.0
    %570 = vmatprep.subr.mxu0 0.0
    %571 = vmatpush1.msra.mxu0 0.0
    %572 = vmatprep.subr.mxu0 0.0
    %573 = vmatpush1.msra.mxu0 0.0
    %574 = vmatprep.subr.mxu0 0.0
    %575 = vmatpush1.msra.mxu0 0.0
    %576 = vmatprep.subr.mxu0 %v171
    %577 = vmatpush1.msra.mxu0 %v170
    %578 = vmatprep.subr.mxu0 0.0
    %579 = vmatpush2.msra.mxu0 0.0
    %580 = vmatprep.subr.mxu0 0.0
    %581 = vmatpush2.msra.mxu0 0.0
    %582 = vmatprep.subr.mxu0 0.0
    %583 = vmatpush2.msra.mxu0 0.0
    %584 = vmatprep.subr.mxu0 0.0
    %585 = vmatpush2.msra.mxu0 0.0
    %586 = vmatprep.subr.mxu0 0.0
    %587 = vmatpush2.msra.mxu0 0.0
    %588 = vmatprep.subr.mxu0 0.0
    %589 = vmatpush2.msra.mxu0 0.0
    %590 = vmatprep.subr.mxu0 0.0
    %591 = vmatpush2.msra.mxu0 0.0
    %592 = vmatprep.subr.mxu0 0.0
    %593 = vmatpush2.msra.mxu0 0.0
    %594 = vmatprep.subr.mxu0 0.0
    %595 = vmatpush2.msra.mxu0 0.0
    %596 = vmatprep.subr.mxu0 0.0
    %597 = vmatpush2.msra.mxu0 0.0
    %598 = vmatprep.subr.mxu0 0.0
    %599 = vmatpush2.msra.mxu0 0.0
    %600 = vmatprep.subr.mxu0 0.0
    %601 = vmatpush2.msra.mxu0 0.0
    %602 = vmatprep.subr.mxu0 0.0
    %603 = vmatpush2.msra.mxu0 0.0
    %604 = vmatprep.subr.mxu0 0.0
    %605 = vmatpush2.msra.mxu0 0.0
    %606 = vmatprep.subr.mxu0 0.0
    %607 = vmatpush2.msra.mxu0 0.0
    %608 = vmatprep.subr.mxu0 0.0
    %609 = vmatpush2.msra.mxu0 0.0
    %610 = vmatprep.mubr.f32.mxu0 0.0
    %611 = vmatmul.mubr.f32.gmra.mxu0 %v260
    %v612 = vpop.f32.mrf.mxu0
    %v613 = vadd.f32 0.0, %v612
    %v614 = vpop.f32.mrf.mxu0
    %v615 = vadd.f32 0.0, %v614
    %616 = vdwg.mxu0
    %617 = vmatprep.subr.mxu0 0.0
    %618 = vmatpush1.msra.mxu0 0.0
    %619 = vmatprep.subr.mxu0 0.0
    %620 = vmatpush1.msra.mxu0 0.0
    %621 = vmatprep.subr.mxu0 0.0
    %622 = vmatpush1.msra.mxu0 0.0
    %623 = vmatprep.subr.mxu0 0.0
    %624 = vmatpush1.msra.mxu0 0.0
    %625 = vmatprep.subr.mxu0 0.0
    %626 = vmatpush1.msra.mxu0 0.0
    %627 = vmatprep.subr.mxu0 0.0
    %628 = vmatpush1.msra.mxu0 0.0
    %629 = vmatprep.subr.mxu0 0.0
    %630 = vmatpush1.msra.mxu0 0.0
    %631 = vmatprep.subr.mxu0 0.0
    %632 = vmatpush1.msra.mxu0 0.0
    %633 = vmatprep.subr.mxu0 0.0
    %634 = vmatpush1.msra.mxu0 0.0
    %635 = vmatprep.subr.mxu0 0.0
    %636 = vmatpush1.msra.mxu0 0.0
    %637 = vmatprep.subr.mxu0 0.0
    %638 = vmatpush1.msra.mxu0 0.0
    %639 = vmatprep.subr.mxu0 0.0
    %640 = vmatpush1.msra.mxu0 0.0
    %641 = vmatprep.subr.mxu0 0.0
    %642 = vmatpush1.msra.mxu0 0.0
    %643 = vmatprep.subr.mxu0 0.0
    %644 = vmatpush1.msra.mxu0 0.0
    %645 = vmatprep.subr.mxu0 0.0
    %646 = vmatpush1.msra.mxu0 0.0
    %647 = vmatprep.subr.mxu0 %v173
    %648 = vmatpush1.msra.mxu0 %v172
    %649 = vmatprep.subr.mxu0 0.0
    %650 = vmatpush2.msra.mxu0 0.0
    %651 = vmatprep.subr.mxu0 0.0
    %652 = vmatpush2.msra.mxu0 0.0
    %653 = vmatprep.subr.mxu0 0.0
    %654 = vmatpush2.msra.mxu0 0.0
    %655 = vmatprep.subr.mxu0 0.0
    %656 = vmatpush2.msra.mxu0 0.0
    %657 = vmatprep.subr.mxu0 0.0
    %658 = vmatpush2.msra.mxu0 0.0
    %659 = vmatprep.subr.mxu0 0.0
    %660 = vmatpush2.msra.mxu0 0.0
    %661 = vmatprep.subr.mxu0 0.0
    %662 = vmatpush2.msra.mxu0 0.0
    %663 = vmatprep.subr.mxu0 0.0
    %664 = vmatpush2.msra.mxu0 0.0
    %665 = vmatprep.subr.mxu0 0.0
    %666 = vmatpush2.msra.mxu0 0.0
    %667 = vmatprep.subr.mxu0 0.0
    %668 = vmatpush2.msra.mxu0 0.0
    %669 = vmatprep.subr.mxu0 0.0
    %670 = vmatpush2.msra.mxu0 0.0
    %671 = vmatprep.subr.mxu0 0.0
    %672 = vmatpush2.msra.mxu0 0.0
    %673 = vmatprep.subr.mxu0 0.0
    %674 = vmatpush2.msra.mxu0 0.0
    %675 = vmatprep.subr.mxu0 0.0
    %676 = vmatpush2.msra.mxu0 0.0
    %677 = vmatprep.subr.mxu0 0.0
    %678 = vmatpush2.msra.mxu0 0.0
    %679 = vmatprep.subr.mxu0 0.0
    %680 = vmatpush2.msra.mxu0 0.0
    %681 = vmatprep.mubr.f32.mxu0 0.0
    %682 = vmatmul.mubr.f32.gmra.mxu0 %v260
    %v683 = vpop.f32.mrf.mxu0
    %v684 = vadd.f32 0.0, %v683
    %v685 = vpop.f32.mrf.mxu0
    %v686 = vadd.f32 0.0, %v685
    %687 = vdwg.mxu0
    %688 = vmatprep.subr.mxu0 0.0
    %689 = vmatpush1.msra.mxu0 0.0
    %690 = vmatprep.subr.mxu0 0.0
    %691 = vmatpush1.msra.mxu0 0.0
    %692 = vmatprep.subr.mxu0 0.0
    %693 = vmatpush1.msra.mxu0 0.0
    %694 = vmatprep.subr.mxu0 0.0
    %695 = vmatpush1.msra.mxu0 0.0
    %696 = vmatprep.subr.mxu0 0.0
    %697 = vmatpush1.msra.mxu0 0.0
    %698 = vmatprep.subr.mxu0 0.0
    %699 = vmatpush1.msra.mxu0 0.0
    %700 = vmatprep.subr.mxu0 0.0
    %701 = vmatpush1.msra.mxu0 0.0
    %702 = vmatprep.subr.mxu0 0.0
    %703 = vmatpush1.msra.mxu0 0.0
    %704 = vmatprep.subr.mxu0 0.0
    %705 = vmatpush1.msra.mxu0 0.0
    %706 = vmatprep.subr.mxu0 0.0
    %707 = vmatpush1.msra.mxu0 0.0
    %708 = vmatprep.subr.mxu0 0.0
    %709 = vmatpush1.msra.mxu0 0.0
    %710 = vmatprep.subr.mxu0 0.0
    %711 = vmatpush1.msra.mxu0 0.0
    %712 = vmatprep.subr.mxu0 0.0
    %713 = vmatpush1.msra.mxu0 0.0
    %714 = vmatprep.subr.mxu0 0.0
    %715 = vmatpush1.msra.mxu0 0.0
    %716 = vmatprep.subr.mxu0 0.0
    %717 = vmatpush1.msra.mxu0 0.0
    %718 = vmatprep.subr.mxu0 %v175
    %719 = vmatpush1.msra.mxu0 %v174
    %720 = vmatprep.subr.mxu0 0.0
    %721 = vmatpush2.msra.mxu0 0.0
    %722 = vmatprep.subr.mxu0 0.0
    %723 = vmatpush2.msra.mxu0 0.0
    %724 = vmatprep.subr.mxu0 0.0
    %725 = vmatpush2.msra.mxu0 0.0
    %726 = vmatprep.subr.mxu0 0.0
    %727 = vmatpush2.msra.mxu0 0.0
    %728 = vmatprep.subr.mxu0 0.0
    %729 = vmatpush2.msra.mxu0 0.0
    %730 = vmatprep.subr.mxu0 0.0
    %731 = vmatpush2.msra.mxu0 0.0
    %732 = vmatprep.subr.mxu0 0.0
    %733 = vmatpush2.msra.mxu0 0.0
    %734 = vmatprep.subr.mxu0 0.0
    %735 = vmatpush2.msra.mxu0 0.0
    %736 = vmatprep.subr.mxu0 0.0
    %737 = vmatpush2.msra.mxu0 0.0
    %738 = vmatprep.subr.mxu0 0.0
    %739 = vmatpush2.msra.mxu0 0.0
    %740 = vmatprep.subr.mxu0 0.0
    %741 = vmatpush2.msra.mxu0 0.0
    %742 = vmatprep.subr.mxu0 0.0
    %743 = vmatpush2.msra.mxu0 0.0
    %744 = vmatprep.subr.mxu0 0.0
    %745 = vmatpush2.msra.mxu0 0.0
    %746 = vmatprep.subr.mxu0 0.0
    %747 = vmatpush2.msra.mxu0 0.0
    %748 = vmatprep.subr.mxu0 0.0
    %749 = vmatpush2.msra.mxu0 0.0
    %750 = vmatprep.subr.mxu0 0.0
    %751 = vmatpush2.msra.mxu0 0.0
    %752 = vmatprep.mubr.f32.mxu0 0.0
    %753 = vmatmul.mubr.f32.gmra.mxu0 %v260
    %v754 = vpop.f32.mrf.mxu0
    %v755 = vadd.f32 0.0, %v754
    %v756 = vpop.f32.mrf.mxu0
    %v757 = vadd.f32 0.0, %v756
    %758 = vdwg.mxu0
    %759 = vmatprep.subr.mxu0 0.0
    %760 = vmatpush1.msra.mxu0 0.0
    %761 = vmatprep.subr.mxu0 0.0
    %762 = vmatpush1.msra.mxu0 0.0
    %763 = vmatprep.subr.mxu0 0.0
    %764 = vmatpush1.msra.mxu0 0.0
    %765 = vmatprep.subr.mxu0 0.0
    %766 = vmatpush1.msra.mxu0 0.0
    %767 = vmatprep.subr.mxu0 0.0
    %768 = vmatpush1.msra.mxu0 0.0
    %769 = vmatprep.subr.mxu0 0.0
    %770 = vmatpush1.msra.mxu0 0.0
    %771 = vmatprep.subr.mxu0 0.0
    %772 = vmatpush1.msra.mxu0 0.0
    %773 = vmatprep.subr.mxu0 0.0
    %774 = vmatpush1.msra.mxu0 0.0
    %775 = vmatprep.subr.mxu0 0.0
    %776 = vmatpush1.msra.mxu0 0.0
    %777 = vmatprep.subr.mxu0 0.0
    %778 = vmatpush1.msra.mxu0 0.0
    %779 = vmatprep.subr.mxu0 0.0
    %780 = vmatpush1.msra.mxu0 0.0
    %781 = vmatprep.subr.mxu0 0.0
    %782 = vmatpush1.msra.mxu0 0.0
    %783 = vmatprep.subr.mxu0 0.0
    %784 = vmatpush1.msra.mxu0 0.0
    %785 = vmatprep.subr.mxu0 0.0
    %786 = vmatpush1.msra.mxu0 0.0
    %787 = vmatprep.subr.mxu0 0.0
    %788 = vmatpush1.msra.mxu0 0.0
    %789 = vmatprep.subr.mxu0 %v177
    %790 = vmatpush1.msra.mxu0 %v176
    %791 = vmatprep.subr.mxu0 0.0
    %792 = vmatpush2.msra.mxu0 0.0
    %793 = vmatprep.subr.mxu0 0.0
    %794 = vmatpush2.msra.mxu0 0.0
    %795 = vmatprep.subr.mxu0 0.0
    %796 = vmatpush2.msra.mxu0 0.0
    %797 = vmatprep.subr.mxu0 0.0
    %798 = vmatpush2.msra.mxu0 0.0
    %799 = vmatprep.subr.mxu0 0.0
    %800 = vmatpush2.msra.mxu0 0.0
    %801 = vmatprep.subr.mxu0 0.0
    %802 = vmatpush2.msra.mxu0 0.0
    %803 = vmatprep.subr.mxu0 0.0
    %804 = vmatpush2.msra.mxu0 0.0
    %805 = vmatprep.subr.mxu0 0.0
    %806 = vmatpush2.msra.mxu0 0.0
    %807 = vmatprep.subr.mxu0 0.0
    %808 = vmatpush2.msra.mxu0 0.0
    %809 = vmatprep.subr.mxu0 0.0
    %810 = vmatpush2.msra.mxu0 0.0
    %811 = vmatprep.subr.mxu0 0.0
    %812 = vmatpush2.msra.mxu0 0.0
    %813 = vmatprep.subr.mxu0 0.0
    %814 = vmatpush2.msra.mxu0 0.0
    %815 = vmatprep.subr.mxu0 0.0
    %816 = vmatpush2.msra.mxu0 0.0
    %817 = vmatprep.subr.mxu0 0.0
    %818 = vmatpush2.msra.mxu0 0.0
    %819 = vmatprep.subr.mxu0 0.0
    %820 = vmatpush2.msra.mxu0 0.0
    %821 = vmatprep.subr.mxu0 0.0
    %822 = vmatpush2.msra.mxu0 0.0
    %823 = vmatprep.mubr.f32.mxu0 0.0
    %824 = vmatmul.mubr.f32.gmra.mxu0 %v260
    %v825 = vpop.f32.mrf.mxu0
    %v826 = vadd.f32 0.0, %v825
    %v827 = vpop.f32.mrf.mxu0
    %v828 = vadd.f32 0.0, %v827
    %829 = vdwg.mxu0
    %830 = vmatprep.subr.mxu0 0.0
    %831 = vmatpush1.msra.mxu0 0.0
    %832 = vmatprep.subr.mxu0 0.0
    %833 = vmatpush1.msra.mxu0 0.0
    %834 = vmatprep.subr.mxu0 0.0
    %835 = vmatpush1.msra.mxu0 0.0
    %836 = vmatprep.subr.mxu0 0.0
    %837 = vmatpush1.msra.mxu0 0.0
    %838 = vmatprep.subr.mxu0 0.0
    %839 = vmatpush1.msra.mxu0 0.0
    %840 = vmatprep.subr.mxu0 0.0
    %841 = vmatpush1.msra.mxu0 0.0
    %842 = vmatprep.subr.mxu0 0.0
    %843 = vmatpush1.msra.mxu0 0.0
    %844 = vmatprep.subr.mxu0 0.0
    %845 = vmatpush1.msra.mxu0 0.0
    %846 = vmatprep.subr.mxu0 0.0
    %847 = vmatpush1.msra.mxu0 0.0
    %848 = vmatprep.subr.mxu0 0.0
    %849 = vmatpush1.msra.mxu0 0.0
    %850 = vmatprep.subr.mxu0 0.0
    %851 = vmatpush1.msra.mxu0 0.0
    %852 = vmatprep.subr.mxu0 0.0
    %853 = vmatpush1.msra.mxu0 0.0
    %854 = vmatprep.subr.mxu0 0.0
    %855 = vmatpush1.msra.mxu0 0.0
    %856 = vmatprep.subr.mxu0 0.0
    %857 = vmatpush1.msra.mxu0 0.0
    %858 = vmatprep.subr.mxu0 0.0
    %859 = vmatpush1.msra.mxu0 0.0
    %860 = vmatprep.subr.mxu0 %v179
    %861 = vmatpush1.msra.mxu0 %v178
    %862 = vmatprep.subr.mxu0 0.0
    %863 = vmatpush2.msra.mxu0 0.0
    %864 = vmatprep.subr.mxu0 0.0
    %865 = vmatpush2.msra.mxu0 0.0
    %866 = vmatprep.subr.mxu0 0.0
    %867 = vmatpush2.msra.mxu0 0.0
    %868 = vmatprep.subr.mxu0 0.0
    %869 = vmatpush2.msra.mxu0 0.0
    %870 = vmatprep.subr.mxu0 0.0
    %871 = vmatpush2.msra.mxu0 0.0
    %872 = vmatprep.subr.mxu0 0.0
    %873 = vmatpush2.msra.mxu0 0.0
    %874 = vmatprep.subr.mxu0 0.0
    %875 = vmatpush2.msra.mxu0 0.0
    %876 = vmatprep.subr.mxu0 0.0
    %877 = vmatpush2.msra.mxu0 0.0
    %878 = vmatprep.subr.mxu0 0.0
    %879 = vmatpush2.msra.mxu0 0.0
    %880 = vmatprep.subr.mxu0 0.0
    %881 = vmatpush2.msra.mxu0 0.0
    %882 = vmatprep.subr.mxu0 0.0
    %883 = vmatpush2.msra.mxu0 0.0
    %884 = vmatprep.subr.mxu0 0.0
    %885 = vmatpush2.msra.mxu0 0.0
    %886 = vmatprep.subr.mxu0 0.0
    %887 = vmatpush2.msra.mxu0 0.0
    %888 = vmatprep.subr.mxu0 0.0
    %889 = vmatpush2.msra.mxu0 0.0
    %890 = vmatprep.subr.mxu0 0.0
    %891 = vmatpush2.msra.mxu0 0.0
    %892 = vmatprep.subr.mxu0 0.0
    %893 = vmatpush2.msra.mxu0 0.0
    %894 = vmatprep.mubr.f32.mxu0 0.0
    %895 = vmatmul.mubr.f32.gmra.mxu0 %v260
    %v896 = vpop.f32.mrf.mxu0
    %v897 = vadd.f32 0.0, %v896
    %v898 = vpop.f32.mrf.mxu0
    %v899 = vadd.f32 0.0, %v898
    %900 = vdwg.mxu0
    %901 = vmatprep.subr.mxu0 0.0
    %902 = vmatpush1.msra.mxu0 0.0
    %903 = vmatprep.subr.mxu0 0.0
    %904 = vmatpush1.msra.mxu0 0.0
    %905 = vmatprep.subr.mxu0 0.0
    %906 = vmatpush1.msra.mxu0 0.0
    %907 = vmatprep.subr.mxu0 0.0
    %908 = vmatpush1.msra.mxu0 0.0
    %909 = vmatprep.subr.mxu0 0.0
    %910 = vmatpush1.msra.mxu0 0.0
    %911 = vmatprep.subr.mxu0 0.0
    %912 = vmatpush1.msra.mxu0 0.0
    %913 = vmatprep.subr.mxu0 0.0
    %914 = vmatpush1.msra.mxu0 0.0
    %915 = vmatprep.subr.mxu0 0.0
    %916 = vmatpush1.msra.mxu0 0.0
    %917 = vmatprep.subr.mxu0 0.0
    %918 = vmatpush1.msra.mxu0 0.0
    %919 = vmatprep.subr.mxu0 0.0
    %920 = vmatpush1.msra.mxu0 0.0
    %921 = vmatprep.subr.mxu0 0.0
    %922 = vmatpush1.msra.mxu0 0.0
    %923 = vmatprep.subr.mxu0 0.0
    %924 = vmatpush1.msra.mxu0 0.0
    %925 = vmatprep.subr.mxu0 0.0
    %926 = vmatpush1.msra.mxu0 0.0
    %927 = vmatprep.subr.mxu0 0.0
    %928 = vmatpush1.msra.mxu0 0.0
    %929 = vmatprep.subr.mxu0 0.0
    %930 = vmatpush1.msra.mxu0 0.0
    %931 = vmatprep.subr.mxu0 %v181
    %932 = vmatpush1.msra.mxu0 %v180
    %933 = vmatprep.subr.mxu0 0.0
    %934 = vmatpush2.msra.mxu0 0.0
    %935 = vmatprep.subr.mxu0 0.0
    %936 = vmatpush2.msra.mxu0 0.0
    %937 = vmatprep.subr.mxu0 0.0
    %938 = vmatpush2.msra.mxu0 0.0
    %939 = vmatprep.subr.mxu0 0.0
    %940 = vmatpush2.msra.mxu0 0.0
    %941 = vmatprep.subr.mxu0 0.0
    %942 = vmatpush2.msra.mxu0 0.0
    %943 = vmatprep.subr.mxu0 0.0
    %944 = vmatpush2.msra.mxu0 0.0
    %945 = vmatprep.subr.mxu0 0.0
    %946 = vmatpush2.msra.mxu0 0.0
    %947 = vmatprep.subr.mxu0 0.0
    %948 = vmatpush2.msra.mxu0 0.0
    %949 = vmatprep.subr.mxu0 0.0
    %950 = vmatpush2.msra.mxu0 0.0
    %951 = vmatprep.subr.mxu0 0.0
    %952 = vmatpush2.msra.mxu0 0.0
    %953 = vmatprep.subr.mxu0 0.0
    %954 = vmatpush2.msra.mxu0 0.0
    %955 = vmatprep.subr.mxu0 0.0
    %956 = vmatpush2.msra.mxu0 0.0
    %957 = vmatprep.subr.mxu0 0.0
    %958 = vmatpush2.msra.mxu0 0.0
    %959 = vmatprep.subr.mxu0 0.0
    %960 = vmatpush2.msra.mxu0 0.0
    %961 = vmatprep.subr.mxu0 0.0
    %962 = vmatpush2.msra.mxu0 0.0
    %963 = vmatprep.subr.mxu0 0.0
    %964 = vmatpush2.msra.mxu0 0.0
    %965 = vmatprep.mubr.f32.mxu0 0.0
    %966 = vmatmul.mubr.f32.gmra.mxu0 %v260
    %v967 = vpop.f32.mrf.mxu0
    %v968 = vadd.f32 0.0, %v967
    %v969 = vpop.f32.mrf.mxu0
    %v970 = vadd.f32 0.0, %v969
    %971 = vdwg.mxu0
    %972 = vmatprep.subr.mxu0 0.0
    %973 = vmatpush1.msra.mxu0 0.0
    %974 = vmatprep.subr.mxu0 0.0
    %975 = vmatpush1.msra.mxu0 0.0
    %976 = vmatprep.subr.mxu0 0.0
    %977 = vmatpush1.msra.mxu0 0.0
    %978 = vmatprep.subr.mxu0 0.0
    %979 = vmatpush1.msra.mxu0 0.0
    %980 = vmatprep.subr.mxu0 0.0
    %981 = vmatpush1.msra.mxu0 0.0
    %982 = vmatprep.subr.mxu0 0.0
    %983 = vmatpush1.msra.mxu0 0.0
    %984 = vmatprep.subr.mxu0 0.0
    %985 = vmatpush1.msra.mxu0 0.0
    %986 = vmatprep.subr.mxu0 0.0
    %987 = vmatpush1.msra.mxu0 0.0
    %988 = vmatprep.subr.mxu0 0.0
    %989 = vmatpush1.msra.mxu0 0.0
    %990 = vmatprep.subr.mxu0 0.0
    %991 = vmatpush1.msra.mxu0 0.0
    %992 = vmatprep.subr.mxu0 0.0
    %993 = vmatpush1.msra.mxu0 0.0
    %994 = vmatprep.subr.mxu0 0.0
    %995 = vmatpush1.msra.mxu0 0.0
    %996 = vmatprep.subr.mxu0 0.0
    %997 = vmatpush1.msra.mxu0 0.0
    %998 = vmatprep.subr.mxu0 0.0
    %999 = vmatpush1.msra.mxu0 0.0
    %1000 = vmatprep.subr.mxu0 0.0
    %1001 = vmatpush1.msra.mxu0 0.0
    %1002 = vmatprep.subr.mxu0 %v183
    %1003 = vmatpush1.msra.mxu0 %v182
    %1004 = vmatprep.subr.mxu0 0.0
    %1005 = vmatpush2.msra.mxu0 0.0
    %1006 = vmatprep.subr.mxu0 0.0
    %1007 = vmatpush2.msra.mxu0 0.0
    %1008 = vmatprep.subr.mxu0 0.0
    %1009 = vmatpush2.msra.mxu0 0.0
    %1010 = vmatprep.subr.mxu0 0.0
    %1011 = vmatpush2.msra.mxu0 0.0
    %1012 = vmatprep.subr.mxu0 0.0
    %1013 = vmatpush2.msra.mxu0 0.0
    %1014 = vmatprep.subr.mxu0 0.0
    %1015 = vmatpush2.msra.mxu0 0.0
    %1016 = vmatprep.subr.mxu0 0.0
    %1017 = vmatpush2.msra.mxu0 0.0
    %1018 = vmatprep.subr.mxu0 0.0
    %1019 = vmatpush2.msra.mxu0 0.0
    %1020 = vmatprep.subr.mxu0 0.0
    %1021 = vmatpush2.msra.mxu0 0.0
    %1022 = vmatprep.subr.mxu0 0.0
    %1023 = vmatpush2.msra.mxu0 0.0
    %1024 = vmatprep.subr.mxu0 0.0
    %1025 = vmatpush2.msra.mxu0 0.0
    %1026 = vmatprep.subr.mxu0 0.0
    %1027 = vmatpush2.msra.mxu0 0.0
    %1028 = vmatprep.subr.mxu0 0.0
    %1029 = vmatpush2.msra.mxu0 0.0
    %1030 = vmatprep.subr.mxu0 0.0
    %1031 = vmatpush2.msra.mxu0 0.0
    %1032 = vmatprep.subr.mxu0 0.0
    %1033 = vmatpush2.msra.mxu0 0.0
    %1034 = vmatprep.subr.mxu0 0.0
    %1035 = vmatpush2.msra.mxu0 0.0
    %1036 = vmatprep.mubr.f32.mxu0 0.0
    %1037 = vmatmul.mubr.f32.gmra.mxu0 %v260
    %v1038 = vpop.f32.mrf.mxu0
    %v1039 = vadd.f32 0.0, %v1038
    %v1040 = vpop.f32.mrf.mxu0
    %v1041 = vadd.f32 0.0, %v1040
    %1042 = vdwg.mxu0
    %1043 = vmatprep.subr.mxu0 0.0
    %1044 = vmatpush1.msra.mxu0 0.0
    %1045 = vmatprep.subr.mxu0 0.0
    %1046 = vmatpush1.msra.mxu0 0.0
    %1047 = vmatprep.subr.mxu0 0.0
    %1048 = vmatpush1.msra.mxu0 0.0
    %1049 = vmatprep.subr.mxu0 0.0
    %1050 = vmatpush1.msra.mxu0 0.0
    %1051 = vmatprep.subr.mxu0 0.0
    %1052 = vmatpush1.msra.mxu0 0.0
    %1053 = vmatprep.subr.mxu0 0.0
    %1054 = vmatpush1.msra.mxu0 0.0
    %1055 = vmatprep.subr.mxu0 0.0
    %1056 = vmatpush1.msra.mxu0 0.0
    %1057 = vmatprep.subr.mxu0 0.0
    %1058 = vmatpush1.msra.mxu0 0.0
    %1059 = vmatprep.subr.mxu0 0.0
    %1060 = vmatpush1.msra.mxu0 0.0
    %1061 = vmatprep.subr.mxu0 0.0
    %1062 = vmatpush1.msra.mxu0 0.0
    %1063 = vmatprep.subr.mxu0 0.0
    %1064 = vmatpush1.msra.mxu0 0.0
    %1065 = vmatprep.subr.mxu0 0.0
    %1066 = vmatpush1.msra.mxu0 0.0
    %1067 = vmatprep.subr.mxu0 0.0
    %1068 = vmatpush1.msra.mxu0 0.0
    %1069 = vmatprep.subr.mxu0 0.0
    %1070 = vmatpush1.msra.mxu0 0.0
    %1071 = vmatprep.subr.mxu0 0.0
    %1072 = vmatpush1.msra.mxu0 0.0
    %1073 = vmatprep.subr.mxu0 %v185
    %1074 = vmatpush1.msra.mxu0 %v184
    %1075 = vmatprep.subr.mxu0 0.0
    %1076 = vmatpush2.msra.mxu0 0.0
    %1077 = vmatprep.subr.mxu0 0.0
    %1078 = vmatpush2.msra.mxu0 0.0
    %1079 = vmatprep.subr.mxu0 0.0
    %1080 = vmatpush2.msra.mxu0 0.0
    %1081 = vmatprep.subr.mxu0 0.0
    %1082 = vmatpush2.msra.mxu0 0.0
    %1083 = vmatprep.subr.mxu0 0.0
    %1084 = vmatpush2.msra.mxu0 0.0
    %1085 = vmatprep.subr.mxu0 0.0
    %1086 = vmatpush2.msra.mxu0 0.0
    %1087 = vmatprep.subr.mxu0 0.0
    %1088 = vmatpush2.msra.mxu0 0.0
    %1089 = vmatprep.subr.mxu0 0.0
    %1090 = vmatpush2.msra.mxu0 0.0
    %1091 = vmatprep.subr.mxu0 0.0
    %1092 = vmatpush2.msra.mxu0 0.0
    %1093 = vmatprep.subr.mxu0 0.0
    %1094 = vmatpush2.msra.mxu0 0.0
    %1095 = vmatprep.subr.mxu0 0.0
    %1096 = vmatpush2.msra.mxu0 0.0
    %1097 = vmatprep.subr.mxu0 0.0
    %1098 = vmatpush2.msra.mxu0 0.0
    %1099 = vmatprep.subr.mxu0 0.0
    %1100 = vmatpush2.msra.mxu0 0.0
    %1101 = vmatprep.subr.mxu0 0.0
    %1102 = vmatpush2.msra.mxu0 0.0
    %1103 = vmatprep.subr.mxu0 0.0
    %1104 = vmatpush2.msra.mxu0 0.0
    %1105 = vmatprep.subr.mxu0 0.0
    %1106 = vmatpush2.msra.mxu0 0.0
    %1107 = vmatprep.mubr.f32.mxu0 0.0
    %1108 = vmatmul.mubr.f32.gmra.mxu0 %v260
    %v1109 = vpop.f32.mrf.mxu0
    %v1110 = vadd.f32 0.0, %v1109
    %v1111 = vpop.f32.mrf.mxu0
    %v1112 = vadd.f32 0.0, %v1111
    %1113 = vdwg.mxu0
    %1114 = vmatprep.subr.mxu0 0.0
    %1115 = vmatpush1.msra.mxu0 0.0
    %1116 = vmatprep.subr.mxu0 0.0
    %1117 = vmatpush1.msra.mxu0 0.0
    %1118 = vmatprep.subr.mxu0 0.0
    %1119 = vmatpush1.msra.mxu0 0.0
    %1120 = vmatprep.subr.mxu0 0.0
    %1121 = vmatpush1.msra.mxu0 0.0
    %1122 = vmatprep.subr.mxu0 0.0
    %1123 = vmatpush1.msra.mxu0 0.0
    %1124 = vmatprep.subr.mxu0 0.0
    %1125 = vmatpush1.msra.mxu0 0.0
    %1126 = vmatprep.subr.mxu0 0.0
    %1127 = vmatpush1.msra.mxu0 0.0
    %1128 = vmatprep.subr.mxu0 0.0
    %1129 = vmatpush1.msra.mxu0 0.0
    %1130 = vmatprep.subr.mxu0 0.0
    %1131 = vmatpush1.msra.mxu0 0.0
    %1132 = vmatprep.subr.mxu0 0.0
    %1133 = vmatpush1.msra.mxu0 0.0
    %1134 = vmatprep.subr.mxu0 0.0
    %1135 = vmatpush1.msra.mxu0 0.0
    %1136 = vmatprep.subr.mxu0 0.0
    %1137 = vmatpush1.msra.mxu0 0.0
    %1138 = vmatprep.subr.mxu0 0.0
    %1139 = vmatpush1.msra.mxu0 0.0
    %1140 = vmatprep.subr.mxu0 0.0
    %1141 = vmatpush1.msra.mxu0 0.0
    %1142 = vmatprep.subr.mxu0 0.0
    %1143 = vmatpush1.msra.mxu0 0.0
    %1144 = vmatprep.subr.mxu0 %v187
    %1145 = vmatpush1.msra.mxu0 %v186
    %1146 = vmatprep.subr.mxu0 0.0
    %1147 = vmatpush2.msra.mxu0 0.0
    %1148 = vmatprep.subr.mxu0 0.0
    %1149 = vmatpush2.msra.mxu0 0.0
    %1150 = vmatprep.subr.mxu0 0.0
    %1151 = vmatpush2.msra.mxu0 0.0
    %1152 = vmatprep.subr.mxu0 0.0
    %1153 = vmatpush2.msra.mxu0 0.0
    %1154 = vmatprep.subr.mxu0 0.0
    %1155 = vmatpush2.msra.mxu0 0.0
    %1156 = vmatprep.subr.mxu0 0.0
    %1157 = vmatpush2.msra.mxu0 0.0
    %1158 = vmatprep.subr.mxu0 0.0
    %1159 = vmatpush2.msra.mxu0 0.0
    %1160 = vmatprep.subr.mxu0 0.0
    %1161 = vmatpush2.msra.mxu0 0.0
    %1162 = vmatprep.subr.mxu0 0.0
    %1163 = vmatpush2.msra.mxu0 0.0
    %1164 = vmatprep.subr.mxu0 0.0
    %1165 = vmatpush2.msra.mxu0 0.0
    %1166 = vmatprep.subr.mxu0 0.0
    %1167 = vmatpush2.msra.mxu0 0.0
    %1168 = vmatprep.subr.mxu0 0.0
    %1169 = vmatpush2.msra.mxu0 0.0
    %1170 = vmatprep.subr.mxu0 0.0
    %1171 = vmatpush2.msra.mxu0 0.0
    %1172 = vmatprep.subr.mxu0 0.0
    %1173 = vmatpush2.msra.mxu0 0.0
    %1174 = vmatprep.subr.mxu0 0.0
    %1175 = vmatpush2.msra.mxu0 0.0
    %1176 = vmatprep.subr.mxu0 0.0
    %1177 = vmatpush2.msra.mxu0 0.0
    %1178 = vmatprep.mubr.f32.mxu0 0.0
    %1179 = vmatmul.mubr.f32.gmra.mxu0 %v260
    %v1180 = vpop.f32.mrf.mxu0
    %v1181 = vadd.f32 0.0, %v1180
    %v1182 = vpop.f32.mrf.mxu0
    %v1183 = vadd.f32 0.0, %v1182
    %1184 = vdwg.mxu0
    %1185 = vmatprep.subr.mxu0 0.0
    %1186 = vmatpush1.msra.mxu0 0.0
    %1187 = vmatprep.subr.mxu0 0.0
    %1188 = vmatpush1.msra.mxu0 0.0
    %1189 = vmatprep.subr.mxu0 0.0
    %1190 = vmatpush1.msra.mxu0 0.0
    %1191 = vmatprep.subr.mxu0 0.0
    %1192 = vmatpush1.msra.mxu0 0.0
    %1193 = vmatprep.subr.mxu0 0.0
    %1194 = vmatpush1.msra.mxu0 0.0
    %1195 = vmatprep.subr.mxu0 0.0
    %1196 = vmatpush1.msra.mxu0 0.0
    %1197 = vmatprep.subr.mxu0 0.0
    %1198 = vmatpush1.msra.mxu0 0.0
    %1199 = vmatprep.subr.mxu0 0.0
    %1200 = vmatpush1.msra.mxu0 0.0
    %1201 = vmatprep.subr.mxu0 0.0
    %1202 = vmatpush1.msra.mxu0 0.0
    %1203 = vmatprep.subr.mxu0 0.0
    %1204 = vmatpush1.msra.mxu0 0.0
    %1205 = vmatprep.subr.mxu0 0.0
    %1206 = vmatpush1.msra.mxu0 0.0
    %1207 = vmatprep.subr.mxu0 0.0
    %1208 = vmatpush1.msra.mxu0 0.0
    %1209 = vmatprep.subr.mxu0 0.0
    %1210 = vmatpush1.msra.mxu0 0.0
    %1211 = vmatprep.subr.mxu0 0.0
    %1212 = vmatpush1.msra.mxu0 0.0
    %1213 = vmatprep.subr.mxu0 0.0
    %1214 = vmatpush1.msra.mxu0 0.0
    %1215 = vmatprep.subr.mxu0 %v189
    %1216 = vmatpush1.msra.mxu0 %v188
    %1217 = vmatprep.subr.mxu0 0.0
    %1218 = vmatpush2.msra.mxu0 0.0
    %1219 = vmatprep.subr.mxu0 0.0
    %1220 = vmatpush2.msra.mxu0 0.0
    %1221 = vmatprep.subr.mxu0 0.0
    %1222 = vmatpush2.msra.mxu0 0.0
    %1223 = vmatprep.subr.mxu0 0.0
    %1224 = vmatpush2.msra.mxu0 0.0
    %1225 = vmatprep.subr.mxu0 0.0
    %1226 = vmatpush2.msra.mxu0 0.0
    %1227 = vmatprep.subr.mxu0 0.0
    %1228 = vmatpush2.msra.mxu0 0.0
    %1229 = vmatprep.subr.mxu0 0.0
    %1230 = vmatpush2.msra.mxu0 0.0
    %1231 = vmatprep.subr.mxu0 0.0
    %1232 = vmatpush2.msra.mxu0 0.0
    %1233 = vmatprep.subr.mxu0 0.0
    %1234 = vmatpush2.msra.mxu0 0.0
    %1235 = vmatprep.subr.mxu0 0.0
    %1236 = vmatpush2.msra.mxu0 0.0
    %1237 = vmatprep.subr.mxu0 0.0
    %1238 = vmatpush2.msra.mxu0 0.0
    %1239 = vmatprep.subr.mxu0 0.0
    %1240 = vmatpush2.msra.mxu0 0.0
    %1241 = vmatprep.subr.mxu0 0.0
    %1242 = vmatpush2.msra.mxu0 0.0
    %1243 = vmatprep.subr.mxu0 0.0
    %1244 = vmatpush2.msra.mxu0 0.0
    %1245 = vmatprep.subr.mxu0 0.0
    %1246 = vmatpush2.msra.mxu0 0.0
    %1247 = vmatprep.subr.mxu0 0.0
    %1248 = vmatpush2.msra.mxu0 0.0
    %1249 = vmatprep.mubr.f32.mxu0 0.0
    %1250 = vmatmul.mubr.f32.gmra.mxu0 %v260
    %v1251 = vpop.f32.mrf.mxu0
    %v1252 = vadd.f32 0.0, %v1251
    %v1253 = vpop.f32.mrf.mxu0
    %v1254 = vadd.f32 0.0, %v1253
    %1255 = vdwg.mxu0
    %1256 = vmatprep.subr.mxu0 0.0
    %1257 = vmatpush1.msra.mxu0 0.0
    %1258 = vmatprep.subr.mxu0 0.0
    %1259 = vmatpush1.msra.mxu0 0.0
    %1260 = vmatprep.subr.mxu0 0.0
    %1261 = vmatpush1.msra.mxu0 0.0
    %1262 = vmatprep.subr.mxu0 0.0
    %1263 = vmatpush1.msra.mxu0 0.0
    %1264 = vmatprep.subr.mxu0 0.0
    %1265 = vmatpush1.msra.mxu0 0.0
    %1266 = vmatprep.subr.mxu0 0.0
    %1267 = vmatpush1.msra.mxu0 0.0
    %1268 = vmatprep.subr.mxu0 0.0
    %1269 = vmatpush1.msra.mxu0 0.0
    %1270 = vmatprep.subr.mxu0 0.0
    %1271 = vmatpush1.msra.mxu0 0.0
    %1272 = vmatprep.subr.mxu0 0.0
    %1273 = vmatpush1.msra.mxu0 0.0
    %1274 = vmatprep.subr.mxu0 0.0
    %1275 = vmatpush1.msra.mxu0 0.0
    %1276 = vmatprep.subr.mxu0 0.0
    %1277 = vmatpush1.msra.mxu0 0.0
    %1278 = vmatprep.subr.mxu0 0.0
    %1279 = vmatpush1.msra.mxu0 0.0
    %1280 = vmatprep.subr.mxu0 0.0
    %1281 = vmatpush1.msra.mxu0 0.0
    %1282 = vmatprep.subr.mxu0 0.0
    %1283 = vmatpush1.msra.mxu0 0.0
    %1284 = vmatprep.subr.mxu0 0.0
    %1285 = vmatpush1.msra.mxu0 0.0
    %1286 = vmatprep.subr.mxu0 %v191
    %1287 = vmatpush1.msra.mxu0 %v190
    %1288 = vmatprep.subr.mxu0 0.0
    %1289 = vmatpush2.msra.mxu0 0.0
    %1290 = vmatprep.subr.mxu0 0.0
    %1291 = vmatpush2.msra.mxu0 0.0
    %1292 = vmatprep.subr.mxu0 0.0
    %1293 = vmatpush2.msra.mxu0 0.0
    %1294 = vmatprep.subr.mxu0 0.0
    %1295 = vmatpush2.msra.mxu0 0.0
    %1296 = vmatprep.subr.mxu0 0.0
    %1297 = vmatpush2.msra.mxu0 0.0
    %1298 = vmatprep.subr.mxu0 0.0
    %1299 = vmatpush2.msra.mxu0 0.0
    %1300 = vmatprep.subr.mxu0 0.0
    %1301 = vmatpush2.msra.mxu0 0.0
    %1302 = vmatprep.subr.mxu0 0.0
    %1303 = vmatpush2.msra.mxu0 0.0
    %1304 = vmatprep.subr.mxu0 0.0
    %1305 = vmatpush2.msra.mxu0 0.0
    %1306 = vmatprep.subr.mxu0 0.0
    %1307 = vmatpush2.msra.mxu0 0.0
    %1308 = vmatprep.subr.mxu0 0.0
    %1309 = vmatpush2.msra.mxu0 0.0
    %1310 = vmatprep.subr.mxu0 0.0
    %1311 = vmatpush2.msra.mxu0 0.0
    %1312 = vmatprep.subr.mxu0 0.0
    %1313 = vmatpush2.msra.mxu0 0.0
    %1314 = vmatprep.subr.mxu0 0.0
    %1315 = vmatpush2.msra.mxu0 0.0
    %1316 = vmatprep.subr.mxu0 0.0
    %1317 = vmatpush2.msra.mxu0 0.0
    %1318 = vmatprep.subr.mxu0 0.0
    %1319 = vmatpush2.msra.mxu0 0.0
    %1320 = vmatprep.mubr.f32.mxu0 0.0
    %1321 = vmatmul.mubr.f32.gmra.mxu0 %v260
    %v1322 = vpop.f32.mrf.mxu0
    %v1323 = vadd.f32 0.0, %v1322
    %v1324 = vpop.f32.mrf.mxu0
    %v1325 = vadd.f32 0.0, %v1324
    %1326 = vdwg.mxu0
    %1327 = vmatprep.subr.mxu0 0.0
    %1328 = vmatpush1.msra.mxu0 0.0
    %1329 = vmatprep.subr.mxu0 0.0
    %1330 = vmatpush1.msra.mxu0 0.0
    %1331 = vmatprep.subr.mxu0 0.0
    %1332 = vmatpush1.msra.mxu0 0.0
    %1333 = vmatprep.subr.mxu0 0.0
    %1334 = vmatpush1.msra.mxu0 0.0
    %1335 = vmatprep.subr.mxu0 0.0
    %1336 = vmatpush1.msra.mxu0 0.0
    %1337 = vmatprep.subr.mxu0 0.0
    %1338 = vmatpush1.msra.mxu0 0.0
    %1339 = vmatprep.subr.mxu0 0.0
    %1340 = vmatpush1.msra.mxu0 0.0
    %1341 = vmatprep.subr.mxu0 0.0
    %1342 = vmatpush1.msra.mxu0 0.0
    %1343 = vmatprep.subr.mxu0 0.0
    %1344 = vmatpush1.msra.mxu0 0.0
    %1345 = vmatprep.subr.mxu0 0.0
    %1346 = vmatpush1.msra.mxu0 0.0
    %1347 = vmatprep.subr.mxu0 0.0
    %1348 = vmatpush1.msra.mxu0 0.0
    %1349 = vmatprep.subr.mxu0 0.0
    %1350 = vmatpush1.msra.mxu0 0.0
    %1351 = vmatprep.subr.mxu0 0.0
    %1352 = vmatpush1.msra.mxu0 0.0
    %1353 = vmatprep.subr.mxu0 0.0
    %1354 = vmatpush1.msra.mxu0 0.0
    %1355 = vmatprep.subr.mxu0 0.0
    %1356 = vmatpush1.msra.mxu0 0.0
    %1357 = vmatprep.subr.mxu0 %v193
    %1358 = vmatpush1.msra.mxu0 %v192
    %1359 = vmatprep.subr.mxu0 0.0
    %1360 = vmatpush2.msra.mxu0 0.0
    %1361 = vmatprep.subr.mxu0 0.0
    %1362 = vmatpush2.msra.mxu0 0.0
    %1363 = vmatprep.subr.mxu0 0.0
    %1364 = vmatpush2.msra.mxu0 0.0
    %1365 = vmatprep.subr.mxu0 0.0
    %1366 = vmatpush2.msra.mxu0 0.0
    %1367 = vmatprep.subr.mxu0 0.0
    %1368 = vmatpush2.msra.mxu0 0.0
    %1369 = vmatprep.subr.mxu0 0.0
    %1370 = vmatpush2.msra.mxu0 0.0
    %1371 = vmatprep.subr.mxu0 0.0
    %1372 = vmatpush2.msra.mxu0 0.0
    %1373 = vmatprep.subr.mxu0 0.0
    %1374 = vmatpush2.msra.mxu0 0.0
    %1375 = vmatprep.subr.mxu0 0.0
    %1376 = vmatpush2.msra.mxu0 0.0
    %1377 = vmatprep.subr.mxu0 0.0
    %1378 = vmatpush2.msra.mxu0 0.0
    %1379 = vmatprep.subr.mxu0 0.0
    %1380 = vmatpush2.msra.mxu0 0.0
    %1381 = vmatprep.subr.mxu0 0.0
    %1382 = vmatpush2.msra.mxu0 0.0
    %1383 = vmatprep.subr.mxu0 0.0
    %1384 = vmatpush2.msra.mxu0 0.0
    %1385 = vmatprep.subr.mxu0 0.0
    %1386 = vmatpush2.msra.mxu0 0.0
    %1387 = vmatprep.subr.mxu0 0.0
    %1388 = vmatpush2.msra.mxu0 0.0
    %1389 = vmatprep.subr.mxu0 0.0
    %1390 = vmatpush2.msra.mxu0 0.0
    %1391 = vmatprep.mubr.f32.mxu0 0.0
    %1392 = vmatmul.mubr.f32.gmra.mxu0 %v260
    %v1393 = vpop.f32.mrf.mxu0
    %v1394 = vadd.f32 0.0, %v1393
    %v1395 = vpop.f32.mrf.mxu0
    %v1396 = vadd.f32 0.0, %v1395
    %1397 = vdwg.mxu0
    %1398 = vmatprep.subr.mxu0 0.0
    %1399 = vmatpush1.msra.mxu0 0.0
    %1400 = vmatprep.subr.mxu0 0.0
    %1401 = vmatpush1.msra.mxu0 0.0
    %1402 = vmatprep.subr.mxu0 0.0
    %1403 = vmatpush1.msra.mxu0 0.0
    %1404 = vmatprep.subr.mxu0 0.0
    %1405 = vmatpush1.msra.mxu0 0.0
    %1406 = vmatprep.subr.mxu0 0.0
    %1407 = vmatpush1.msra.mxu0 0.0
    %1408 = vmatprep.subr.mxu0 0.0
    %1409 = vmatpush1.msra.mxu0 0.0
    %1410 = vmatprep.subr.mxu0 0.0
    %1411 = vmatpush1.msra.mxu0 0.0
    %1412 = vmatprep.subr.mxu0 0.0
    %1413 = vmatpush1.msra.mxu0 0.0
    %1414 = vmatprep.subr.mxu0 0.0
    %1415 = vmatpush1.msra.mxu0 0.0
    %1416 = vmatprep.subr.mxu0 0.0
    %1417 = vmatpush1.msra.mxu0 0.0
    %1418 = vmatprep.subr.mxu0 0.0
    %1419 = vmatpush1.msra.mxu0 0.0
    %1420 = vmatprep.subr.mxu0 0.0
    %1421 = vmatpush1.msra.mxu0 0.0
    %1422 = vmatprep.subr.mxu0 0.0
    %1423 = vmatpush1.msra.mxu0 0.0
    %1424 = vmatprep.subr.mxu0 0.0
    %1425 = vmatpush1.msra.mxu0 0.0
    %1426 = vmatprep.subr.mxu0 0.0
    %1427 = vmatpush1.msra.mxu0 0.0
    %1428 = vmatprep.subr.mxu0 %v195
    %1429 = vmatpush1.msra.mxu0 %v194
    %1430 = vmatprep.subr.mxu0 0.0
    %1431 = vmatpush2.msra.mxu0 0.0
    %1432 = vmatprep.subr.mxu0 0.0
    %1433 = vmatpush2.msra.mxu0 0.0
    %1434 = vmatprep.subr.mxu0 0.0
    %1435 = vmatpush2.msra.mxu0 0.0
    %1436 = vmatprep.subr.mxu0 0.0
    %1437 = vmatpush2.msra.mxu0 0.0
    %1438 = vmatprep.subr.mxu0 0.0
    %1439 = vmatpush2.msra.mxu0 0.0
    %1440 = vmatprep.subr.mxu0 0.0
    %1441 = vmatpush2.msra.mxu0 0.0
    %1442 = vmatprep.subr.mxu0 0.0
    %1443 = vmatpush2.msra.mxu0 0.0
    %1444 = vmatprep.subr.mxu0 0.0
    %1445 = vmatpush2.msra.mxu0 0.0
    %1446 = vmatprep.subr.mxu0 0.0
    %1447 = vmatpush2.msra.mxu0 0.0
    %1448 = vmatprep.subr.mxu0 0.0
    %1449 = vmatpush2.msra.mxu0 0.0
    %1450 = vmatprep.subr.mxu0 0.0
    %1451 = vmatpush2.msra.mxu0 0.0
    %1452 = vmatprep.subr.mxu0 0.0
    %1453 = vmatpush2.msra.mxu0 0.0
    %1454 = vmatprep.subr.mxu0 0.0
    %1455 = vmatpush2.msra.mxu0 0.0
    %1456 = vmatprep.subr.mxu0 0.0
    %1457 = vmatpush2.msra.mxu0 0.0
    %1458 = vmatprep.subr.mxu0 0.0
    %1459 = vmatpush2.msra.mxu0 0.0
    %1460 = vmatprep.subr.mxu0 0.0
    %1461 = vmatpush2.msra.mxu0 0.0
    %1462 = vmatprep.mubr.f32.mxu0 0.0
    %1463 = vmatmul.mubr.f32.gmra.mxu0 %v260
    %v1464 = vpop.f32.mrf.mxu0
    %v1465 = vadd.f32 0.0, %v1464
    %v1466 = vpop.f32.mrf.mxu0
    %v1467 = vadd.f32 0.0, %v1466
    %1468 = vdwg.mxu0
    %1469 = vmatprep.subr.mxu0 0.0
    %1470 = vmatpush1.msra.mxu0 0.0
    %1471 = vmatprep.subr.mxu0 0.0
    %1472 = vmatpush1.msra.mxu0 0.0
    %1473 = vmatprep.subr.mxu0 0.0
    %1474 = vmatpush1.msra.mxu0 0.0
    %1475 = vmatprep.subr.mxu0 0.0
    %1476 = vmatpush1.msra.mxu0 0.0
    %1477 = vmatprep.subr.mxu0 0.0
    %1478 = vmatpush1.msra.mxu0 0.0
    %1479 = vmatprep.subr.mxu0 0.0
    %1480 = vmatpush1.msra.mxu0 0.0
    %1481 = vmatprep.subr.mxu0 0.0
    %1482 = vmatpush1.msra.mxu0 0.0
    %1483 = vmatprep.subr.mxu0 0.0
    %1484 = vmatpush1.msra.mxu0 0.0
    %1485 = vmatprep.subr.mxu0 0.0
    %1486 = vmatpush1.msra.mxu0 0.0
    %1487 = vmatprep.subr.mxu0 0.0
    %1488 = vmatpush1.msra.mxu0 0.0
    %1489 = vmatprep.subr.mxu0 0.0
    %1490 = vmatpush1.msra.mxu0 0.0
    %1491 = vmatprep.subr.mxu0 0.0
    %1492 = vmatpush1.msra.mxu0 0.0
    %1493 = vmatprep.subr.mxu0 0.0
    %1494 = vmatpush1.msra.mxu0 0.0
    %1495 = vmatprep.subr.mxu0 0.0
    %1496 = vmatpush1.msra.mxu0 0.0
    %1497 = vmatprep.subr.mxu0 0.0
    %1498 = vmatpush1.msra.mxu0 0.0
    %1499 = vmatprep.subr.mxu0 %v197
    %1500 = vmatpush1.msra.mxu0 %v196
    %1501 = vmatprep.subr.mxu0 0.0
    %1502 = vmatpush2.msra.mxu0 0.0
    %1503 = vmatprep.subr.mxu0 0.0
    %1504 = vmatpush2.msra.mxu0 0.0
    %1505 = vmatprep.subr.mxu0 0.0
    %1506 = vmatpush2.msra.mxu0 0.0
    %1507 = vmatprep.subr.mxu0 0.0
    %1508 = vmatpush2.msra.mxu0 0.0
    %1509 = vmatprep.subr.mxu0 0.0
    %1510 = vmatpush2.msra.mxu0 0.0
    %1511 = vmatprep.subr.mxu0 0.0
    %1512 = vmatpush2.msra.mxu0 0.0
    %1513 = vmatprep.subr.mxu0 0.0
    %1514 = vmatpush2.msra.mxu0 0.0
    %1515 = vmatprep.subr.mxu0 0.0
    %1516 = vmatpush2.msra.mxu0 0.0
    %1517 = vmatprep.subr.mxu0 0.0
    %1518 = vmatpush2.msra.mxu0 0.0
    %1519 = vmatprep.subr.mxu0 0.0
    %1520 = vmatpush2.msra.mxu0 0.0
    %1521 = vmatprep.subr.mxu0 0.0
    %1522 = vmatpush2.msra.mxu0 0.0
    %1523 = vmatprep.subr.mxu0 0.0
    %1524 = vmatpush2.msra.mxu0 0.0
    %1525 = vmatprep.subr.mxu0 0.0
    %1526 = vmatpush2.msra.mxu0 0.0
    %1527 = vmatprep.subr.mxu0 0.0
    %1528 = vmatpush2.msra.mxu0 0.0
    %1529 = vmatprep.subr.mxu0 0.0
    %1530 = vmatpush2.msra.mxu0 0.0
    %1531 = vmatprep.subr.mxu0 0.0
    %1532 = vmatpush2.msra.mxu0 0.0
    %1533 = vmatprep.mubr.f32.mxu0 0.0
    %1534 = vmatmul.mubr.f32.gmra.mxu0 %v260
    %v1535 = vpop.f32.mrf.mxu0
    %v1536 = vadd.f32 0.0, %v1535
    %v1537 = vpop.f32.mrf.mxu0
    %v1538 = vadd.f32 0.0, %v1537
    %1539 = vdwg.mxu0
    %1540 = vmatprep.subr.mxu0 0.0
    %1541 = vmatpush1.msra.mxu0 0.0
    %1542 = vmatprep.subr.mxu0 0.0
    %1543 = vmatpush1.msra.mxu0 0.0
    %1544 = vmatprep.subr.mxu0 0.0
    %1545 = vmatpush1.msra.mxu0 0.0
    %1546 = vmatprep.subr.mxu0 0.0
    %1547 = vmatpush1.msra.mxu0 0.0
    %1548 = vmatprep.subr.mxu0 0.0
    %1549 = vmatpush1.msra.mxu0 0.0
    %1550 = vmatprep.subr.mxu0 0.0
    %1551 = vmatpush1.msra.mxu0 0.0
    %1552 = vmatprep.subr.mxu0 0.0
    %1553 = vmatpush1.msra.mxu0 0.0
    %1554 = vmatprep.subr.mxu0 0.0
    %1555 = vmatpush1.msra.mxu0 0.0
    %1556 = vmatprep.subr.mxu0 0.0
    %1557 = vmatpush1.msra.mxu0 0.0
    %1558 = vmatprep.subr.mxu0 0.0
    %1559 = vmatpush1.msra.mxu0 0.0
    %1560 = vmatprep.subr.mxu0 0.0
    %1561 = vmatpush1.msra.mxu0 0.0
    %1562 = vmatprep.subr.mxu0 0.0
    %1563 = vmatpush1.msra.mxu0 0.0
    %1564 = vmatprep.subr.mxu0 0.0
    %1565 = vmatpush1.msra.mxu0 0.0
    %1566 = vmatprep.subr.mxu0 0.0
    %1567 = vmatpush1.msra.mxu0 0.0
    %1568 = vmatprep.subr.mxu0 0.0
    %1569 = vmatpush1.msra.mxu0 0.0
    %1570 = vmatprep.subr.mxu0 %v199
    %1571 = vmatpush1.msra.mxu0 %v198
    %1572 = vmatprep.subr.mxu0 0.0
    %1573 = vmatpush2.msra.mxu0 0.0
    %1574 = vmatprep.subr.mxu0 0.0
    %1575 = vmatpush2.msra.mxu0 0.0
    %1576 = vmatprep.subr.mxu0 0.0
    %1577 = vmatpush2.msra.mxu0 0.0
    %1578 = vmatprep.subr.mxu0 0.0
    %1579 = vmatpush2.msra.mxu0 0.0
    %1580 = vmatprep.subr.mxu0 0.0
    %1581 = vmatpush2.msra.mxu0 0.0
    %1582 = vmatprep.subr.mxu0 0.0
    %1583 = vmatpush2.msra.mxu0 0.0
    %1584 = vmatprep.subr.mxu0 0.0
    %1585 = vmatpush2.msra.mxu0 0.0
    %1586 = vmatprep.subr.mxu0 0.0
    %1587 = vmatpush2.msra.mxu0 0.0
    %1588 = vmatprep.subr.mxu0 0.0
    %1589 = vmatpush2.msra.mxu0 0.0
    %1590 = vmatprep.subr.mxu0 0.0
    %1591 = vmatpush2.msra.mxu0 0.0
    %1592 = vmatprep.subr.mxu0 0.0
    %1593 = vmatpush2.msra.mxu0 0.0
    %1594 = vmatprep.subr.mxu0 0.0
    %1595 = vmatpush2.msra.mxu0 0.0
    %1596 = vmatprep.subr.mxu0 0.0
    %1597 = vmatpush2.msra.mxu0 0.0
    %1598 = vmatprep.subr.mxu0 0.0
    %1599 = vmatpush2.msra.mxu0 0.0
    %1600 = vmatprep.subr.mxu0 0.0
    %1601 = vmatpush2.msra.mxu0 0.0
    %1602 = vmatprep.subr.mxu0 0.0
    %1603 = vmatpush2.msra.mxu0 0.0
    %1604 = vmatprep.mubr.f32.mxu0 0.0
    %1605 = vmatmul.mubr.f32.gmra.mxu0 %v260
    %v1606 = vpop.f32.mrf.mxu0
    %v1607 = vadd.f32 0.0, %v1606
    %v1608 = vpop.f32.mrf.mxu0
    %v1609 = vadd.f32 0.0, %v1608
    %1610 = vdwg.mxu0
    %1611 = vmatprep.subr.mxu0 0.0
    %1612 = vmatpush1.msra.mxu0 0.0
    %1613 = vmatprep.subr.mxu0 0.0
    %1614 = vmatpush1.msra.mxu0 0.0
    %1615 = vmatprep.subr.mxu0 0.0
    %1616 = vmatpush1.msra.mxu0 0.0
    %1617 = vmatprep.subr.mxu0 0.0
    %1618 = vmatpush1.msra.mxu0 0.0
    %1619 = vmatprep.subr.mxu0 0.0
    %1620 = vmatpush1.msra.mxu0 0.0
    %1621 = vmatprep.subr.mxu0 0.0
    %1622 = vmatpush1.msra.mxu0 0.0
    %1623 = vmatprep.subr.mxu0 0.0
    %1624 = vmatpush1.msra.mxu0 0.0
    %1625 = vmatprep.subr.mxu0 0.0
    %1626 = vmatpush1.msra.mxu0 0.0
    %1627 = vmatprep.subr.mxu0 0.0
    %1628 = vmatpush1.msra.mxu0 0.0
    %1629 = vmatprep.subr.mxu0 0.0
    %1630 = vmatpush1.msra.mxu0 0.0
    %1631 = vmatprep.subr.mxu0 0.0
    %1632 = vmatpush1.msra.mxu0 0.0
    %1633 = vmatprep.subr.mxu0 0.0
    %1634 = vmatpush1.msra.mxu0 0.0
    %1635 = vmatprep.subr.mxu0 0.0
    %1636 = vmatpush1.msra.mxu0 0.0
    %1637 = vmatprep.subr.mxu0 0.0
    %1638 = vmatpush1.msra.mxu0 0.0
    %1639 = vmatprep.subr.mxu0 0.0
    %1640 = vmatpush1.msra.mxu0 0.0
    %1641 = vmatprep.subr.mxu0 %v201
    %1642 = vmatpush1.msra.mxu0 %v200
    %1643 = vmatprep.subr.mxu0 0.0
    %1644 = vmatpush2.msra.mxu0 0.0
    %1645 = vmatprep.subr.mxu0 0.0
    %1646 = vmatpush2.msra.mxu0 0.0
    %1647 = vmatprep.subr.mxu0 0.0
    %1648 = vmatpush2.msra.mxu0 0.0
    %1649 = vmatprep.subr.mxu0 0.0
    %1650 = vmatpush2.msra.mxu0 0.0
    %1651 = vmatprep.subr.mxu0 0.0
    %1652 = vmatpush2.msra.mxu0 0.0
    %1653 = vmatprep.subr.mxu0 0.0
    %1654 = vmatpush2.msra.mxu0 0.0
    %1655 = vmatprep.subr.mxu0 0.0
    %1656 = vmatpush2.msra.mxu0 0.0
    %1657 = vmatprep.subr.mxu0 0.0
    %1658 = vmatpush2.msra.mxu0 0.0
    %1659 = vmatprep.subr.mxu0 0.0
    %1660 = vmatpush2.msra.mxu0 0.0
    %1661 = vmatprep.subr.mxu0 0.0
    %1662 = vmatpush2.msra.mxu0 0.0
    %1663 = vmatprep.subr.mxu0 0.0
    %1664 = vmatpush2.msra.mxu0 0.0
    %1665 = vmatprep.subr.mxu0 0.0
    %1666 = vmatpush2.msra.mxu0 0.0
    %1667 = vmatprep.subr.mxu0 0.0
    %1668 = vmatpush2.msra.mxu0 0.0
    %1669 = vmatprep.subr.mxu0 0.0
    %1670 = vmatpush2.msra.mxu0 0.0
    %1671 = vmatprep.subr.mxu0 0.0
    %1672 = vmatpush2.msra.mxu0 0.0
    %1673 = vmatprep.subr.mxu0 0.0
    %1674 = vmatpush2.msra.mxu0 0.0
    %1675 = vmatprep.mubr.f32.mxu0 0.0
    %1676 = vmatmul.mubr.f32.gmra.mxu0 %v260
    %v1677 = vpop.f32.mrf.mxu0
    %v1678 = vadd.f32 0.0, %v1677
    %v1679 = vpop.f32.mrf.mxu0
    %v1680 = vadd.f32 0.0, %v1679
    %1681 = vdwg.mxu0
    %1682 = vmatprep.subr.mxu0 0.0
    %1683 = vmatpush1.msra.mxu0 0.0
    %1684 = vmatprep.subr.mxu0 0.0
    %1685 = vmatpush1.msra.mxu0 0.0
    %1686 = vmatprep.subr.mxu0 0.0
    %1687 = vmatpush1.msra.mxu0 0.0
    %1688 = vmatprep.subr.mxu0 0.0
    %1689 = vmatpush1.msra.mxu0 0.0
    %1690 = vmatprep.subr.mxu0 0.0
    %1691 = vmatpush1.msra.mxu0 0.0
    %1692 = vmatprep.subr.mxu0 0.0
    %1693 = vmatpush1.msra.mxu0 0.0
    %1694 = vmatprep.subr.mxu0 0.0
    %1695 = vmatpush1.msra.mxu0 0.0
    %1696 = vmatprep.subr.mxu0 0.0
    %1697 = vmatpush1.msra.mxu0 0.0
    %1698 = vmatprep.subr.mxu0 0.0
    %1699 = vmatpush1.msra.mxu0 0.0
    %1700 = vmatprep.subr.mxu0 0.0
    %1701 = vmatpush1.msra.mxu0 0.0
    %1702 = vmatprep.subr.mxu0 0.0
    %1703 = vmatpush1.msra.mxu0 0.0
    %1704 = vmatprep.subr.mxu0 0.0
    %1705 = vmatpush1.msra.mxu0 0.0
    %1706 = vmatprep.subr.mxu0 0.0
    %1707 = vmatpush1.msra.mxu0 0.0
    %1708 = vmatprep.subr.mxu0 0.0
    %1709 = vmatpush1.msra.mxu0 0.0
    %1710 = vmatprep.subr.mxu0 0.0
    %1711 = vmatpush1.msra.mxu0 0.0
    %1712 = vmatprep.subr.mxu0 %v203
    %1713 = vmatpush1.msra.mxu0 %v202
    %1714 = vmatprep.subr.mxu0 0.0
    %1715 = vmatpush2.msra.mxu0 0.0
    %1716 = vmatprep.subr.mxu0 0.0
    %1717 = vmatpush2.msra.mxu0 0.0
    %1718 = vmatprep.subr.mxu0 0.0
    %1719 = vmatpush2.msra.mxu0 0.0
    %1720 = vmatprep.subr.mxu0 0.0
    %1721 = vmatpush2.msra.mxu0 0.0
    %1722 = vmatprep.subr.mxu0 0.0
    %1723 = vmatpush2.msra.mxu0 0.0
    %1724 = vmatprep.subr.mxu0 0.0
    %1725 = vmatpush2.msra.mxu0 0.0
    %1726 = vmatprep.subr.mxu0 0.0
    %1727 = vmatpush2.msra.mxu0 0.0
    %1728 = vmatprep.subr.mxu0 0.0
    %1729 = vmatpush2.msra.mxu0 0.0
    %1730 = vmatprep.subr.mxu0 0.0
    %1731 = vmatpush2.msra.mxu0 0.0
    %1732 = vmatprep.subr.mxu0 0.0
    %1733 = vmatpush2.msra.mxu0 0.0
    %1734 = vmatprep.subr.mxu0 0.0
    %1735 = vmatpush2.msra.mxu0 0.0
    %1736 = vmatprep.subr.mxu0 0.0
    %1737 = vmatpush2.msra.mxu0 0.0
    %1738 = vmatprep.subr.mxu0 0.0
    %1739 = vmatpush2.msra.mxu0 0.0
    %1740 = vmatprep.subr.mxu0 0.0
    %1741 = vmatpush2.msra.mxu0 0.0
    %1742 = vmatprep.subr.mxu0 0.0
    %1743 = vmatpush2.msra.mxu0 0.0
    %1744 = vmatprep.subr.mxu0 0.0
    %1745 = vmatpush2.msra.mxu0 0.0
    %1746 = vmatprep.mubr.f32.mxu0 0.0
    %1747 = vmatmul.mubr.f32.gmra.mxu0 %v260
    %v1748 = vpop.f32.mrf.mxu0
    %v1749 = vadd.f32 0.0, %v1748
    %v1750 = vpop.f32.mrf.mxu0
    %v1751 = vadd.f32 0.0, %v1750
    %1752 = vdwg.mxu0
    %1753 = vmatprep.subr.mxu0 0.0
    %1754 = vmatpush1.msra.mxu0 0.0
    %1755 = vmatprep.subr.mxu0 0.0
    %1756 = vmatpush1.msra.mxu0 0.0
    %1757 = vmatprep.subr.mxu0 0.0
    %1758 = vmatpush1.msra.mxu0 0.0
    %1759 = vmatprep.subr.mxu0 0.0
    %1760 = vmatpush1.msra.mxu0 0.0
    %1761 = vmatprep.subr.mxu0 0.0
    %1762 = vmatpush1.msra.mxu0 0.0
    %1763 = vmatprep.subr.mxu0 0.0
    %1764 = vmatpush1.msra.mxu0 0.0
    %1765 = vmatprep.subr.mxu0 0.0
    %1766 = vmatpush1.msra.mxu0 0.0
    %1767 = vmatprep.subr.mxu0 0.0
    %1768 = vmatpush1.msra.mxu0 0.0
    %1769 = vmatprep.subr.mxu0 0.0
    %1770 = vmatpush1.msra.mxu0 0.0
    %1771 = vmatprep.subr.mxu0 0.0
    %1772 = vmatpush1.msra.mxu0 0.0
    %1773 = vmatprep.subr.mxu0 0.0
    %1774 = vmatpush1.msra.mxu0 0.0
    %1775 = vmatprep.subr.mxu0 0.0
    %1776 = vmatpush1.msra.mxu0 0.0
    %1777 = vmatprep.subr.mxu0 0.0
    %1778 = vmatpush1.msra.mxu0 0.0
    %1779 = vmatprep.subr.mxu0 0.0
    %1780 = vmatpush1.msra.mxu0 0.0
    %1781 = vmatprep.subr.mxu0 0.0
    %1782 = vmatpush1.msra.mxu0 0.0
    %1783 = vmatprep.subr.mxu0 %v205
    %1784 = vmatpush1.msra.mxu0 %v204
    %1785 = vmatprep.subr.mxu0 0.0
    %1786 = vmatpush2.msra.mxu0 0.0
    %1787 = vmatprep.subr.mxu0 0.0
    %1788 = vmatpush2.msra.mxu0 0.0
    %1789 = vmatprep.subr.mxu0 0.0
    %1790 = vmatpush2.msra.mxu0 0.0
    %1791 = vmatprep.subr.mxu0 0.0
    %1792 = vmatpush2.msra.mxu0 0.0
    %1793 = vmatprep.subr.mxu0 0.0
    %1794 = vmatpush2.msra.mxu0 0.0
    %1795 = vmatprep.subr.mxu0 0.0
    %1796 = vmatpush2.msra.mxu0 0.0
    %1797 = vmatprep.subr.mxu0 0.0
    %1798 = vmatpush2.msra.mxu0 0.0
    %1799 = vmatprep.subr.mxu0 0.0
    %1800 = vmatpush2.msra.mxu0 0.0
    %1801 = vmatprep.subr.mxu0 0.0
    %1802 = vmatpush2.msra.mxu0 0.0
    %1803 = vmatprep.subr.mxu0 0.0
    %1804 = vmatpush2.msra.mxu0 0.0
    %1805 = vmatprep.subr.mxu0 0.0
    %1806 = vmatpush2.msra.mxu0 0.0
    %1807 = vmatprep.subr.mxu0 0.0
    %1808 = vmatpush2.msra.mxu0 0.0
    %1809 = vmatprep.subr.mxu0 0.0
    %1810 = vmatpush2.msra.mxu0 0.0
    %1811 = vmatprep.subr.mxu0 0.0
    %1812 = vmatpush2.msra.mxu0 0.0
    %1813 = vmatprep.subr.mxu0 0.0
    %1814 = vmatpush2.msra.mxu0 0.0
    %1815 = vmatprep.subr.mxu0 0.0
    %1816 = vmatpush2.msra.mxu0 0.0
    %1817 = vmatprep.mubr.f32.mxu0 0.0
    %1818 = vmatmul.mubr.f32.gmra.mxu0 %v260
    %v1819 = vpop.f32.mrf.mxu0
    %v1820 = vadd.f32 0.0, %v1819
    %v1821 = vpop.f32.mrf.mxu0
    %v1822 = vadd.f32 0.0, %v1821
    %1823 = vdwg.mxu0
    %1824 = vmatprep.subr.mxu0 0.0
    %1825 = vmatpush1.msra.mxu0 0.0
    %1826 = vmatprep.subr.mxu0 0.0
    %1827 = vmatpush1.msra.mxu0 0.0
    %1828 = vmatprep.subr.mxu0 0.0
    %1829 = vmatpush1.msra.mxu0 0.0
    %1830 = vmatprep.subr.mxu0 0.0
    %1831 = vmatpush1.msra.mxu0 0.0
    %1832 = vmatprep.subr.mxu0 0.0
    %1833 = vmatpush1.msra.mxu0 0.0
    %1834 = vmatprep.subr.mxu0 0.0
    %1835 = vmatpush1.msra.mxu0 0.0
    %1836 = vmatprep.subr.mxu0 0.0
    %1837 = vmatpush1.msra.mxu0 0.0
    %1838 = vmatprep.subr.mxu0 0.0
    %1839 = vmatpush1.msra.mxu0 0.0
    %1840 = vmatprep.subr.mxu0 0.0
    %1841 = vmatpush1.msra.mxu0 0.0
    %1842 = vmatprep.subr.mxu0 0.0
    %1843 = vmatpush1.msra.mxu0 0.0
    %1844 = vmatprep.subr.mxu0 0.0
    %1845 = vmatpush1.msra.mxu0 0.0
    %1846 = vmatprep.subr.mxu0 0.0
    %1847 = vmatpush1.msra.mxu0 0.0
    %1848 = vmatprep.subr.mxu0 0.0
    %1849 = vmatpush1.msra.mxu0 0.0
    %1850 = vmatprep.subr.mxu0 0.0
    %1851 = vmatpush1.msra.mxu0 0.0
    %1852 = vmatprep.subr.mxu0 0.0
    %1853 = vmatpush1.msra.mxu0 0.0
    %1854 = vmatprep.subr.mxu0 %v207
    %1855 = vmatpush1.msra.mxu0 %v206
    %1856 = vmatprep.subr.mxu0 0.0
    %1857 = vmatpush2.msra.mxu0 0.0
    %1858 = vmatprep.subr.mxu0 0.0
    %1859 = vmatpush2.msra.mxu0 0.0
    %1860 = vmatprep.subr.mxu0 0.0
    %1861 = vmatpush2.msra.mxu0 0.0
    %1862 = vmatprep.subr.mxu0 0.0
    %1863 = vmatpush2.msra.mxu0 0.0
    %1864 = vmatprep.subr.mxu0 0.0
    %1865 = vmatpush2.msra.mxu0 0.0
    %1866 = vmatprep.subr.mxu0 0.0
    %1867 = vmatpush2.msra.mxu0 0.0
    %1868 = vmatprep.subr.mxu0 0.0
    %1869 = vmatpush2.msra.mxu0 0.0
    %1870 = vmatprep.subr.mxu0 0.0
    %1871 = vmatpush2.msra.mxu0 0.0
    %1872 = vmatprep.subr.mxu0 0.0
    %1873 = vmatpush2.msra.mxu0 0.0
    %1874 = vmatprep.subr.mxu0 0.0
    %1875 = vmatpush2.msra.mxu0 0.0
    %1876 = vmatprep.subr.mxu0 0.0
    %1877 = vmatpush2.msra.mxu0 0.0
    %1878 = vmatprep.subr.mxu0 0.0
    %1879 = vmatpush2.msra.mxu0 0.0
    %1880 = vmatprep.subr.mxu0 0.0
    %1881 = vmatpush2.msra.mxu0 0.0
    %1882 = vmatprep.subr.mxu0 0.0
    %1883 = vmatpush2.msra.mxu0 0.0
    %1884 = vmatprep.subr.mxu0 0.0
    %1885 = vmatpush2.msra.mxu0 0.0
    %1886 = vmatprep.subr.mxu0 0.0
    %1887 = vmatpush2.msra.mxu0 0.0
    %1888 = vmatprep.mubr.f32.mxu0 0.0
    %1889 = vmatmul.mubr.f32.gmra.mxu0 %v260
    %v1890 = vpop.f32.mrf.mxu0
    %v1891 = vadd.f32 0.0, %v1890
    %v1892 = vpop.f32.mrf.mxu0
    %v1893 = vadd.f32 0.0, %v1892
    %1894 = vdwg.mxu0
    %1895 = vmatprep.subr.mxu0 0.0
    %1896 = vmatpush1.msra.mxu0 0.0
    %1897 = vmatprep.subr.mxu0 0.0
    %1898 = vmatpush1.msra.mxu0 0.0
    %1899 = vmatprep.subr.mxu0 0.0
    %1900 = vmatpush1.msra.mxu0 0.0
    %1901 = vmatprep.subr.mxu0 0.0
    %1902 = vmatpush1.msra.mxu0 0.0
    %1903 = vmatprep.subr.mxu0 0.0
    %1904 = vmatpush1.msra.mxu0 0.0
    %1905 = vmatprep.subr.mxu0 0.0
    %1906 = vmatpush1.msra.mxu0 0.0
    %1907 = vmatprep.subr.mxu0 0.0
    %1908 = vmatpush1.msra.mxu0 0.0
    %1909 = vmatprep.subr.mxu0 0.0
    %1910 = vmatpush1.msra.mxu0 0.0
    %1911 = vmatprep.subr.mxu0 0.0
    %1912 = vmatpush1.msra.mxu0 0.0
    %1913 = vmatprep.subr.mxu0 0.0
    %1914 = vmatpush1.msra.mxu0 0.0
    %1915 = vmatprep.subr.mxu0 0.0
    %1916 = vmatpush1.msra.mxu0 0.0
    %1917 = vmatprep.subr.mxu0 0.0
    %1918 = vmatpush1.msra.mxu0 0.0
    %1919 = vmatprep.subr.mxu0 0.0
    %1920 = vmatpush1.msra.mxu0 0.0
    %1921 = vmatprep.subr.mxu0 0.0
    %1922 = vmatpush1.msra.mxu0 0.0
    %1923 = vmatprep.subr.mxu0 0.0
    %1924 = vmatpush1.msra.mxu0 0.0
    %1925 = vmatprep.subr.mxu0 %v209
    %1926 = vmatpush1.msra.mxu0 %v208
    %1927 = vmatprep.subr.mxu0 0.0
    %1928 = vmatpush2.msra.mxu0 0.0
    %1929 = vmatprep.subr.mxu0 0.0
    %1930 = vmatpush2.msra.mxu0 0.0
    %1931 = vmatprep.subr.mxu0 0.0
    %1932 = vmatpush2.msra.mxu0 0.0
    %1933 = vmatprep.subr.mxu0 0.0
    %1934 = vmatpush2.msra.mxu0 0.0
    %1935 = vmatprep.subr.mxu0 0.0
    %1936 = vmatpush2.msra.mxu0 0.0
    %1937 = vmatprep.subr.mxu0 0.0
    %1938 = vmatpush2.msra.mxu0 0.0
    %1939 = vmatprep.subr.mxu0 0.0
    %1940 = vmatpush2.msra.mxu0 0.0
    %1941 = vmatprep.subr.mxu0 0.0
    %1942 = vmatpush2.msra.mxu0 0.0
    %1943 = vmatprep.subr.mxu0 0.0
    %1944 = vmatpush2.msra.mxu0 0.0
    %1945 = vmatprep.subr.mxu0 0.0
    %1946 = vmatpush2.msra.mxu0 0.0
    %1947 = vmatprep.subr.mxu0 0.0
    %1948 = vmatpush2.msra.mxu0 0.0
    %1949 = vmatprep.subr.mxu0 0.0
    %1950 = vmatpush2.msra.mxu0 0.0
    %1951 = vmatprep.subr.mxu0 0.0
    %1952 = vmatpush2.msra.mxu0 0.0
    %1953 = vmatprep.subr.mxu0 0.0
    %1954 = vmatpush2.msra.mxu0 0.0
    %1955 = vmatprep.subr.mxu0 0.0
    %1956 = vmatpush2.msra.mxu0 0.0
    %1957 = vmatprep.subr.mxu0 0.0
    %1958 = vmatpush2.msra.mxu0 0.0
    %1959 = vmatprep.mubr.f32.mxu0 0.0
    %1960 = vmatmul.mubr.f32.gmra.mxu0 %v260
    %v1961 = vpop.f32.mrf.mxu0
    %v1962 = vadd.f32 0.0, %v1961
    %v1963 = vpop.f32.mrf.mxu0
    %v1964 = vadd.f32 0.0, %v1963
    %1965 = vdwg.mxu0
    %1966 = vmatprep.subr.mxu0 0.0
    %1967 = vmatpush1.msra.mxu0 0.0
    %1968 = vmatprep.subr.mxu0 0.0
    %1969 = vmatpush1.msra.mxu0 0.0
    %1970 = vmatprep.subr.mxu0 0.0
    %1971 = vmatpush1.msra.mxu0 0.0
    %1972 = vmatprep.subr.mxu0 0.0
    %1973 = vmatpush1.msra.mxu0 0.0
    %1974 = vmatprep.subr.mxu0 0.0
    %1975 = vmatpush1.msra.mxu0 0.0
    %1976 = vmatprep.subr.mxu0 0.0
    %1977 = vmatpush1.msra.mxu0 0.0
    %1978 = vmatprep.subr.mxu0 0.0
    %1979 = vmatpush1.msra.mxu0 0.0
    %1980 = vmatprep.subr.mxu0 0.0
    %1981 = vmatpush1.msra.mxu0 0.0
    %1982 = vmatprep.subr.mxu0 0.0
    %1983 = vmatpush1.msra.mxu0 0.0
    %1984 = vmatprep.subr.mxu0 0.0
    %1985 = vmatpush1.msra.mxu0 0.0
    %1986 = vmatprep.subr.mxu0 0.0
    %1987 = vmatpush1.msra.mxu0 0.0
    %1988 = vmatprep.subr.mxu0 0.0
    %1989 = vmatpush1.msra.mxu0 0.0
    %1990 = vmatprep.subr.mxu0 0.0
    %1991 = vmatpush1.msra.mxu0 0.0
    %1992 = vmatprep.subr.mxu0 0.0
    %1993 = vmatpush1.msra.mxu0 0.0
    %1994 = vmatprep.subr.mxu0 0.0
    %1995 = vmatpush1.msra.mxu0 0.0
    %1996 = vmatprep.subr.mxu0 %v211
    %1997 = vmatpush1.msra.mxu0 %v210
    %1998 = vmatprep.subr.mxu0 0.0
    %1999 = vmatpush2.msra.mxu0 0.0
    %2000 = vmatprep.subr.mxu0 0.0
    %2001 = vmatpush2.msra.mxu0 0.0
    %2002 = vmatprep.subr.mxu0 0.0
    %2003 = vmatpush2.msra.mxu0 0.0
    %2004 = vmatprep.subr.mxu0 0.0
    %2005 = vmatpush2.msra.mxu0 0.0
    %2006 = vmatprep.subr.mxu0 0.0
    %2007 = vmatpush2.msra.mxu0 0.0
    %2008 = vmatprep.subr.mxu0 0.0
    %2009 = vmatpush2.msra.mxu0 0.0
    %2010 = vmatprep.subr.mxu0 0.0
    %2011 = vmatpush2.msra.mxu0 0.0
    %2012 = vmatprep.subr.mxu0 0.0
    %2013 = vmatpush2.msra.mxu0 0.0
    %2014 = vmatprep.subr.mxu0 0.0
    %2015 = vmatpush2.msra.mxu0 0.0
    %2016 = vmatprep.subr.mxu0 0.0
    %2017 = vmatpush2.msra.mxu0 0.0
    %2018 = vmatprep.subr.mxu0 0.0
    %2019 = vmatpush2.msra.mxu0 0.0
    %2020 = vmatprep.subr.mxu0 0.0
    %2021 = vmatpush2.msra.mxu0 0.0
    %2022 = vmatprep.subr.mxu0 0.0
    %2023 = vmatpush2.msra.mxu0 0.0
    %2024 = vmatprep.subr.mxu0 0.0
    %2025 = vmatpush2.msra.mxu0 0.0
    %2026 = vmatprep.subr.mxu0 0.0
    %2027 = vmatpush2.msra.mxu0 0.0
    %2028 = vmatprep.subr.mxu0 0.0
    %2029 = vmatpush2.msra.mxu0 0.0
    %2030 = vmatprep.mubr.f32.mxu0 0.0
    %2031 = vmatmul.mubr.f32.gmra.mxu0 %v260
    %v2032 = vpop.f32.mrf.mxu0
    %v2033 = vadd.f32 0.0, %v2032
    %v2034 = vpop.f32.mrf.mxu0
    %v2035 = vadd.f32 0.0, %v2034
    %2036 = vdwg.mxu0
    %2037 = vmatprep.subr.mxu0 0.0
    %2038 = vmatpush1.msra.mxu0 0.0
    %2039 = vmatprep.subr.mxu0 0.0
    %2040 = vmatpush1.msra.mxu0 0.0
    %2041 = vmatprep.subr.mxu0 0.0
    %2042 = vmatpush1.msra.mxu0 0.0
    %2043 = vmatprep.subr.mxu0 0.0
    %2044 = vmatpush1.msra.mxu0 0.0
    %2045 = vmatprep.subr.mxu0 0.0
    %2046 = vmatpush1.msra.mxu0 0.0
    %2047 = vmatprep.subr.mxu0 0.0
    %2048 = vmatpush1.msra.mxu0 0.0
    %2049 = vmatprep.subr.mxu0 0.0
    %2050 = vmatpush1.msra.mxu0 0.0
    %2051 = vmatprep.subr.mxu0 0.0
    %2052 = vmatpush1.msra.mxu0 0.0
    %2053 = vmatprep.subr.mxu0 0.0
    %2054 = vmatpush1.msra.mxu0 0.0
    %2055 = vmatprep.subr.mxu0 0.0
    %2056 = vmatpush1.msra.mxu0 0.0
    %2057 = vmatprep.subr.mxu0 0.0
    %2058 = vmatpush1.msra.mxu0 0.0
    %2059 = vmatprep.subr.mxu0 0.0
    %2060 = vmatpush1.msra.mxu0 0.0
    %2061 = vmatprep.subr.mxu0 0.0
    %2062 = vmatpush1.msra.mxu0 0.0
    %2063 = vmatprep.subr.mxu0 0.0
    %2064 = vmatpush1.msra.mxu0 0.0
    %2065 = vmatprep.subr.mxu0 0.0
    %2066 = vmatpush1.msra.mxu0 0.0
    %2067 = vmatprep.subr.mxu0 %v213
    %2068 = vmatpush1.msra.mxu0 %v212
    %2069 = vmatprep.subr.mxu0 0.0
    %2070 = vmatpush2.msra.mxu0 0.0
    %2071 = vmatprep.subr.mxu0 0.0
    %2072 = vmatpush2.msra.mxu0 0.0
    %2073 = vmatprep.subr.mxu0 0.0
    %2074 = vmatpush2.msra.mxu0 0.0
    %2075 = vmatprep.subr.mxu0 0.0
    %2076 = vmatpush2.msra.mxu0 0.0
    %2077 = vmatprep.subr.mxu0 0.0
    %2078 = vmatpush2.msra.mxu0 0.0
    %2079 = vmatprep.subr.mxu0 0.0
    %2080 = vmatpush2.msra.mxu0 0.0
    %2081 = vmatprep.subr.mxu0 0.0
    %2082 = vmatpush2.msra.mxu0 0.0
    %2083 = vmatprep.subr.mxu0 0.0
    %2084 = vmatpush2.msra.mxu0 0.0
    %2085 = vmatprep.subr.mxu0 0.0
    %2086 = vmatpush2.msra.mxu0 0.0
    %2087 = vmatprep.subr.mxu0 0.0
    %2088 = vmatpush2.msra.mxu0 0.0
    %2089 = vmatprep.subr.mxu0 0.0
    %2090 = vmatpush2.msra.mxu0 0.0
    %2091 = vmatprep.subr.mxu0 0.0
    %2092 = vmatpush2.msra.mxu0 0.0
    %2093 = vmatprep.subr.mxu0 0.0
    %2094 = vmatpush2.msra.mxu0 0.0
    %2095 = vmatprep.subr.mxu0 0.0
    %2096 = vmatpush2.msra.mxu0 0.0
    %2097 = vmatprep.subr.mxu0 0.0
    %2098 = vmatpush2.msra.mxu0 0.0
    %2099 = vmatprep.subr.mxu0 0.0
    %2100 = vmatpush2.msra.mxu0 0.0
    %2101 = vmatprep.mubr.f32.mxu0 0.0
    %2102 = vmatmul.mubr.f32.gmra.mxu0 %v260
    %v2103 = vpop.f32.mrf.mxu0
    %v2104 = vadd.f32 0.0, %v2103
    %v2105 = vpop.f32.mrf.mxu0
    %v2106 = vadd.f32 0.0, %v2105
    %2107 = vdwg.mxu0
    %2108 = vmatprep.subr.mxu0 0.0
    %2109 = vmatpush1.msra.mxu0 0.0
    %2110 = vmatprep.subr.mxu0 0.0
    %2111 = vmatpush1.msra.mxu0 0.0
    %2112 = vmatprep.subr.mxu0 0.0
    %2113 = vmatpush1.msra.mxu0 0.0
    %2114 = vmatprep.subr.mxu0 0.0
    %2115 = vmatpush1.msra.mxu0 0.0
    %2116 = vmatprep.subr.mxu0 0.0
    %2117 = vmatpush1.msra.mxu0 0.0
    %2118 = vmatprep.subr.mxu0 0.0
    %2119 = vmatpush1.msra.mxu0 0.0
    %2120 = vmatprep.subr.mxu0 0.0
    %2121 = vmatpush1.msra.mxu0 0.0
    %2122 = vmatprep.subr.mxu0 0.0
    %2123 = vmatpush1.msra.mxu0 0.0
    %2124 = vmatprep.subr.mxu0 0.0
    %2125 = vmatpush1.msra.mxu0 0.0
    %2126 = vmatprep.subr.mxu0 0.0
    %2127 = vmatpush1.msra.mxu0 0.0
    %2128 = vmatprep.subr.mxu0 0.0
    %2129 = vmatpush1.msra.mxu0 0.0
    %2130 = vmatprep.subr.mxu0 0.0
    %2131 = vmatpush1.msra.mxu0 0.0
    %2132 = vmatprep.subr.mxu0 0.0
    %2133 = vmatpush1.msra.mxu0 0.0
    %2134 = vmatprep.subr.mxu0 0.0
    %2135 = vmatpush1.msra.mxu0 0.0
    %2136 = vmatprep.subr.mxu0 0.0
    %2137 = vmatpush1.msra.mxu0 0.0
    %2138 = vmatprep.subr.mxu0 %v215
    %2139 = vmatpush1.msra.mxu0 %v214
    %2140 = vmatprep.subr.mxu0 0.0
    %2141 = vmatpush2.msra.mxu0 0.0
    %2142 = vmatprep.subr.mxu0 0.0
    %2143 = vmatpush2.msra.mxu0 0.0
    %2144 = vmatprep.subr.mxu0 0.0
    %2145 = vmatpush2.msra.mxu0 0.0
    %2146 = vmatprep.subr.mxu0 0.0
    %2147 = vmatpush2.msra.mxu0 0.0
    %2148 = vmatprep.subr.mxu0 0.0
    %2149 = vmatpush2.msra.mxu0 0.0
    %2150 = vmatprep.subr.mxu0 0.0
    %2151 = vmatpush2.msra.mxu0 0.0
    %2152 = vmatprep.subr.mxu0 0.0
    %2153 = vmatpush2.msra.mxu0 0.0
    %2154 = vmatprep.subr.mxu0 0.0
    %2155 = vmatpush2.msra.mxu0 0.0
    %2156 = vmatprep.subr.mxu0 0.0
    %2157 = vmatpush2.msra.mxu0 0.0
    %2158 = vmatprep.subr.mxu0 0.0
    %2159 = vmatpush2.msra.mxu0 0.0
    %2160 = vmatprep.subr.mxu0 0.0
    %2161 = vmatpush2.msra.mxu0 0.0
    %2162 = vmatprep.subr.mxu0 0.0
    %2163 = vmatpush2.msra.mxu0 0.0
    %2164 = vmatprep.subr.mxu0 0.0
    %2165 = vmatpush2.msra.mxu0 0.0
    %2166 = vmatprep.subr.mxu0 0.0
    %2167 = vmatpush2.msra.mxu0 0.0
    %2168 = vmatprep.subr.mxu0 0.0
    %2169 = vmatpush2.msra.mxu0 0.0
    %2170 = vmatprep.subr.mxu0 0.0
    %2171 = vmatpush2.msra.mxu0 0.0
    %2172 = vmatprep.mubr.f32.mxu0 0.0
    %2173 = vmatmul.mubr.f32.gmra.mxu0 %v260
    %v2174 = vpop.f32.mrf.mxu0
    %v2175 = vadd.f32 0.0, %v2174
    %v2176 = vpop.f32.mrf.mxu0
    %v2177 = vadd.f32 0.0, %v2176
    %2178 = vdwg.mxu0
    %2179 = vmatprep.subr.mxu0 0.0
    %2180 = vmatpush1.msra.mxu0 0.0
    %2181 = vmatprep.subr.mxu0 0.0
    %2182 = vmatpush1.msra.mxu0 0.0
    %2183 = vmatprep.subr.mxu0 0.0
    %2184 = vmatpush1.msra.mxu0 0.0
    %2185 = vmatprep.subr.mxu0 0.0
    %2186 = vmatpush1.msra.mxu0 0.0
    %2187 = vmatprep.subr.mxu0 0.0
    %2188 = vmatpush1.msra.mxu0 0.0
    %2189 = vmatprep.subr.mxu0 0.0
    %2190 = vmatpush1.msra.mxu0 0.0
    %2191 = vmatprep.subr.mxu0 0.0
    %2192 = vmatpush1.msra.mxu0 0.0
    %2193 = vmatprep.subr.mxu0 0.0
    %2194 = vmatpush1.msra.mxu0 0.0
    %2195 = vmatprep.subr.mxu0 0.0
    %2196 = vmatpush1.msra.mxu0 0.0
    %2197 = vmatprep.subr.mxu0 0.0
    %2198 = vmatpush1.msra.mxu0 0.0
    %2199 = vmatprep.subr.mxu0 0.0
    %2200 = vmatpush1.msra.mxu0 0.0
    %2201 = vmatprep.subr.mxu0 0.0
    %2202 = vmatpush1.msra.mxu0 0.0
    %2203 = vmatprep.subr.mxu0 0.0
    %2204 = vmatpush1.msra.mxu0 0.0
    %2205 = vmatprep.subr.mxu0 0.0
    %2206 = vmatpush1.msra.mxu0 0.0
    %2207 = vmatprep.subr.mxu0 0.0
    %2208 = vmatpush1.msra.mxu0 0.0
    %2209 = vmatprep.subr.mxu0 %v217
    %2210 = vmatpush1.msra.mxu0 %v216
    %2211 = vmatprep.subr.mxu0 0.0
    %2212 = vmatpush2.msra.mxu0 0.0
    %2213 = vmatprep.subr.mxu0 0.0
    %2214 = vmatpush2.msra.mxu0 0.0
    %2215 = vmatprep.subr.mxu0 0.0
    %2216 = vmatpush2.msra.mxu0 0.0
    %2217 = vmatprep.subr.mxu0 0.0
    %2218 = vmatpush2.msra.mxu0 0.0
    %2219 = vmatprep.subr.mxu0 0.0
    %2220 = vmatpush2.msra.mxu0 0.0
    %2221 = vmatprep.subr.mxu0 0.0
    %2222 = vmatpush2.msra.mxu0 0.0
    %2223 = vmatprep.subr.mxu0 0.0
    %2224 = vmatpush2.msra.mxu0 0.0
    %2225 = vmatprep.subr.mxu0 0.0
    %2226 = vmatpush2.msra.mxu0 0.0
    %2227 = vmatprep.subr.mxu0 0.0
    %2228 = vmatpush2.msra.mxu0 0.0
    %2229 = vmatprep.subr.mxu0 0.0
    %2230 = vmatpush2.msra.mxu0 0.0
    %2231 = vmatprep.subr.mxu0 0.0
    %2232 = vmatpush2.msra.mxu0 0.0
    %2233 = vmatprep.subr.mxu0 0.0
    %2234 = vmatpush2.msra.mxu0 0.0
    %2235 = vmatprep.subr.mxu0 0.0
    %2236 = vmatpush2.msra.mxu0 0.0
    %2237 = vmatprep.subr.mxu0 0.0
    %2238 = vmatpush2.msra.mxu0 0.0
    %2239 = vmatprep.subr.mxu0 0.0
    %2240 = vmatpush2.msra.mxu0 0.0
    %2241 = vmatprep.subr.mxu0 0.0
    %2242 = vmatpush2.msra.mxu0 0.0
    %2243 = vmatprep.mubr.f32.mxu0 0.0
    %2244 = vmatmul.mubr.f32.gmra.mxu0 %v260
    %v2245 = vpop.f32.mrf.mxu0
    %v2246 = vadd.f32 0.0, %v2245
    %v2247 = vpop.f32.mrf.mxu0
    %v2248 = vadd.f32 0.0, %v2247
    %2249 = vdwg.mxu0
    %2250 = vmatprep.subr.mxu0 0.0
    %2251 = vmatpush1.msra.mxu0 0.0
    %2252 = vmatprep.subr.mxu0 0.0
    %2253 = vmatpush1.msra.mxu0 0.0
    %2254 = vmatprep.subr.mxu0 0.0
    %2255 = vmatpush1.msra.mxu0 0.0
    %2256 = vmatprep.subr.mxu0 0.0
    %2257 = vmatpush1.msra.mxu0 0.0
    %2258 = vmatprep.subr.mxu0 0.0
    %2259 = vmatpush1.msra.mxu0 0.0
    %2260 = vmatprep.subr.mxu0 0.0
    %2261 = vmatpush1.msra.mxu0 0.0
    %2262 = vmatprep.subr.mxu0 0.0
    %2263 = vmatpush1.msra.mxu0 0.0
    %2264 = vmatprep.subr.mxu0 0.0
    %2265 = vmatpush1.msra.mxu0 0.0
    %2266 = vmatprep.subr.mxu0 0.0
    %2267 = vmatpush1.msra.mxu0 0.0
    %2268 = vmatprep.subr.mxu0 0.0
    %2269 = vmatpush1.msra.mxu0 0.0
    %2270 = vmatprep.subr.mxu0 0.0
    %2271 = vmatpush1.msra.mxu0 0.0
    %2272 = vmatprep.subr.mxu0 0.0
    %2273 = vmatpush1.msra.mxu0 0.0
    %2274 = vmatprep.subr.mxu0 0.0
    %2275 = vmatpush1.msra.mxu0 0.0
    %2276 = vmatprep.subr.mxu0 0.0
    %2277 = vmatpush1.msra.mxu0 0.0
    %2278 = vmatprep.subr.mxu0 0.0
    %2279 = vmatpush1.msra.mxu0 0.0
    %2280 = vmatprep.subr.mxu0 %v219
    %2281 = vmatpush1.msra.mxu0 %v218
    %2282 = vmatprep.subr.mxu0 0.0
    %2283 = vmatpush2.msra.mxu0 0.0
    %2284 = vmatprep.subr.mxu0 0.0
    %2285 = vmatpush2.msra.mxu0 0.0
    %2286 = vmatprep.subr.mxu0 0.0
    %2287 = vmatpush2.msra.mxu0 0.0
    %2288 = vmatprep.subr.mxu0 0.0
    %2289 = vmatpush2.msra.mxu0 0.0
    %2290 = vmatprep.subr.mxu0 0.0
    %2291 = vmatpush2.msra.mxu0 0.0
    %2292 = vmatprep.subr.mxu0 0.0
    %2293 = vmatpush2.msra.mxu0 0.0
    %2294 = vmatprep.subr.mxu0 0.0
    %2295 = vmatpush2.msra.mxu0 0.0
    %2296 = vmatprep.subr.mxu0 0.0
    %2297 = vmatpush2.msra.mxu0 0.0
    %2298 = vmatprep.subr.mxu0 0.0
    %2299 = vmatpush2.msra.mxu0 0.0
    %2300 = vmatprep.subr.mxu0 0.0
    %2301 = vmatpush2.msra.mxu0 0.0
    %2302 = vmatprep.subr.mxu0 0.0
    %2303 = vmatpush2.msra.mxu0 0.0
    %2304 = vmatprep.subr.mxu0 0.0
    %2305 = vmatpush2.msra.mxu0 0.0
    %2306 = vmatprep.subr.mxu0 0.0
    %2307 = vmatpush2.msra.mxu0 0.0
    %2308 = vmatprep.subr.mxu0 0.0
    %2309 = vmatpush2.msra.mxu0 0.0
    %2310 = vmatprep.subr.mxu0 0.0
    %2311 = vmatpush2.msra.mxu0 0.0
    %2312 = vmatprep.subr.mxu0 0.0
    %2313 = vmatpush2.msra.mxu0 0.0
    %2314 = vmatprep.mubr.f32.mxu0 0.0
    %2315 = vmatmul.mubr.f32.gmra.mxu0 %v260
    %v2316 = vpop.f32.mrf.mxu0
    %v2317 = vadd.f32 0.0, %v2316
    %v2318 = vpop.f32.mrf.mxu0
    %v2319 = vadd.f32 0.0, %v2318
    %2320 = vdwg.mxu0
    %2321 = vmatprep.subr.mxu0 0.0
    %2322 = vmatpush1.msra.mxu0 0.0
    %2323 = vmatprep.subr.mxu0 0.0
    %2324 = vmatpush1.msra.mxu0 0.0
    %2325 = vmatprep.subr.mxu0 0.0
    %2326 = vmatpush1.msra.mxu0 0.0
    %2327 = vmatprep.subr.mxu0 0.0
    %2328 = vmatpush1.msra.mxu0 0.0
    %2329 = vmatprep.subr.mxu0 0.0
    %2330 = vmatpush1.msra.mxu0 0.0
    %2331 = vmatprep.subr.mxu0 0.0
    %2332 = vmatpush1.msra.mxu0 0.0
    %2333 = vmatprep.subr.mxu0 0.0
    %2334 = vmatpush1.msra.mxu0 0.0
    %2335 = vmatprep.subr.mxu0 0.0
    %2336 = vmatpush1.msra.mxu0 0.0
    %2337 = vmatprep.subr.mxu0 0.0
    %2338 = vmatpush1.msra.mxu0 0.0
    %2339 = vmatprep.subr.mxu0 0.0
    %2340 = vmatpush1.msra.mxu0 0.0
    %2341 = vmatprep.subr.mxu0 0.0
    %2342 = vmatpush1.msra.mxu0 0.0
    %2343 = vmatprep.subr.mxu0 0.0
    %2344 = vmatpush1.msra.mxu0 0.0
    %2345 = vmatprep.subr.mxu0 0.0
    %2346 = vmatpush1.msra.mxu0 0.0
    %2347 = vmatprep.subr.mxu0 0.0
    %2348 = vmatpush1.msra.mxu0 0.0
    %2349 = vmatprep.subr.mxu0 0.0
    %2350 = vmatpush1.msra.mxu0 0.0
    %2351 = vmatprep.subr.mxu0 %v221
    %2352 = vmatpush1.msra.mxu0 %v220
    %2353 = vmatprep.subr.mxu0 0.0
    %2354 = vmatpush2.msra.mxu0 0.0
    %2355 = vmatprep.subr.mxu0 0.0
    %2356 = vmatpush2.msra.mxu0 0.0
    %2357 = vmatprep.subr.mxu0 0.0
    %2358 = vmatpush2.msra.mxu0 0.0
    %2359 = vmatprep.subr.mxu0 0.0
    %2360 = vmatpush2.msra.mxu0 0.0
    %2361 = vmatprep.subr.mxu0 0.0
    %2362 = vmatpush2.msra.mxu0 0.0
    %2363 = vmatprep.subr.mxu0 0.0
    %2364 = vmatpush2.msra.mxu0 0.0
    %2365 = vmatprep.subr.mxu0 0.0
    %2366 = vmatpush2.msra.mxu0 0.0
    %2367 = vmatprep.subr.mxu0 0.0
    %2368 = vmatpush2.msra.mxu0 0.0
    %2369 = vmatprep.subr.mxu0 0.0
    %2370 = vmatpush2.msra.mxu0 0.0
    %2371 = vmatprep.subr.mxu0 0.0
    %2372 = vmatpush2.msra.mxu0 0.0
    %2373 = vmatprep.subr.mxu0 0.0
    %2374 = vmatpush2.msra.mxu0 0.0
    %2375 = vmatprep.subr.mxu0 0.0
    %2376 = vmatpush2.msra.mxu0 0.0
    %2377 = vmatprep.subr.mxu0 0.0
    %2378 = vmatpush2.msra.mxu0 0.0
    %2379 = vmatprep.subr.mxu0 0.0
    %2380 = vmatpush2.msra.mxu0 0.0
    %2381 = vmatprep.subr.mxu0 0.0
    %2382 = vmatpush2.msra.mxu0 0.0
    %2383 = vmatprep.subr.mxu0 0.0
    %2384 = vmatpush2.msra.mxu0 0.0
    %2385 = vmatprep.mubr.f32.mxu0 0.0
    %2386 = vmatmul.mubr.f32.gmra.mxu0 %v260
    %v2387 = vpop.f32.mrf.mxu0
    %v2388 = vadd.f32 0.0, %v2387
    %v2389 = vpop.f32.mrf.mxu0
    %v2390 = vadd.f32 0.0, %v2389
    %2391 = vdwg.mxu0
    %2392 = vmatprep.subr.mxu0 0.0
    %2393 = vmatpush1.msra.mxu0 0.0
    %2394 = vmatprep.subr.mxu0 0.0
    %2395 = vmatpush1.msra.mxu0 0.0
    %2396 = vmatprep.subr.mxu0 0.0
    %2397 = vmatpush1.msra.mxu0 0.0
    %2398 = vmatprep.subr.mxu0 0.0
    %2399 = vmatpush1.msra.mxu0 0.0
    %2400 = vmatprep.subr.mxu0 0.0
    %2401 = vmatpush1.msra.mxu0 0.0
    %2402 = vmatprep.subr.mxu0 0.0
    %2403 = vmatpush1.msra.mxu0 0.0
    %2404 = vmatprep.subr.mxu0 0.0
    %2405 = vmatpush1.msra.mxu0 0.0
    %2406 = vmatprep.subr.mxu0 0.0
    %2407 = vmatpush1.msra.mxu0 0.0
    %2408 = vmatprep.subr.mxu0 0.0
    %2409 = vmatpush1.msra.mxu0 0.0
    %2410 = vmatprep.subr.mxu0 0.0
    %2411 = vmatpush1.msra.mxu0 0.0
    %2412 = vmatprep.subr.mxu0 0.0
    %2413 = vmatpush1.msra.mxu0 0.0
    %2414 = vmatprep.subr.mxu0 0.0
    %2415 = vmatpush1.msra.mxu0 0.0
    %2416 = vmatprep.subr.mxu0 0.0
    %2417 = vmatpush1.msra.mxu0 0.0
    %2418 = vmatprep.subr.mxu0 0.0
    %2419 = vmatpush1.msra.mxu0 0.0
    %2420 = vmatprep.subr.mxu0 0.0
    %2421 = vmatpush1.msra.mxu0 0.0
    %2422 = vmatprep.subr.mxu0 %v223
    %2423 = vmatpush1.msra.mxu0 %v222
    %2424 = vmatprep.subr.mxu0 0.0
    %2425 = vmatpush2.msra.mxu0 0.0
    %2426 = vmatprep.subr.mxu0 0.0
    %2427 = vmatpush2.msra.mxu0 0.0
    %2428 = vmatprep.subr.mxu0 0.0
    %2429 = vmatpush2.msra.mxu0 0.0
    %2430 = vmatprep.subr.mxu0 0.0
    %2431 = vmatpush2.msra.mxu0 0.0
    %2432 = vmatprep.subr.mxu0 0.0
    %2433 = vmatpush2.msra.mxu0 0.0
    %2434 = vmatprep.subr.mxu0 0.0
    %2435 = vmatpush2.msra.mxu0 0.0
    %2436 = vmatprep.subr.mxu0 0.0
    %2437 = vmatpush2.msra.mxu0 0.0
    %2438 = vmatprep.subr.mxu0 0.0
    %2439 = vmatpush2.msra.mxu0 0.0
    %2440 = vmatprep.subr.mxu0 0.0
    %2441 = vmatpush2.msra.mxu0 0.0
    %2442 = vmatprep.subr.mxu0 0.0
    %2443 = vmatpush2.msra.mxu0 0.0
    %2444 = vmatprep.subr.mxu0 0.0
    %2445 = vmatpush2.msra.mxu0 0.0
    %2446 = vmatprep.subr.mxu0 0.0
    %2447 = vmatpush2.msra.mxu0 0.0
    %2448 = vmatprep.subr.mxu0 0.0
    %2449 = vmatpush2.msra.mxu0 0.0
    %2450 = vmatprep.subr.mxu0 0.0
    %2451 = vmatpush2.msra.mxu0 0.0
    %2452 = vmatprep.subr.mxu0 0.0
    %2453 = vmatpush2.msra.mxu0 0.0
    %2454 = vmatprep.subr.mxu0 0.0
    %2455 = vmatpush2.msra.mxu0 0.0
    %2456 = vmatprep.mubr.f32.mxu0 0.0
    %2457 = vmatmul.mubr.f32.gmra.mxu0 %v260
    %v2458 = vpop.f32.mrf.mxu0
    %v2459 = vadd.f32 0.0, %v2458
    %v2460 = vpop.f32.mrf.mxu0
    %v2461 = vadd.f32 0.0, %v2460
    %2462 = vdwg.mxu0
    %2463 = vmatprep.subr.mxu0 0.0
    %2464 = vmatpush1.msra.mxu0 0.0
    %2465 = vmatprep.subr.mxu0 0.0
    %2466 = vmatpush1.msra.mxu0 0.0
    %2467 = vmatprep.subr.mxu0 0.0
    %2468 = vmatpush1.msra.mxu0 0.0
    %2469 = vmatprep.subr.mxu0 0.0
    %2470 = vmatpush1.msra.mxu0 0.0
    %2471 = vmatprep.subr.mxu0 0.0
    %2472 = vmatpush1.msra.mxu0 0.0
    %2473 = vmatprep.subr.mxu0 0.0
    %2474 = vmatpush1.msra.mxu0 0.0
    %2475 = vmatprep.subr.mxu0 0.0
    %2476 = vmatpush1.msra.mxu0 0.0
    %2477 = vmatprep.subr.mxu0 0.0
    %2478 = vmatpush1.msra.mxu0 0.0
    %2479 = vmatprep.subr.mxu0 0.0
    %2480 = vmatpush1.msra.mxu0 0.0
    %2481 = vmatprep.subr.mxu0 0.0
    %2482 = vmatpush1.msra.mxu0 0.0
    %2483 = vmatprep.subr.mxu0 0.0
    %2484 = vmatpush1.msra.mxu0 0.0
    %2485 = vmatprep.subr.mxu0 0.0
    %2486 = vmatpush1.msra.mxu0 0.0
    %2487 = vmatprep.subr.mxu0 0.0
    %2488 = vmatpush1.msra.mxu0 0.0
    %2489 = vmatprep.subr.mxu0 0.0
    %2490 = vmatpush1.msra.mxu0 0.0
    %2491 = vmatprep.subr.mxu0 0.0
    %2492 = vmatpush1.msra.mxu0 0.0
    %2493 = vmatprep.subr.mxu0 %v225
    %2494 = vmatpush1.msra.mxu0 %v224
    %2495 = vmatprep.subr.mxu0 0.0
    %2496 = vmatpush2.msra.mxu0 0.0
    %2497 = vmatprep.subr.mxu0 0.0
    %2498 = vmatpush2.msra.mxu0 0.0
    %2499 = vmatprep.subr.mxu0 0.0
    %2500 = vmatpush2.msra.mxu0 0.0
    %2501 = vmatprep.subr.mxu0 0.0
    %2502 = vmatpush2.msra.mxu0 0.0
    %2503 = vmatprep.subr.mxu0 0.0
    %2504 = vmatpush2.msra.mxu0 0.0
    %2505 = vmatprep.subr.mxu0 0.0
    %2506 = vmatpush2.msra.mxu0 0.0
    %2507 = vmatprep.subr.mxu0 0.0
    %2508 = vmatpush2.msra.mxu0 0.0
    %2509 = vmatprep.subr.mxu0 0.0
    %2510 = vmatpush2.msra.mxu0 0.0
    %2511 = vmatprep.subr.mxu0 0.0
    %2512 = vmatpush2.msra.mxu0 0.0
    %2513 = vmatprep.subr.mxu0 0.0
    %2514 = vmatpush2.msra.mxu0 0.0
    %2515 = vmatprep.subr.mxu0 0.0
    %2516 = vmatpush2.msra.mxu0 0.0
    %2517 = vmatprep.subr.mxu0 0.0
    %2518 = vmatpush2.msra.mxu0 0.0
    %2519 = vmatprep.subr.mxu0 0.0
    %2520 = vmatpush2.msra.mxu0 0.0
    %2521 = vmatprep.subr.mxu0 0.0
    %2522 = vmatpush2.msra.mxu0 0.0
    %2523 = vmatprep.subr.mxu0 0.0
    %2524 = vmatpush2.msra.mxu0 0.0
    %2525 = vmatprep.subr.mxu0 0.0
    %2526 = vmatpush2.msra.mxu0 0.0
    %2527 = vmatprep.mubr.f32.mxu0 0.0
    %2528 = vmatmul.mubr.f32.gmra.mxu0 %v260
    %v2529 = vpop.f32.mrf.mxu0
    %v2530 = vadd.f32 0.0, %v2529
    %v2531 = vpop.f32.mrf.mxu0
    %v2532 = vadd.f32 0.0, %v2531
    %2533 = vdwg.mxu0
    %2534 = vmatprep.subr.mxu0 0.0
    %2535 = vmatpush1.msra.mxu0 0.0
    %2536 = vmatprep.subr.mxu0 0.0
    %2537 = vmatpush1.msra.mxu0 0.0
    %2538 = vmatprep.subr.mxu0 0.0
    %2539 = vmatpush1.msra.mxu0 0.0
    %2540 = vmatprep.subr.mxu0 0.0
    %2541 = vmatpush1.msra.mxu0 0.0
    %2542 = vmatprep.subr.mxu0 0.0
    %2543 = vmatpush1.msra.mxu0 0.0
    %2544 = vmatprep.subr.mxu0 0.0
    %2545 = vmatpush1.msra.mxu0 0.0
    %2546 = vmatprep.subr.mxu0 0.0
    %2547 = vmatpush1.msra.mxu0 0.0
    %2548 = vmatprep.subr.mxu0 0.0
    %2549 = vmatpush1.msra.mxu0 0.0
    %2550 = vmatprep.subr.mxu0 0.0
    %2551 = vmatpush1.msra.mxu0 0.0
    %2552 = vmatprep.subr.mxu0 0.0
    %2553 = vmatpush1.msra.mxu0 0.0
    %2554 = vmatprep.subr.mxu0 0.0
    %2555 = vmatpush1.msra.mxu0 0.0
    %2556 = vmatprep.subr.mxu0 0.0
    %2557 = vmatpush1.msra.mxu0 0.0
    %2558 = vmatprep.subr.mxu0 0.0
    %2559 = vmatpush1.msra.mxu0 0.0
    %2560 = vmatprep.subr.mxu0 0.0
    %2561 = vmatpush1.msra.mxu0 0.0
    %2562 = vmatprep.subr.mxu0 0.0
    %2563 = vmatpush1.msra.mxu0 0.0
    %2564 = vmatprep.subr.mxu0 %v227
    %2565 = vmatpush1.msra.mxu0 %v226
    %2566 = vmatprep.subr.mxu0 0.0
    %2567 = vmatpush2.msra.mxu0 0.0
    %2568 = vmatprep.subr.mxu0 0.0
    %2569 = vmatpush2.msra.mxu0 0.0
    %2570 = vmatprep.subr.mxu0 0.0
    %2571 = vmatpush2.msra.mxu0 0.0
    %2572 = vmatprep.subr.mxu0 0.0
    %2573 = vmatpush2.msra.mxu0 0.0
    %2574 = vmatprep.subr.mxu0 0.0
    %2575 = vmatpush2.msra.mxu0 0.0
    %2576 = vmatprep.subr.mxu0 0.0
    %2577 = vmatpush2.msra.mxu0 0.0
    %2578 = vmatprep.subr.mxu0 0.0
    %2579 = vmatpush2.msra.mxu0 0.0
    %2580 = vmatprep.subr.mxu0 0.0
    %2581 = vmatpush2.msra.mxu0 0.0
    %2582 = vmatprep.subr.mxu0 0.0
    %2583 = vmatpush2.msra.mxu0 0.0
    %2584 = vmatprep.subr.mxu0 0.0
    %2585 = vmatpush2.msra.mxu0 0.0
    %2586 = vmatprep.subr.mxu0 0.0
    %2587 = vmatpush2.msra.mxu0 0.0
    %2588 = vmatprep.subr.mxu0 0.0
    %2589 = vmatpush2.msra.mxu0 0.0
    %2590 = vmatprep.subr.mxu0 0.0
    %2591 = vmatpush2.msra.mxu0 0.0
    %2592 = vmatprep.subr.mxu0 0.0
    %2593 = vmatpush2.msra.mxu0 0.0
    %2594 = vmatprep.subr.mxu0 0.0
    %2595 = vmatpush2.msra.mxu0 0.0
    %2596 = vmatprep.subr.mxu0 0.0
    %2597 = vmatpush2.msra.mxu0 0.0
    %2598 = vmatprep.mubr.f32.mxu0 0.0
    %2599 = vmatmul.mubr.f32.gmra.mxu0 %v260
    %v2600 = vpop.f32.mrf.mxu0
    %v2601 = vadd.f32 0.0, %v2600
    %v2602 = vpop.f32.mrf.mxu0
    %v2603 = vadd.f32 0.0, %v2602
    %2604 = vdwg.mxu0
    %2605 = vmatprep.subr.mxu0 0.0
    %2606 = vmatpush1.msra.mxu0 0.0
    %2607 = vmatprep.subr.mxu0 0.0
    %2608 = vmatpush1.msra.mxu0 0.0
    %2609 = vmatprep.subr.mxu0 0.0
    %2610 = vmatpush1.msra.mxu0 0.0
    %2611 = vmatprep.subr.mxu0 0.0
    %2612 = vmatpush1.msra.mxu0 0.0
    %2613 = vmatprep.subr.mxu0 0.0
    %2614 = vmatpush1.msra.mxu0 0.0
    %2615 = vmatprep.subr.mxu0 0.0
    %2616 = vmatpush1.msra.mxu0 0.0
    %2617 = vmatprep.subr.mxu0 0.0
    %2618 = vmatpush1.msra.mxu0 0.0
    %2619 = vmatprep.subr.mxu0 0.0
    %2620 = vmatpush1.msra.mxu0 0.0
    %2621 = vmatprep.subr.mxu0 0.0
    %2622 = vmatpush1.msra.mxu0 0.0
    %2623 = vmatprep.subr.mxu0 0.0
    %2624 = vmatpush1.msra.mxu0 0.0
    %2625 = vmatprep.subr.mxu0 0.0
    %2626 = vmatpush1.msra.mxu0 0.0
    %2627 = vmatprep.subr.mxu0 0.0
    %2628 = vmatpush1.msra.mxu0 0.0
    %2629 = vmatprep.subr.mxu0 0.0
    %2630 = vmatpush1.msra.mxu0 0.0
    %2631 = vmatprep.subr.mxu0 0.0
    %2632 = vmatpush1.msra.mxu0 0.0
    %2633 = vmatprep.subr.mxu0 0.0
    %2634 = vmatpush1.msra.mxu0 0.0
    %2635 = vmatprep.subr.mxu0 %v229
    %2636 = vmatpush1.msra.mxu0 %v228
    %2637 = vmatprep.subr.mxu0 0.0
    %2638 = vmatpush2.msra.mxu0 0.0
    %2639 = vmatprep.subr.mxu0 0.0
    %2640 = vmatpush2.msra.mxu0 0.0
    %2641 = vmatprep.subr.mxu0 0.0
    %2642 = vmatpush2.msra.mxu0 0.0
    %2643 = vmatprep.subr.mxu0 0.0
    %2644 = vmatpush2.msra.mxu0 0.0
    %2645 = vmatprep.subr.mxu0 0.0
    %2646 = vmatpush2.msra.mxu0 0.0
    %2647 = vmatprep.subr.mxu0 0.0
    %2648 = vmatpush2.msra.mxu0 0.0
    %2649 = vmatprep.subr.mxu0 0.0
    %2650 = vmatpush2.msra.mxu0 0.0
    %2651 = vmatprep.subr.mxu0 0.0
    %2652 = vmatpush2.msra.mxu0 0.0
    %2653 = vmatprep.subr.mxu0 0.0
    %2654 = vmatpush2.msra.mxu0 0.0
    %2655 = vmatprep.subr.mxu0 0.0
    %2656 = vmatpush2.msra.mxu0 0.0
    %2657 = vmatprep.subr.mxu0 0.0
    %2658 = vmatpush2.msra.mxu0 0.0
    %2659 = vmatprep.subr.mxu0 0.0
    %2660 = vmatpush2.msra.mxu0 0.0
    %2661 = vmatprep.subr.mxu0 0.0
    %2662 = vmatpush2.msra.mxu0 0.0
    %2663 = vmatprep.subr.mxu0 0.0
    %2664 = vmatpush2.msra.mxu0 0.0
    %2665 = vmatprep.subr.mxu0 0.0
    %2666 = vmatpush2.msra.mxu0 0.0
    %2667 = vmatprep.subr.mxu0 0.0
    %2668 = vmatpush2.msra.mxu0 0.0
    %2669 = vmatprep.mubr.f32.mxu0 0.0
    %2670 = vmatmul.mubr.f32.gmra.mxu0 %v260
    %v2671 = vpop.f32.mrf.mxu0
    %v2672 = vadd.f32 0.0, %v2671
    %v2673 = vpop.f32.mrf.mxu0
    %v2674 = vadd.f32 0.0, %v2673
    %2675 = vdwg.mxu0
    %2676 = vmatprep.subr.mxu0 0.0
    %2677 = vmatpush1.msra.mxu0 0.0
    %2678 = vmatprep.subr.mxu0 0.0
    %2679 = vmatpush1.msra.mxu0 0.0
    %2680 = vmatprep.subr.mxu0 0.0
    %2681 = vmatpush1.msra.mxu0 0.0
    %2682 = vmatprep.subr.mxu0 0.0
    %2683 = vmatpush1.msra.mxu0 0.0
    %2684 = vmatprep.subr.mxu0 0.0
    %2685 = vmatpush1.msra.mxu0 0.0
    %2686 = vmatprep.subr.mxu0 0.0
    %2687 = vmatpush1.msra.mxu0 0.0
    %2688 = vmatprep.subr.mxu0 0.0
    %2689 = vmatpush1.msra.mxu0 0.0
    %2690 = vmatprep.subr.mxu0 0.0
    %2691 = vmatpush1.msra.mxu0 0.0
    %2692 = vmatprep.subr.mxu0 0.0
    %2693 = vmatpush1.msra.mxu0 0.0
    %2694 = vmatprep.subr.mxu0 0.0
    %2695 = vmatpush1.msra.mxu0 0.0
    %2696 = vmatprep.subr.mxu0 0.0
    %2697 = vmatpush1.msra.mxu0 0.0
    %2698 = vmatprep.subr.mxu0 0.0
    %2699 = vmatpush1.msra.mxu0 0.0
    %2700 = vmatprep.subr.mxu0 0.0
    %2701 = vmatpush1.msra.mxu0 0.0
    %2702 = vmatprep.subr.mxu0 0.0
    %2703 = vmatpush1.msra.mxu0 0.0
    %2704 = vmatprep.subr.mxu0 0.0
    %2705 = vmatpush1.msra.mxu0 0.0
    %2706 = vmatprep.subr.mxu0 %v231
    %2707 = vmatpush1.msra.mxu0 %v230
    %2708 = vmatprep.subr.mxu0 0.0
    %2709 = vmatpush2.msra.mxu0 0.0
    %2710 = vmatprep.subr.mxu0 0.0
    %2711 = vmatpush2.msra.mxu0 0.0
    %2712 = vmatprep.subr.mxu0 0.0
    %2713 = vmatpush2.msra.mxu0 0.0
    %2714 = vmatprep.subr.mxu0 0.0
    %2715 = vmatpush2.msra.mxu0 0.0
    %2716 = vmatprep.subr.mxu0 0.0
    %2717 = vmatpush2.msra.mxu0 0.0
    %2718 = vmatprep.subr.mxu0 0.0
    %2719 = vmatpush2.msra.mxu0 0.0
    %2720 = vmatprep.subr.mxu0 0.0
    %2721 = vmatpush2.msra.mxu0 0.0
    %2722 = vmatprep.subr.mxu0 0.0
    %2723 = vmatpush2.msra.mxu0 0.0
    %2724 = vmatprep.subr.mxu0 0.0
    %2725 = vmatpush2.msra.mxu0 0.0
    %2726 = vmatprep.subr.mxu0 0.0
    %2727 = vmatpush2.msra.mxu0 0.0
    %2728 = vmatprep.subr.mxu0 0.0
    %2729 = vmatpush2.msra.mxu0 0.0
    %2730 = vmatprep.subr.mxu0 0.0
    %2731 = vmatpush2.msra.mxu0 0.0
    %2732 = vmatprep.subr.mxu0 0.0
    %2733 = vmatpush2.msra.mxu0 0.0
    %2734 = vmatprep.subr.mxu0 0.0
    %2735 = vmatpush2.msra.mxu0 0.0
    %2736 = vmatprep.subr.mxu0 0.0
    %2737 = vmatpush2.msra.mxu0 0.0
    %2738 = vmatprep.subr.mxu0 0.0
    %2739 = vmatpush2.msra.mxu0 0.0
    %2740 = vmatprep.mubr.f32.mxu0 0.0
    %2741 = vmatmul.mubr.f32.gmra.mxu0 %v260
    %v2742 = vpop.f32.mrf.mxu0
    %v2743 = vadd.f32 0.0, %v2742
    %v2744 = vpop.f32.mrf.mxu0
    %v2745 = vadd.f32 0.0, %v2744
    %2746 = vdwg.mxu0
    %2747 = vmatprep.subr.mxu0 0.0
    %2748 = vmatpush1.msra.mxu0 0.0
    %2749 = vmatprep.subr.mxu0 0.0
    %2750 = vmatpush1.msra.mxu0 0.0
    %2751 = vmatprep.subr.mxu0 0.0
    %2752 = vmatpush1.msra.mxu0 0.0
    %2753 = vmatprep.subr.mxu0 0.0
    %2754 = vmatpush1.msra.mxu0 0.0
    %2755 = vmatprep.subr.mxu0 0.0
    %2756 = vmatpush1.msra.mxu0 0.0
    %2757 = vmatprep.subr.mxu0 0.0
    %2758 = vmatpush1.msra.mxu0 0.0
    %2759 = vmatprep.subr.mxu0 0.0
    %2760 = vmatpush1.msra.mxu0 0.0
    %2761 = vmatprep.subr.mxu0 0.0
    %2762 = vmatpush1.msra.mxu0 0.0
    %2763 = vmatprep.subr.mxu0 0.0
    %2764 = vmatpush1.msra.mxu0 0.0
    %2765 = vmatprep.subr.mxu0 0.0
    %2766 = vmatpush1.msra.mxu0 0.0
    %2767 = vmatprep.subr.mxu0 0.0
    %2768 = vmatpush1.msra.mxu0 0.0
    %2769 = vmatprep.subr.mxu0 0.0
    %2770 = vmatpush1.msra.mxu0 0.0
    %2771 = vmatprep.subr.mxu0 0.0
    %2772 = vmatpush1.msra.mxu0 0.0
    %2773 = vmatprep.subr.mxu0 0.0
    %2774 = vmatpush1.msra.mxu0 0.0
    %2775 = vmatprep.subr.mxu0 0.0
    %2776 = vmatpush1.msra.mxu0 0.0
    %2777 = vmatprep.subr.mxu0 %v233
    %2778 = vmatpush1.msra.mxu0 %v232
    %2779 = vmatprep.subr.mxu0 0.0
    %2780 = vmatpush2.msra.mxu0 0.0
    %2781 = vmatprep.subr.mxu0 0.0
    %2782 = vmatpush2.msra.mxu0 0.0
    %2783 = vmatprep.subr.mxu0 0.0
    %2784 = vmatpush2.msra.mxu0 0.0
    %2785 = vmatprep.subr.mxu0 0.0
    %2786 = vmatpush2.msra.mxu0 0.0
    %2787 = vmatprep.subr.mxu0 0.0
    %2788 = vmatpush2.msra.mxu0 0.0
    %2789 = vmatprep.subr.mxu0 0.0
    %2790 = vmatpush2.msra.mxu0 0.0
    %2791 = vmatprep.subr.mxu0 0.0
    %2792 = vmatpush2.msra.mxu0 0.0
    %2793 = vmatprep.subr.mxu0 0.0
    %2794 = vmatpush2.msra.mxu0 0.0
    %2795 = vmatprep.subr.mxu0 0.0
    %2796 = vmatpush2.msra.mxu0 0.0
    %2797 = vmatprep.subr.mxu0 0.0
    %2798 = vmatpush2.msra.mxu0 0.0
    %2799 = vmatprep.subr.mxu0 0.0
    %2800 = vmatpush2.msra.mxu0 0.0
    %2801 = vmatprep.subr.mxu0 0.0
    %2802 = vmatpush2.msra.mxu0 0.0
    %2803 = vmatprep.subr.mxu0 0.0
    %2804 = vmatpush2.msra.mxu0 0.0
    %2805 = vmatprep.subr.mxu0 0.0
    %2806 = vmatpush2.msra.mxu0 0.0
    %2807 = vmatprep.subr.mxu0 0.0
    %2808 = vmatpush2.msra.mxu0 0.0
    %2809 = vmatprep.subr.mxu0 0.0
    %2810 = vmatpush2.msra.mxu0 0.0
    %2811 = vmatprep.mubr.f32.mxu0 0.0
    %2812 = vmatmul.mubr.f32.gmra.mxu0 %v260
    %v2813 = vpop.f32.mrf.mxu0
    %v2814 = vadd.f32 0.0, %v2813
    %v2815 = vpop.f32.mrf.mxu0
    %v2816 = vadd.f32 0.0, %v2815
    %2817 = vdwg.mxu0
    %2818 = vmatprep.subr.mxu0 0.0
    %2819 = vmatpush1.msra.mxu0 0.0
    %2820 = vmatprep.subr.mxu0 0.0
    %2821 = vmatpush1.msra.mxu0 0.0
    %2822 = vmatprep.subr.mxu0 0.0
    %2823 = vmatpush1.msra.mxu0 0.0
    %2824 = vmatprep.subr.mxu0 0.0
    %2825 = vmatpush1.msra.mxu0 0.0
    %2826 = vmatprep.subr.mxu0 0.0
    %2827 = vmatpush1.msra.mxu0 0.0
    %2828 = vmatprep.subr.mxu0 0.0
    %2829 = vmatpush1.msra.mxu0 0.0
    %2830 = vmatprep.subr.mxu0 0.0
    %2831 = vmatpush1.msra.mxu0 0.0
    %2832 = vmatprep.subr.mxu0 0.0
    %2833 = vmatpush1.msra.mxu0 0.0
    %2834 = vmatprep.subr.mxu0 0.0
    %2835 = vmatpush1.msra.mxu0 0.0
    %2836 = vmatprep.subr.mxu0 0.0
    %2837 = vmatpush1.msra.mxu0 0.0
    %2838 = vmatprep.subr.mxu0 0.0
    %2839 = vmatpush1.msra.mxu0 0.0
    %2840 = vmatprep.subr.mxu0 0.0
    %2841 = vmatpush1.msra.mxu0 0.0
    %2842 = vmatprep.subr.mxu0 0.0
    %2843 = vmatpush1.msra.mxu0 0.0
    %2844 = vmatprep.subr.mxu0 0.0
    %2845 = vmatpush1.msra.mxu0 0.0
    %2846 = vmatprep.subr.mxu0 0.0
    %2847 = vmatpush1.msra.mxu0 0.0
    %2848 = vmatprep.subr.mxu0 %v235
    %2849 = vmatpush1.msra.mxu0 %v234
    %2850 = vmatprep.subr.mxu0 0.0
    %2851 = vmatpush2.msra.mxu0 0.0
    %2852 = vmatprep.subr.mxu0 0.0
    %2853 = vmatpush2.msra.mxu0 0.0
    %2854 = vmatprep.subr.mxu0 0.0
    %2855 = vmatpush2.msra.mxu0 0.0
    %2856 = vmatprep.subr.mxu0 0.0
    %2857 = vmatpush2.msra.mxu0 0.0
    %2858 = vmatprep.subr.mxu0 0.0
    %2859 = vmatpush2.msra.mxu0 0.0
    %2860 = vmatprep.subr.mxu0 0.0
    %2861 = vmatpush2.msra.mxu0 0.0
    %2862 = vmatprep.subr.mxu0 0.0
    %2863 = vmatpush2.msra.mxu0 0.0
    %2864 = vmatprep.subr.mxu0 0.0
    %2865 = vmatpush2.msra.mxu0 0.0
    %2866 = vmatprep.subr.mxu0 0.0
    %2867 = vmatpush2.msra.mxu0 0.0
    %2868 = vmatprep.subr.mxu0 0.0
    %2869 = vmatpush2.msra.mxu0 0.0
    %2870 = vmatprep.subr.mxu0 0.0
    %2871 = vmatpush2.msra.mxu0 0.0
    %2872 = vmatprep.subr.mxu0 0.0
    %2873 = vmatpush2.msra.mxu0 0.0
    %2874 = vmatprep.subr.mxu0 0.0
    %2875 = vmatpush2.msra.mxu0 0.0
    %2876 = vmatprep.subr.mxu0 0.0
    %2877 = vmatpush2.msra.mxu0 0.0
    %2878 = vmatprep.subr.mxu0 0.0
    %2879 = vmatpush2.msra.mxu0 0.0
    %2880 = vmatprep.subr.mxu0 0.0
    %2881 = vmatpush2.msra.mxu0 0.0
    %2882 = vmatprep.mubr.f32.mxu0 0.0
    %2883 = vmatmul.mubr.f32.gmra.mxu0 %v260
    %v2884 = vpop.f32.mrf.mxu0
    %v2885 = vadd.f32 0.0, %v2884
    %v2886 = vpop.f32.mrf.mxu0
    %v2887 = vadd.f32 0.0, %v2886
    %2888 = vdwg.mxu0
    %2889 = vmatprep.subr.mxu0 0.0
    %2890 = vmatpush1.msra.mxu0 0.0
    %2891 = vmatprep.subr.mxu0 0.0
    %2892 = vmatpush1.msra.mxu0 0.0
    %2893 = vmatprep.subr.mxu0 0.0
    %2894 = vmatpush1.msra.mxu0 0.0
    %2895 = vmatprep.subr.mxu0 0.0
    %2896 = vmatpush1.msra.mxu0 0.0
    %2897 = vmatprep.subr.mxu0 0.0
    %2898 = vmatpush1.msra.mxu0 0.0
    %2899 = vmatprep.subr.mxu0 0.0
    %2900 = vmatpush1.msra.mxu0 0.0
    %2901 = vmatprep.subr.mxu0 0.0
    %2902 = vmatpush1.msra.mxu0 0.0
    %2903 = vmatprep.subr.mxu0 0.0
    %2904 = vmatpush1.msra.mxu0 0.0
    %2905 = vmatprep.subr.mxu0 0.0
    %2906 = vmatpush1.msra.mxu0 0.0
    %2907 = vmatprep.subr.mxu0 0.0
    %2908 = vmatpush1.msra.mxu0 0.0
    %2909 = vmatprep.subr.mxu0 0.0
    %2910 = vmatpush1.msra.mxu0 0.0
    %2911 = vmatprep.subr.mxu0 0.0
    %2912 = vmatpush1.msra.mxu0 0.0
    %2913 = vmatprep.subr.mxu0 0.0
    %2914 = vmatpush1.msra.mxu0 0.0
    %2915 = vmatprep.subr.mxu0 0.0
    %2916 = vmatpush1.msra.mxu0 0.0
    %2917 = vmatprep.subr.mxu0 0.0
    %2918 = vmatpush1.msra.mxu0 0.0
    %2919 = vmatprep.subr.mxu0 %v237
    %2920 = vmatpush1.msra.mxu0 %v236
    %2921 = vmatprep.subr.mxu0 0.0
    %2922 = vmatpush2.msra.mxu0 0.0
    %2923 = vmatprep.subr.mxu0 0.0
    %2924 = vmatpush2.msra.mxu0 0.0
    %2925 = vmatprep.subr.mxu0 0.0
    %2926 = vmatpush2.msra.mxu0 0.0
    %2927 = vmatprep.subr.mxu0 0.0
    %2928 = vmatpush2.msra.mxu0 0.0
    %2929 = vmatprep.subr.mxu0 0.0
    %2930 = vmatpush2.msra.mxu0 0.0
    %2931 = vmatprep.subr.mxu0 0.0
    %2932 = vmatpush2.msra.mxu0 0.0
    %2933 = vmatprep.subr.mxu0 0.0
    %2934 = vmatpush2.msra.mxu0 0.0
    %2935 = vmatprep.subr.mxu0 0.0
    %2936 = vmatpush2.msra.mxu0 0.0
    %2937 = vmatprep.subr.mxu0 0.0
    %2938 = vmatpush2.msra.mxu0 0.0
    %2939 = vmatprep.subr.mxu0 0.0
    %2940 = vmatpush2.msra.mxu0 0.0
    %2941 = vmatprep.subr.mxu0 0.0
    %2942 = vmatpush2.msra.mxu0 0.0
    %2943 = vmatprep.subr.mxu0 0.0
    %2944 = vmatpush2.msra.mxu0 0.0
    %2945 = vmatprep.subr.mxu0 0.0
    %2946 = vmatpush2.msra.mxu0 0.0
    %2947 = vmatprep.subr.mxu0 0.0
    %2948 = vmatpush2.msra.mxu0 0.0
    %2949 = vmatprep.subr.mxu0 0.0
    %2950 = vmatpush2.msra.mxu0 0.0
    %2951 = vmatprep.subr.mxu0 0.0
    %2952 = vmatpush2.msra.mxu0 0.0
    %2953 = vmatprep.mubr.f32.mxu0 0.0
    %2954 = vmatmul.mubr.f32.gmra.mxu0 %v260
    %v2955 = vpop.f32.mrf.mxu0
    %v2956 = vadd.f32 0.0, %v2955
    %v2957 = vpop.f32.mrf.mxu0
    %v2958 = vadd.f32 0.0, %v2957
    %2959 = vdwg.mxu0
    %2960 = vmatprep.subr.mxu0 0.0
    %2961 = vmatpush1.msra.mxu0 0.0
    %2962 = vmatprep.subr.mxu0 0.0
    %2963 = vmatpush1.msra.mxu0 0.0
    %2964 = vmatprep.subr.mxu0 0.0
    %2965 = vmatpush1.msra.mxu0 0.0
    %2966 = vmatprep.subr.mxu0 0.0
    %2967 = vmatpush1.msra.mxu0 0.0
    %2968 = vmatprep.subr.mxu0 0.0
    %2969 = vmatpush1.msra.mxu0 0.0
    %2970 = vmatprep.subr.mxu0 0.0
    %2971 = vmatpush1.msra.mxu0 0.0
    %2972 = vmatprep.subr.mxu0 0.0
    %2973 = vmatpush1.msra.mxu0 0.0
    %2974 = vmatprep.subr.mxu0 0.0
    %2975 = vmatpush1.msra.mxu0 0.0
    %2976 = vmatprep.subr.mxu0 0.0
    %2977 = vmatpush1.msra.mxu0 0.0
    %2978 = vmatprep.subr.mxu0 0.0
    %2979 = vmatpush1.msra.mxu0 0.0
    %2980 = vmatprep.subr.mxu0 0.0
    %2981 = vmatpush1.msra.mxu0 0.0
    %2982 = vmatprep.subr.mxu0 0.0
    %2983 = vmatpush1.msra.mxu0 0.0
    %2984 = vmatprep.subr.mxu0 0.0
    %2985 = vmatpush1.msra.mxu0 0.0
    %2986 = vmatprep.subr.mxu0 0.0
    %2987 = vmatpush1.msra.mxu0 0.0
    %2988 = vmatprep.subr.mxu0 0.0
    %2989 = vmatpush1.msra.mxu0 0.0
    %2990 = vmatprep.subr.mxu0 %v239
    %2991 = vmatpush1.msra.mxu0 %v238
    %2992 = vmatprep.subr.mxu0 0.0
    %2993 = vmatpush2.msra.mxu0 0.0
    %2994 = vmatprep.subr.mxu0 0.0
    %2995 = vmatpush2.msra.mxu0 0.0
    %2996 = vmatprep.subr.mxu0 0.0
    %2997 = vmatpush2.msra.mxu0 0.0
    %2998 = vmatprep.subr.mxu0 0.0
    %2999 = vmatpush2.msra.mxu0 0.0
    %3000 = vmatprep.subr.mxu0 0.0
    %3001 = vmatpush2.msra.mxu0 0.0
    %3002 = vmatprep.subr.mxu0 0.0
    %3003 = vmatpush2.msra.mxu0 0.0
    %3004 = vmatprep.subr.mxu0 0.0
    %3005 = vmatpush2.msra.mxu0 0.0
    %3006 = vmatprep.subr.mxu0 0.0
    %3007 = vmatpush2.msra.mxu0 0.0
    %3008 = vmatprep.subr.mxu0 0.0
    %3009 = vmatpush2.msra.mxu0 0.0
    %3010 = vmatprep.subr.mxu0 0.0
    %3011 = vmatpush2.msra.mxu0 0.0
    %3012 = vmatprep.subr.mxu0 0.0
    %3013 = vmatpush2.msra.mxu0 0.0
    %3014 = vmatprep.subr.mxu0 0.0
    %3015 = vmatpush2.msra.mxu0 0.0
    %3016 = vmatprep.subr.mxu0 0.0
    %3017 = vmatpush2.msra.mxu0 0.0
    %3018 = vmatprep.subr.mxu0 0.0
    %3019 = vmatpush2.msra.mxu0 0.0
    %3020 = vmatprep.subr.mxu0 0.0
    %3021 = vmatpush2.msra.mxu0 0.0
    %3022 = vmatprep.subr.mxu0 0.0
    %3023 = vmatpush2.msra.mxu0 0.0
    %3024 = vmatprep.mubr.f32.mxu0 0.0
    %3025 = vmatmul.mubr.f32.gmra.mxu0 %v260
    %v3026 = vpop.f32.mrf.mxu0
    %v3027 = vadd.f32 0.0, %v3026
    %v3028 = vpop.f32.mrf.mxu0
    %v3029 = vadd.f32 0.0, %v3028
    %3030 = vdwg.mxu0
    %3031 = vmatprep.subr.mxu0 0.0
    %3032 = vmatpush1.msra.mxu0 0.0
    %3033 = vmatprep.subr.mxu0 0.0
    %3034 = vmatpush1.msra.mxu0 0.0
    %3035 = vmatprep.subr.mxu0 0.0
    %3036 = vmatpush1.msra.mxu0 0.0
    %3037 = vmatprep.subr.mxu0 0.0
    %3038 = vmatpush1.msra.mxu0 0.0
    %3039 = vmatprep.subr.mxu0 0.0
    %3040 = vmatpush1.msra.mxu0 0.0
    %3041 = vmatprep.subr.mxu0 0.0
    %3042 = vmatpush1.msra.mxu0 0.0
    %3043 = vmatprep.subr.mxu0 0.0
    %3044 = vmatpush1.msra.mxu0 0.0
    %3045 = vmatprep.subr.mxu0 0.0
    %3046 = vmatpush1.msra.mxu0 0.0
    %3047 = vmatprep.subr.mxu0 0.0
    %3048 = vmatpush1.msra.mxu0 0.0
    %3049 = vmatprep.subr.mxu0 0.0
    %3050 = vmatpush1.msra.mxu0 0.0
    %3051 = vmatprep.subr.mxu0 0.0
    %3052 = vmatpush1.msra.mxu0 0.0
    %3053 = vmatprep.subr.mxu0 0.0
    %3054 = vmatpush1.msra.mxu0 0.0
    %3055 = vmatprep.subr.mxu0 0.0
    %3056 = vmatpush1.msra.mxu0 0.0
    %3057 = vmatprep.subr.mxu0 0.0
    %3058 = vmatpush1.msra.mxu0 0.0
    %3059 = vmatprep.subr.mxu0 0.0
    %3060 = vmatpush1.msra.mxu0 0.0
    %3061 = vmatprep.subr.mxu0 %v241
    %3062 = vmatpush1.msra.mxu0 %v240
    %3063 = vmatprep.subr.mxu0 0.0
    %3064 = vmatpush2.msra.mxu0 0.0
    %3065 = vmatprep.subr.mxu0 0.0
    %3066 = vmatpush2.msra.mxu0 0.0
    %3067 = vmatprep.subr.mxu0 0.0
    %3068 = vmatpush2.msra.mxu0 0.0
    %3069 = vmatprep.subr.mxu0 0.0
    %3070 = vmatpush2.msra.mxu0 0.0
    %3071 = vmatprep.subr.mxu0 0.0
    %3072 = vmatpush2.msra.mxu0 0.0
    %3073 = vmatprep.subr.mxu0 0.0
    %3074 = vmatpush2.msra.mxu0 0.0
    %3075 = vmatprep.subr.mxu0 0.0
    %3076 = vmatpush2.msra.mxu0 0.0
    %3077 = vmatprep.subr.mxu0 0.0
    %3078 = vmatpush2.msra.mxu0 0.0
    %3079 = vmatprep.subr.mxu0 0.0
    %3080 = vmatpush2.msra.mxu0 0.0
    %3081 = vmatprep.subr.mxu0 0.0
    %3082 = vmatpush2.msra.mxu0 0.0
    %3083 = vmatprep.subr.mxu0 0.0
    %3084 = vmatpush2.msra.mxu0 0.0
    %3085 = vmatprep.subr.mxu0 0.0
    %3086 = vmatpush2.msra.mxu0 0.0
    %3087 = vmatprep.subr.mxu0 0.0
    %3088 = vmatpush2.msra.mxu0 0.0
    %3089 = vmatprep.subr.mxu0 0.0
    %3090 = vmatpush2.msra.mxu0 0.0
    %3091 = vmatprep.subr.mxu0 0.0
    %3092 = vmatpush2.msra.mxu0 0.0
    %3093 = vmatprep.subr.mxu0 0.0
    %3094 = vmatpush2.msra.mxu0 0.0
    %3095 = vmatprep.mubr.f32.mxu0 0.0
    %3096 = vmatmul.mubr.f32.gmra.mxu0 %v260
    %v3097 = vpop.f32.mrf.mxu0
    %v3098 = vadd.f32 0.0, %v3097
    %v3099 = vpop.f32.mrf.mxu0
    %v3100 = vadd.f32 0.0, %v3099
    %3101 = vdwg.mxu0
    %3102 = vmatprep.subr.mxu0 0.0
    %3103 = vmatpush1.msra.mxu0 0.0
    %3104 = vmatprep.subr.mxu0 0.0
    %3105 = vmatpush1.msra.mxu0 0.0
    %3106 = vmatprep.subr.mxu0 0.0
    %3107 = vmatpush1.msra.mxu0 0.0
    %3108 = vmatprep.subr.mxu0 0.0
    %3109 = vmatpush1.msra.mxu0 0.0
    %3110 = vmatprep.subr.mxu0 0.0
    %3111 = vmatpush1.msra.mxu0 0.0
    %3112 = vmatprep.subr.mxu0 0.0
    %3113 = vmatpush1.msra.mxu0 0.0
    %3114 = vmatprep.subr.mxu0 0.0
    %3115 = vmatpush1.msra.mxu0 0.0
    %3116 = vmatprep.subr.mxu0 0.0
    %3117 = vmatpush1.msra.mxu0 0.0
    %3118 = vmatprep.subr.mxu0 0.0
    %3119 = vmatpush1.msra.mxu0 0.0
    %3120 = vmatprep.subr.mxu0 0.0
    %3121 = vmatpush1.msra.mxu0 0.0
    %3122 = vmatprep.subr.mxu0 0.0
    %3123 = vmatpush1.msra.mxu0 0.0
    %3124 = vmatprep.subr.mxu0 0.0
    %3125 = vmatpush1.msra.mxu0 0.0
    %3126 = vmatprep.subr.mxu0 0.0
    %3127 = vmatpush1.msra.mxu0 0.0
    %3128 = vmatprep.subr.mxu0 0.0
    %3129 = vmatpush1.msra.mxu0 0.0
    %3130 = vmatprep.subr.mxu0 0.0
    %3131 = vmatpush1.msra.mxu0 0.0
    %3132 = vmatprep.subr.mxu0 %v243
    %3133 = vmatpush1.msra.mxu0 %v242
    %3134 = vmatprep.subr.mxu0 0.0
    %3135 = vmatpush2.msra.mxu0 0.0
    %3136 = vmatprep.subr.mxu0 0.0
    %3137 = vmatpush2.msra.mxu0 0.0
    %3138 = vmatprep.subr.mxu0 0.0
    %3139 = vmatpush2.msra.mxu0 0.0
    %3140 = vmatprep.subr.mxu0 0.0
    %3141 = vmatpush2.msra.mxu0 0.0
    %3142 = vmatprep.subr.mxu0 0.0
    %3143 = vmatpush2.msra.mxu0 0.0
    %3144 = vmatprep.subr.mxu0 0.0
    %3145 = vmatpush2.msra.mxu0 0.0
    %3146 = vmatprep.subr.mxu0 0.0
    %3147 = vmatpush2.msra.mxu0 0.0
    %3148 = vmatprep.subr.mxu0 0.0
    %3149 = vmatpush2.msra.mxu0 0.0
    %3150 = vmatprep.subr.mxu0 0.0
    %3151 = vmatpush2.msra.mxu0 0.0
    %3152 = vmatprep.subr.mxu0 0.0
    %3153 = vmatpush2.msra.mxu0 0.0
    %3154 = vmatprep.subr.mxu0 0.0
    %3155 = vmatpush2.msra.mxu0 0.0
    %3156 = vmatprep.subr.mxu0 0.0
    %3157 = vmatpush2.msra.mxu0 0.0
    %3158 = vmatprep.subr.mxu0 0.0
    %3159 = vmatpush2.msra.mxu0 0.0
    %3160 = vmatprep.subr.mxu0 0.0
    %3161 = vmatpush2.msra.mxu0 0.0
    %3162 = vmatprep.subr.mxu0 0.0
    %3163 = vmatpush2.msra.mxu0 0.0
    %3164 = vmatprep.subr.mxu0 0.0
    %3165 = vmatpush2.msra.mxu0 0.0
    %3166 = vmatprep.mubr.f32.mxu0 0.0
    %3167 = vmatmul.mubr.f32.gmra.mxu0 %v260
    %v3168 = vpop.f32.mrf.mxu0
    %v3169 = vadd.f32 0.0, %v3168
    %v3170 = vpop.f32.mrf.mxu0
    %v3171 = vadd.f32 0.0, %v3170
    %3172 = vdwg.mxu0
    %3173 = vmatprep.subr.mxu0 0.0
    %3174 = vmatpush1.msra.mxu0 0.0
    %3175 = vmatprep.subr.mxu0 0.0
    %3176 = vmatpush1.msra.mxu0 0.0
    %3177 = vmatprep.subr.mxu0 0.0
    %3178 = vmatpush1.msra.mxu0 0.0
    %3179 = vmatprep.subr.mxu0 0.0
    %3180 = vmatpush1.msra.mxu0 0.0
    %3181 = vmatprep.subr.mxu0 0.0
    %3182 = vmatpush1.msra.mxu0 0.0
    %3183 = vmatprep.subr.mxu0 0.0
    %3184 = vmatpush1.msra.mxu0 0.0
    %3185 = vmatprep.subr.mxu0 0.0
    %3186 = vmatpush1.msra.mxu0 0.0
    %3187 = vmatprep.subr.mxu0 0.0
    %3188 = vmatpush1.msra.mxu0 0.0
    %3189 = vmatprep.subr.mxu0 0.0
    %3190 = vmatpush1.msra.mxu0 0.0
    %3191 = vmatprep.subr.mxu0 0.0
    %3192 = vmatpush1.msra.mxu0 0.0
    %3193 = vmatprep.subr.mxu0 0.0
    %3194 = vmatpush1.msra.mxu0 0.0
    %3195 = vmatprep.subr.mxu0 0.0
    %3196 = vmatpush1.msra.mxu0 0.0
    %3197 = vmatprep.subr.mxu0 0.0
    %3198 = vmatpush1.msra.mxu0 0.0
    %3199 = vmatprep.subr.mxu0 0.0
    %3200 = vmatpush1.msra.mxu0 0.0
    %3201 = vmatprep.subr.mxu0 0.0
    %3202 = vmatpush1.msra.mxu0 0.0
    %3203 = vmatprep.subr.mxu0 %v245
    %3204 = vmatpush1.msra.mxu0 %v244
    %3205 = vmatprep.subr.mxu0 0.0
    %3206 = vmatpush2.msra.mxu0 0.0
    %3207 = vmatprep.subr.mxu0 0.0
    %3208 = vmatpush2.msra.mxu0 0.0
    %3209 = vmatprep.subr.mxu0 0.0
    %3210 = vmatpush2.msra.mxu0 0.0
    %3211 = vmatprep.subr.mxu0 0.0
    %3212 = vmatpush2.msra.mxu0 0.0
    %3213 = vmatprep.subr.mxu0 0.0
    %3214 = vmatpush2.msra.mxu0 0.0
    %3215 = vmatprep.subr.mxu0 0.0
    %3216 = vmatpush2.msra.mxu0 0.0
    %3217 = vmatprep.subr.mxu0 0.0
    %3218 = vmatpush2.msra.mxu0 0.0
    %3219 = vmatprep.subr.mxu0 0.0
    %3220 = vmatpush2.msra.mxu0 0.0
    %3221 = vmatprep.subr.mxu0 0.0
    %3222 = vmatpush2.msra.mxu0 0.0
    %3223 = vmatprep.subr.mxu0 0.0
    %3224 = vmatpush2.msra.mxu0 0.0
    %3225 = vmatprep.subr.mxu0 0.0
    %3226 = vmatpush2.msra.mxu0 0.0
    %3227 = vmatprep.subr.mxu0 0.0
    %3228 = vmatpush2.msra.mxu0 0.0
    %3229 = vmatprep.subr.mxu0 0.0
    %3230 = vmatpush2.msra.mxu0 0.0
    %3231 = vmatprep.subr.mxu0 0.0
    %3232 = vmatpush2.msra.mxu0 0.0
    %3233 = vmatprep.subr.mxu0 0.0
    %3234 = vmatpush2.msra.mxu0 0.0
    %3235 = vmatprep.subr.mxu0 0.0
    %3236 = vmatpush2.msra.mxu0 0.0
    %3237 = vmatprep.mubr.f32.mxu0 0.0
    %3238 = vmatmul.mubr.f32.gmra.mxu0 %v260
    %v3239 = vpop.f32.mrf.mxu0
    %v3240 = vadd.f32 0.0, %v3239
    %v3241 = vpop.f32.mrf.mxu0
    %v3242 = vadd.f32 0.0, %v3241
    %3243 = vdwg.mxu0
    %3244 = vmatprep.subr.mxu0 0.0
    %3245 = vmatpush1.msra.mxu0 0.0
    %3246 = vmatprep.subr.mxu0 0.0
    %3247 = vmatpush1.msra.mxu0 0.0
    %3248 = vmatprep.subr.mxu0 0.0
    %3249 = vmatpush1.msra.mxu0 0.0
    %3250 = vmatprep.subr.mxu0 0.0
    %3251 = vmatpush1.msra.mxu0 0.0
    %3252 = vmatprep.subr.mxu0 0.0
    %3253 = vmatpush1.msra.mxu0 0.0
    %3254 = vmatprep.subr.mxu0 0.0
    %3255 = vmatpush1.msra.mxu0 0.0
    %3256 = vmatprep.subr.mxu0 0.0
    %3257 = vmatpush1.msra.mxu0 0.0
    %3258 = vmatprep.subr.mxu0 0.0
    %3259 = vmatpush1.msra.mxu0 0.0
    %3260 = vmatprep.subr.mxu0 0.0
    %3261 = vmatpush1.msra.mxu0 0.0
    %3262 = vmatprep.subr.mxu0 0.0
    %3263 = vmatpush1.msra.mxu0 0.0
    %3264 = vmatprep.subr.mxu0 0.0
    %3265 = vmatpush1.msra.mxu0 0.0
    %3266 = vmatprep.subr.mxu0 0.0
    %3267 = vmatpush1.msra.mxu0 0.0
    %3268 = vmatprep.subr.mxu0 0.0
    %3269 = vmatpush1.msra.mxu0 0.0
    %3270 = vmatprep.subr.mxu0 0.0
    %3271 = vmatpush1.msra.mxu0 0.0
    %3272 = vmatprep.subr.mxu0 0.0
    %3273 = vmatpush1.msra.mxu0 0.0
    %3274 = vmatprep.subr.mxu0 %v247
    %3275 = vmatpush1.msra.mxu0 %v246
    %3276 = vmatprep.subr.mxu0 0.0
    %3277 = vmatpush2.msra.mxu0 0.0
    %3278 = vmatprep.subr.mxu0 0.0
    %3279 = vmatpush2.msra.mxu0 0.0
    %3280 = vmatprep.subr.mxu0 0.0
    %3281 = vmatpush2.msra.mxu0 0.0
    %3282 = vmatprep.subr.mxu0 0.0
    %3283 = vmatpush2.msra.mxu0 0.0
    %3284 = vmatprep.subr.mxu0 0.0
    %3285 = vmatpush2.msra.mxu0 0.0
    %3286 = vmatprep.subr.mxu0 0.0
    %3287 = vmatpush2.msra.mxu0 0.0
    %3288 = vmatprep.subr.mxu0 0.0
    %3289 = vmatpush2.msra.mxu0 0.0
    %3290 = vmatprep.subr.mxu0 0.0
    %3291 = vmatpush2.msra.mxu0 0.0
    %3292 = vmatprep.subr.mxu0 0.0
    %3293 = vmatpush2.msra.mxu0 0.0
    %3294 = vmatprep.subr.mxu0 0.0
    %3295 = vmatpush2.msra.mxu0 0.0
    %3296 = vmatprep.subr.mxu0 0.0
    %3297 = vmatpush2.msra.mxu0 0.0
    %3298 = vmatprep.subr.mxu0 0.0
    %3299 = vmatpush2.msra.mxu0 0.0
    %3300 = vmatprep.subr.mxu0 0.0
    %3301 = vmatpush2.msra.mxu0 0.0
    %3302 = vmatprep.subr.mxu0 0.0
    %3303 = vmatpush2.msra.mxu0 0.0
    %3304 = vmatprep.subr.mxu0 0.0
    %3305 = vmatpush2.msra.mxu0 0.0
    %3306 = vmatprep.subr.mxu0 0.0
    %3307 = vmatpush2.msra.mxu0 0.0
    %3308 = vmatprep.mubr.f32.mxu0 0.0
    %3309 = vmatmul.mubr.f32.gmra.mxu0 %v260
    %v3310 = vpop.f32.mrf.mxu0
    %v3311 = vadd.f32 0.0, %v3310
    %v3312 = vpop.f32.mrf.mxu0
    %v3313 = vadd.f32 0.0, %v3312
    %3314 = vdwg.mxu0
    %3315 = vmatprep.subr.mxu0 0.0
    %3316 = vmatpush1.msra.mxu0 0.0
    %3317 = vmatprep.subr.mxu0 0.0
    %3318 = vmatpush1.msra.mxu0 0.0
    %3319 = vmatprep.subr.mxu0 0.0
    %3320 = vmatpush1.msra.mxu0 0.0
    %3321 = vmatprep.subr.mxu0 0.0
    %3322 = vmatpush1.msra.mxu0 0.0
    %3323 = vmatprep.subr.mxu0 0.0
    %3324 = vmatpush1.msra.mxu0 0.0
    %3325 = vmatprep.subr.mxu0 0.0
    %3326 = vmatpush1.msra.mxu0 0.0
    %3327 = vmatprep.subr.mxu0 0.0
    %3328 = vmatpush1.msra.mxu0 0.0
    %3329 = vmatprep.subr.mxu0 0.0
    %3330 = vmatpush1.msra.mxu0 0.0
    %3331 = vmatprep.subr.mxu0 0.0
    %3332 = vmatpush1.msra.mxu0 0.0
    %3333 = vmatprep.subr.mxu0 0.0
    %3334 = vmatpush1.msra.mxu0 0.0
    %3335 = vmatprep.subr.mxu0 0.0
    %3336 = vmatpush1.msra.mxu0 0.0
    %3337 = vmatprep.subr.mxu0 0.0
    %3338 = vmatpush1.msra.mxu0 0.0
    %3339 = vmatprep.subr.mxu0 0.0
    %3340 = vmatpush1.msra.mxu0 0.0
    %3341 = vmatprep.subr.mxu0 0.0
    %3342 = vmatpush1.msra.mxu0 0.0
    %3343 = vmatprep.subr.mxu0 0.0
    %3344 = vmatpush1.msra.mxu0 0.0
    %3345 = vmatprep.subr.mxu0 %v249
    %3346 = vmatpush1.msra.mxu0 %v248
    %3347 = vmatprep.subr.mxu0 0.0
    %3348 = vmatpush2.msra.mxu0 0.0
    %3349 = vmatprep.subr.mxu0 0.0
    %3350 = vmatpush2.msra.mxu0 0.0
    %3351 = vmatprep.subr.mxu0 0.0
    %3352 = vmatpush2.msra.mxu0 0.0
    %3353 = vmatprep.subr.mxu0 0.0
    %3354 = vmatpush2.msra.mxu0 0.0
    %3355 = vmatprep.subr.mxu0 0.0
    %3356 = vmatpush2.msra.mxu0 0.0
    %3357 = vmatprep.subr.mxu0 0.0
    %3358 = vmatpush2.msra.mxu0 0.0
    %3359 = vmatprep.subr.mxu0 0.0
    %3360 = vmatpush2.msra.mxu0 0.0
    %3361 = vmatprep.subr.mxu0 0.0
    %3362 = vmatpush2.msra.mxu0 0.0
    %3363 = vmatprep.subr.mxu0 0.0
    %3364 = vmatpush2.msra.mxu0 0.0
    %3365 = vmatprep.subr.mxu0 0.0
    %3366 = vmatpush2.msra.mxu0 0.0
    %3367 = vmatprep.subr.mxu0 0.0
    %3368 = vmatpush2.msra.mxu0 0.0
    %3369 = vmatprep.subr.mxu0 0.0
    %3370 = vmatpush2.msra.mxu0 0.0
    %3371 = vmatprep.subr.mxu0 0.0
    %3372 = vmatpush2.msra.mxu0 0.0
    %3373 = vmatprep.subr.mxu0 0.0
    %3374 = vmatpush2.msra.mxu0 0.0
    %3375 = vmatprep.subr.mxu0 0.0
    %3376 = vmatpush2.msra.mxu0 0.0
    %3377 = vmatprep.subr.mxu0 0.0
    %3378 = vmatpush2.msra.mxu0 0.0
    %3379 = vmatprep.mubr.f32.mxu0 0.0
    %3380 = vmatmul.mubr.f32.gmra.mxu0 %v260
    %v3381 = vpop.f32.mrf.mxu0
    %v3382 = vadd.f32 0.0, %v3381
    %v3383 = vpop.f32.mrf.mxu0
    %v3384 = vadd.f32 0.0, %v3383
    %3385 = vdwg.mxu0
    %3386 = vmatprep.subr.mxu0 0.0
    %3387 = vmatpush1.msra.mxu0 0.0
    %3388 = vmatprep.subr.mxu0 0.0
    %3389 = vmatpush1.msra.mxu0 0.0
    %3390 = vmatprep.subr.mxu0 0.0
    %3391 = vmatpush1.msra.mxu0 0.0
    %3392 = vmatprep.subr.mxu0 0.0
    %3393 = vmatpush1.msra.mxu0 0.0
    %3394 = vmatprep.subr.mxu0 0.0
    %3395 = vmatpush1.msra.mxu0 0.0
    %3396 = vmatprep.subr.mxu0 0.0
    %3397 = vmatpush1.msra.mxu0 0.0
    %3398 = vmatprep.subr.mxu0 0.0
    %3399 = vmatpush1.msra.mxu0 0.0
    %3400 = vmatprep.subr.mxu0 0.0
    %3401 = vmatpush1.msra.mxu0 0.0
    %3402 = vmatprep.subr.mxu0 0.0
    %3403 = vmatpush1.msra.mxu0 0.0
    %3404 = vmatprep.subr.mxu0 0.0
    %3405 = vmatpush1.msra.mxu0 0.0
    %3406 = vmatprep.subr.mxu0 0.0
    %3407 = vmatpush1.msra.mxu0 0.0
    %3408 = vmatprep.subr.mxu0 0.0
    %3409 = vmatpush1.msra.mxu0 0.0
    %3410 = vmatprep.subr.mxu0 0.0
    %3411 = vmatpush1.msra.mxu0 0.0
    %3412 = vmatprep.subr.mxu0 0.0
    %3413 = vmatpush1.msra.mxu0 0.0
    %3414 = vmatprep.subr.mxu0 0.0
    %3415 = vmatpush1.msra.mxu0 0.0
    %3416 = vmatprep.subr.mxu0 %v251
    %3417 = vmatpush1.msra.mxu0 %v250
    %3418 = vmatprep.subr.mxu0 0.0
    %3419 = vmatpush2.msra.mxu0 0.0
    %3420 = vmatprep.subr.mxu0 0.0
    %3421 = vmatpush2.msra.mxu0 0.0
    %3422 = vmatprep.subr.mxu0 0.0
    %3423 = vmatpush2.msra.mxu0 0.0
    %3424 = vmatprep.subr.mxu0 0.0
    %3425 = vmatpush2.msra.mxu0 0.0
    %3426 = vmatprep.subr.mxu0 0.0
    %3427 = vmatpush2.msra.mxu0 0.0
    %3428 = vmatprep.subr.mxu0 0.0
    %3429 = vmatpush2.msra.mxu0 0.0
    %3430 = vmatprep.subr.mxu0 0.0
    %3431 = vmatpush2.msra.mxu0 0.0
    %3432 = vmatprep.subr.mxu0 0.0
    %3433 = vmatpush2.msra.mxu0 0.0
    %3434 = vmatprep.subr.mxu0 0.0
    %3435 = vmatpush2.msra.mxu0 0.0
    %3436 = vmatprep.subr.mxu0 0.0
    %3437 = vmatpush2.msra.mxu0 0.0
    %3438 = vmatprep.subr.mxu0 0.0
    %3439 = vmatpush2.msra.mxu0 0.0
    %3440 = vmatprep.subr.mxu0 0.0
    %3441 = vmatpush2.msra.mxu0 0.0
    %3442 = vmatprep.subr.mxu0 0.0
    %3443 = vmatpush2.msra.mxu0 0.0
    %3444 = vmatprep.subr.mxu0 0.0
    %3445 = vmatpush2.msra.mxu0 0.0
    %3446 = vmatprep.subr.mxu0 0.0
    %3447 = vmatpush2.msra.mxu0 0.0
    %3448 = vmatprep.subr.mxu0 0.0
    %3449 = vmatpush2.msra.mxu0 0.0
    %3450 = vmatprep.mubr.f32.mxu0 0.0
    %3451 = vmatmul.mubr.f32.gmra.mxu0 %v260
    %v3452 = vpop.f32.mrf.mxu0
    %v3453 = vadd.f32 0.0, %v3452
    %v3454 = vpop.f32.mrf.mxu0
    %v3455 = vadd.f32 0.0, %v3454
    %3456 = vdwg.mxu0
    %3457 = vmatprep.subr.mxu0 0.0
    %3458 = vmatpush1.msra.mxu0 0.0
    %3459 = vmatprep.subr.mxu0 0.0
    %3460 = vmatpush1.msra.mxu0 0.0
    %3461 = vmatprep.subr.mxu0 0.0
    %3462 = vmatpush1.msra.mxu0 0.0
    %3463 = vmatprep.subr.mxu0 0.0
    %3464 = vmatpush1.msra.mxu0 0.0
    %3465 = vmatprep.subr.mxu0 0.0
    %3466 = vmatpush1.msra.mxu0 0.0
    %3467 = vmatprep.subr.mxu0 0.0
    %3468 = vmatpush1.msra.mxu0 0.0
    %3469 = vmatprep.subr.mxu0 0.0
    %3470 = vmatpush1.msra.mxu0 0.0
    %3471 = vmatprep.subr.mxu0 0.0
    %3472 = vmatpush1.msra.mxu0 0.0
    %3473 = vmatprep.subr.mxu0 0.0
    %3474 = vmatpush1.msra.mxu0 0.0
    %3475 = vmatprep.subr.mxu0 0.0
    %3476 = vmatpush1.msra.mxu0 0.0
    %3477 = vmatprep.subr.mxu0 0.0
    %3478 = vmatpush1.msra.mxu0 0.0
    %3479 = vmatprep.subr.mxu0 0.0
    %3480 = vmatpush1.msra.mxu0 0.0
    %3481 = vmatprep.subr.mxu0 0.0
    %3482 = vmatpush1.msra.mxu0 0.0
    %3483 = vmatprep.subr.mxu0 0.0
    %3484 = vmatpush1.msra.mxu0 0.0
    %3485 = vmatprep.subr.mxu0 0.0
    %3486 = vmatpush1.msra.mxu0 0.0
    %3487 = vmatprep.subr.mxu0 %v253
    %3488 = vmatpush1.msra.mxu0 %v252
    %3489 = vmatprep.subr.mxu0 0.0
    %3490 = vmatpush2.msra.mxu0 0.0
    %3491 = vmatprep.subr.mxu0 0.0
    %3492 = vmatpush2.msra.mxu0 0.0
    %3493 = vmatprep.subr.mxu0 0.0
    %3494 = vmatpush2.msra.mxu0 0.0
    %3495 = vmatprep.subr.mxu0 0.0
    %3496 = vmatpush2.msra.mxu0 0.0
    %3497 = vmatprep.subr.mxu0 0.0
    %3498 = vmatpush2.msra.mxu0 0.0
    %3499 = vmatprep.subr.mxu0 0.0
    %3500 = vmatpush2.msra.mxu0 0.0
    %3501 = vmatprep.subr.mxu0 0.0
    %3502 = vmatpush2.msra.mxu0 0.0
    %3503 = vmatprep.subr.mxu0 0.0
    %3504 = vmatpush2.msra.mxu0 0.0
    %3505 = vmatprep.subr.mxu0 0.0
    %3506 = vmatpush2.msra.mxu0 0.0
    %3507 = vmatprep.subr.mxu0 0.0
    %3508 = vmatpush2.msra.mxu0 0.0
    %3509 = vmatprep.subr.mxu0 0.0
    %3510 = vmatpush2.msra.mxu0 0.0
    %3511 = vmatprep.subr.mxu0 0.0
    %3512 = vmatpush2.msra.mxu0 0.0
    %3513 = vmatprep.subr.mxu0 0.0
    %3514 = vmatpush2.msra.mxu0 0.0
    %3515 = vmatprep.subr.mxu0 0.0
    %3516 = vmatpush2.msra.mxu0 0.0
    %3517 = vmatprep.subr.mxu0 0.0
    %3518 = vmatpush2.msra.mxu0 0.0
    %3519 = vmatprep.subr.mxu0 0.0
    %3520 = vmatpush2.msra.mxu0 0.0
    %3521 = vmatprep.mubr.f32.mxu0 0.0
    %3522 = vmatmul.mubr.f32.gmra.mxu0 %v260
    %v3523 = vpop.f32.mrf.mxu0
    %v3524 = vadd.f32 0.0, %v3523
    %v3525 = vpop.f32.mrf.mxu0
    %v3526 = vadd.f32 0.0, %v3525
    %3527 = vdwg.mxu0
    %3528 = vmatprep.subr.mxu0 0.0
    %3529 = vmatpush1.msra.mxu0 0.0
    %3530 = vmatprep.subr.mxu0 0.0
    %3531 = vmatpush1.msra.mxu0 0.0
    %3532 = vmatprep.subr.mxu0 0.0
    %3533 = vmatpush1.msra.mxu0 0.0
    %3534 = vmatprep.subr.mxu0 0.0
    %3535 = vmatpush1.msra.mxu0 0.0
    %3536 = vmatprep.subr.mxu0 0.0
    %3537 = vmatpush1.msra.mxu0 0.0
    %3538 = vmatprep.subr.mxu0 0.0
    %3539 = vmatpush1.msra.mxu0 0.0
    %3540 = vmatprep.subr.mxu0 0.0
    %3541 = vmatpush1.msra.mxu0 0.0
    %3542 = vmatprep.subr.mxu0 0.0
    %3543 = vmatpush1.msra.mxu0 0.0
    %3544 = vmatprep.subr.mxu0 0.0
    %3545 = vmatpush1.msra.mxu0 0.0
    %3546 = vmatprep.subr.mxu0 0.0
    %3547 = vmatpush1.msra.mxu0 0.0
    %3548 = vmatprep.subr.mxu0 0.0
    %3549 = vmatpush1.msra.mxu0 0.0
    %3550 = vmatprep.subr.mxu0 0.0
    %3551 = vmatpush1.msra.mxu0 0.0
    %3552 = vmatprep.subr.mxu0 0.0
    %3553 = vmatpush1.msra.mxu0 0.0
    %3554 = vmatprep.subr.mxu0 0.0
    %3555 = vmatpush1.msra.mxu0 0.0
    %3556 = vmatprep.subr.mxu0 0.0
    %3557 = vmatpush1.msra.mxu0 0.0
    %3558 = vmatprep.subr.mxu0 %v255
    %3559 = vmatpush1.msra.mxu0 %v254
    %3560 = vmatprep.subr.mxu0 0.0
    %3561 = vmatpush2.msra.mxu0 0.0
    %3562 = vmatprep.subr.mxu0 0.0
    %3563 = vmatpush2.msra.mxu0 0.0
    %3564 = vmatprep.subr.mxu0 0.0
    %3565 = vmatpush2.msra.mxu0 0.0
    %3566 = vmatprep.subr.mxu0 0.0
    %3567 = vmatpush2.msra.mxu0 0.0
    %3568 = vmatprep.subr.mxu0 0.0
    %3569 = vmatpush2.msra.mxu0 0.0
    %3570 = vmatprep.subr.mxu0 0.0
    %3571 = vmatpush2.msra.mxu0 0.0
    %3572 = vmatprep.subr.mxu0 0.0
    %3573 = vmatpush2.msra.mxu0 0.0
    %3574 = vmatprep.subr.mxu0 0.0
    %3575 = vmatpush2.msra.mxu0 0.0
    %3576 = vmatprep.subr.mxu0 0.0
    %3577 = vmatpush2.msra.mxu0 0.0
    %3578 = vmatprep.subr.mxu0 0.0
    %3579 = vmatpush2.msra.mxu0 0.0
    %3580 = vmatprep.subr.mxu0 0.0
    %3581 = vmatpush2.msra.mxu0 0.0
    %3582 = vmatprep.subr.mxu0 0.0
    %3583 = vmatpush2.msra.mxu0 0.0
    %3584 = vmatprep.subr.mxu0 0.0
    %3585 = vmatpush2.msra.mxu0 0.0
    %3586 = vmatprep.subr.mxu0 0.0
    %3587 = vmatpush2.msra.mxu0 0.0
    %3588 = vmatprep.subr.mxu0 0.0
    %3589 = vmatpush2.msra.mxu0 0.0
    %3590 = vmatprep.subr.mxu0 0.0
    %3591 = vmatpush2.msra.mxu0 0.0
    %3592 = vmatprep.mubr.f32.mxu0 0.0
    %3593 = vmatmul.mubr.f32.gmra.mxu0 %v260
    %v3594 = vpop.f32.mrf.mxu0
    %v3595 = vadd.f32 0.0, %v3594
    %v3596 = vpop.f32.mrf.mxu0
    %v3597 = vadd.f32 0.0, %v3596
    %3598 = vdwg.mxu0
    %3599 = vmatprep.subr.mxu0 0.0
    %3600 = vmatpush1.msra.mxu0 0.0
    %3601 = vmatprep.subr.mxu0 0.0
    %3602 = vmatpush1.msra.mxu0 0.0
    %3603 = vmatprep.subr.mxu0 0.0
    %3604 = vmatpush1.msra.mxu0 0.0
    %3605 = vmatprep.subr.mxu0 0.0
    %3606 = vmatpush1.msra.mxu0 0.0
    %3607 = vmatprep.subr.mxu0 0.0
    %3608 = vmatpush1.msra.mxu0 0.0
    %3609 = vmatprep.subr.mxu0 0.0
    %3610 = vmatpush1.msra.mxu0 0.0
    %3611 = vmatprep.subr.mxu0 0.0
    %3612 = vmatpush1.msra.mxu0 0.0
    %3613 = vmatprep.subr.mxu0 0.0
    %3614 = vmatpush1.msra.mxu0 0.0
    %3615 = vmatprep.subr.mxu0 0.0
    %3616 = vmatpush1.msra.mxu0 0.0
    %3617 = vmatprep.subr.mxu0 0.0
    %3618 = vmatpush1.msra.mxu0 0.0
    %3619 = vmatprep.subr.mxu0 0.0
    %3620 = vmatpush1.msra.mxu0 0.0
    %3621 = vmatprep.subr.mxu0 0.0
    %3622 = vmatpush1.msra.mxu0 0.0
    %3623 = vmatprep.subr.mxu0 0.0
    %3624 = vmatpush1.msra.mxu0 0.0
    %3625 = vmatprep.subr.mxu0 0.0
    %3626 = vmatpush1.msra.mxu0 0.0
    %3627 = vmatprep.subr.mxu0 0.0
    %3628 = vmatpush1.msra.mxu0 0.0
    %3629 = vmatprep.subr.mxu0 %v257
    %3630 = vmatpush1.msra.mxu0 %v256
    %3631 = vmatprep.subr.mxu0 0.0
    %3632 = vmatpush2.msra.mxu0 0.0
    %3633 = vmatprep.subr.mxu0 0.0
    %3634 = vmatpush2.msra.mxu0 0.0
    %3635 = vmatprep.subr.mxu0 0.0
    %3636 = vmatpush2.msra.mxu0 0.0
    %3637 = vmatprep.subr.mxu0 0.0
    %3638 = vmatpush2.msra.mxu0 0.0
    %3639 = vmatprep.subr.mxu0 0.0
    %3640 = vmatpush2.msra.mxu0 0.0
    %3641 = vmatprep.subr.mxu0 0.0
    %3642 = vmatpush2.msra.mxu0 0.0
    %3643 = vmatprep.subr.mxu0 0.0
    %3644 = vmatpush2.msra.mxu0 0.0
    %3645 = vmatprep.subr.mxu0 0.0
    %3646 = vmatpush2.msra.mxu0 0.0
    %3647 = vmatprep.subr.mxu0 0.0
    %3648 = vmatpush2.msra.mxu0 0.0
    %3649 = vmatprep.subr.mxu0 0.0
    %3650 = vmatpush2.msra.mxu0 0.0
    %3651 = vmatprep.subr.mxu0 0.0
    %3652 = vmatpush2.msra.mxu0 0.0
    %3653 = vmatprep.subr.mxu0 0.0
    %3654 = vmatpush2.msra.mxu0 0.0
    %3655 = vmatprep.subr.mxu0 0.0
    %3656 = vmatpush2.msra.mxu0 0.0
    %3657 = vmatprep.subr.mxu0 0.0
    %3658 = vmatpush2.msra.mxu0 0.0
    %3659 = vmatprep.subr.mxu0 0.0
    %3660 = vmatpush2.msra.mxu0 0.0
    %3661 = vmatprep.subr.mxu0 0.0
    %3662 = vmatpush2.msra.mxu0 0.0
    %3663 = vmatprep.mubr.f32.mxu0 0.0
    %3664 = vmatmul.mubr.f32.gmra.mxu0 %v260
    %v3665 = vpop.f32.mrf.mxu0
    %v3666 = vadd.f32 0.0, %v3665
    %v3667 = vpop.f32.mrf.mxu0
    %v3668 = vadd.f32 0.0, %v3667
    %3669 = vdwg.mxu0
    %v3766 = vcombine.low %v329, %v331
    %v3767 = vcombine.low %v400, %v402
    %v3769 = vunpack.c.l.s4 1983009808
    %v3770 = vunpack.c.0.s8 %v3769
    %v3771 = vlaneseq
    %v3772 = vshrl.u32 %v3771, 7
    %v3773 = vsub.s32 %v3770, %v3772
    %v3774 = vrot.slane %v3766, %v3773
    %v3776 = vunpack.c.l.s4 1983009808
    %v3777 = vunpack.c.0.s8 %v3776
    %v3778 = vlaneseq
    %v3779 = vshrl.u32 %v3778, 7
    %v3780 = vsub.s32 %v3777, %v3779
    %v3781 = vrot.slane %v3767, %v3780
    %v3782 = vcombine.low %v3774, %v3781
    %v3783 = vcombine.low %v471, %v473
    %v3784 = vcombine.low %v542, %v544
    %v3786 = vunpack.c.l.s4 1983009808
    %v3787 = vunpack.c.0.s8 %v3786
    %v3788 = vlaneseq
    %v3789 = vshrl.u32 %v3788, 7
    %v3790 = vsub.s32 %v3787, %v3789
    %v3791 = vrot.slane %v3783, %v3790
    %v3793 = vunpack.c.l.s4 1983009808
    %v3794 = vunpack.c.0.s8 %v3793
    %v3795 = vlaneseq
    %v3796 = vshrl.u32 %v3795, 7
    %v3797 = vsub.s32 %v3794, %v3796
    %v3798 = vrot.slane %v3784, %v3797
    %v3799 = vcombine.low %v3791, %v3798
    %v3800 = vcombine.low %v613, %v615
    %v3801 = vcombine.low %v684, %v686
    %v3803 = vunpack.c.l.s4 1983009808
    %v3804 = vunpack.c.0.s8 %v3803
    %v3805 = vlaneseq
    %v3806 = vshrl.u32 %v3805, 7
    %v3807 = vsub.s32 %v3804, %v3806
    %v3808 = vrot.slane %v3800, %v3807
    %v3810 = vunpack.c.l.s4 1983009808
    %v3811 = vunpack.c.0.s8 %v3810
    %v3812 = vlaneseq
    %v3813 = vshrl.u32 %v3812, 7
    %v3814 = vsub.s32 %v3811, %v3813
    %v3815 = vrot.slane %v3801, %v3814
    %v3816 = vcombine.low %v3808, %v3815
    %v3817 = vcombine.low %v755, %v757
    %v3818 = vcombine.low %v826, %v828
    %v3820 = vunpack.c.l.s4 1983009808
    %v3821 = vunpack.c.0.s8 %v3820
    %v3822 = vlaneseq
    %v3823 = vshrl.u32 %v3822, 7
    %v3824 = vsub.s32 %v3821, %v3823
    %v3825 = vrot.slane %v3817, %v3824
    %v3827 = vunpack.c.l.s4 1983009808
    %v3828 = vunpack.c.0.s8 %v3827
    %v3829 = vlaneseq
    %v3830 = vshrl.u32 %v3829, 7
    %v3831 = vsub.s32 %v3828, %v3830
    %v3832 = vrot.slane %v3818, %v3831
    %v3833 = vcombine.low %v3825, %v3832
    %v3834 = vcombine.low %v897, %v899
    %v3835 = vcombine.low %v968, %v970
    %v3837 = vunpack.c.l.s4 1983009808
    %v3838 = vunpack.c.0.s8 %v3837
    %v3839 = vlaneseq
    %v3840 = vshrl.u32 %v3839, 7
    %v3841 = vsub.s32 %v3838, %v3840
    %v3842 = vrot.slane %v3834, %v3841
    %v3844 = vunpack.c.l.s4 1983009808
    %v3845 = vunpack.c.0.s8 %v3844
    %v3846 = vlaneseq
    %v3847 = vshrl.u32 %v3846, 7
    %v3848 = vsub.s32 %v3845, %v3847
    %v3849 = vrot.slane %v3835, %v3848
    %v3850 = vcombine.low %v3842, %v3849
    %v3851 = vcombine.low %v1039, %v1041
    %v3852 = vcombine.low %v1110, %v1112
    %v3854 = vunpack.c.l.s4 1983009808
    %v3855 = vunpack.c.0.s8 %v3854
    %v3856 = vlaneseq
    %v3857 = vshrl.u32 %v3856, 7
    %v3858 = vsub.s32 %v3855, %v3857
    %v3859 = vrot.slane %v3851, %v3858
    %v3861 = vunpack.c.l.s4 1983009808
    %v3862 = vunpack.c.0.s8 %v3861
    %v3863 = vlaneseq
    %v3864 = vshrl.u32 %v3863, 7
    %v3865 = vsub.s32 %v3862, %v3864
    %v3866 = vrot.slane %v3852, %v3865
    %v3867 = vcombine.low %v3859, %v3866
    %v3868 = vcombine.low %v1181, %v1183
    %v3869 = vcombine.low %v1252, %v1254
    %v3871 = vunpack.c.l.s4 1983009808
    %v3872 = vunpack.c.0.s8 %v3871
    %v3873 = vlaneseq
    %v3874 = vshrl.u32 %v3873, 7
    %v3875 = vsub.s32 %v3872, %v3874
    %v3876 = vrot.slane %v3868, %v3875
    %v3878 = vunpack.c.l.s4 1983009808
    %v3879 = vunpack.c.0.s8 %v3878
    %v3880 = vlaneseq
    %v3881 = vshrl.u32 %v3880, 7
    %v3882 = vsub.s32 %v3879, %v3881
    %v3883 = vrot.slane %v3869, %v3882
    %v3884 = vcombine.low %v3876, %v3883
    %v3885 = vcombine.low %v1323, %v1325
    %v3886 = vcombine.low %v1394, %v1396
    %v3888 = vunpack.c.l.s4 1983009808
    %v3889 = vunpack.c.0.s8 %v3888
    %v3890 = vlaneseq
    %v3891 = vshrl.u32 %v3890, 7
    %v3892 = vsub.s32 %v3889, %v3891
    %v3893 = vrot.slane %v3885, %v3892
    %v3895 = vunpack.c.l.s4 1983009808
    %v3896 = vunpack.c.0.s8 %v3895
    %v3897 = vlaneseq
    %v3898 = vshrl.u32 %v3897, 7
    %v3899 = vsub.s32 %v3896, %v3898
    %v3900 = vrot.slane %v3886, %v3899
    %v3901 = vcombine.low %v3893, %v3900
    %v3902 = vcombine.low %v1465, %v1467
    %v3903 = vcombine.low %v1536, %v1538
    %v3905 = vunpack.c.l.s4 1983009808
    %v3906 = vunpack.c.0.s8 %v3905
    %v3907 = vlaneseq
    %v3908 = vshrl.u32 %v3907, 7
    %v3909 = vsub.s32 %v3906, %v3908
    %v3910 = vrot.slane %v3902, %v3909
    %v3912 = vunpack.c.l.s4 1983009808
    %v3913 = vunpack.c.0.s8 %v3912
    %v3914 = vlaneseq
    %v3915 = vshrl.u32 %v3914, 7
    %v3916 = vsub.s32 %v3913, %v3915
    %v3917 = vrot.slane %v3903, %v3916
    %v3918 = vcombine.low %v3910, %v3917
    %v3919 = vcombine.low %v1607, %v1609
    %v3920 = vcombine.low %v1678, %v1680
    %v3922 = vunpack.c.l.s4 1983009808
    %v3923 = vunpack.c.0.s8 %v3922
    %v3924 = vlaneseq
    %v3925 = vshrl.u32 %v3924, 7
    %v3926 = vsub.s32 %v3923, %v3925
    %v3927 = vrot.slane %v3919, %v3926
    %v3929 = vunpack.c.l.s4 1983009808
    %v3930 = vunpack.c.0.s8 %v3929
    %v3931 = vlaneseq
    %v3932 = vshrl.u32 %v3931, 7
    %v3933 = vsub.s32 %v3930, %v3932
    %v3934 = vrot.slane %v3920, %v3933
    %v3935 = vcombine.low %v3927, %v3934
    %v3936 = vcombine.low %v1749, %v1751
    %v3937 = vcombine.low %v1820, %v1822
    %v3939 = vunpack.c.l.s4 1983009808
    %v3940 = vunpack.c.0.s8 %v3939
    %v3941 = vlaneseq
    %v3942 = vshrl.u32 %v3941, 7
    %v3943 = vsub.s32 %v3940, %v3942
    %v3944 = vrot.slane %v3936, %v3943
    %v3946 = vunpack.c.l.s4 1983009808
    %v3947 = vunpack.c.0.s8 %v3946
    %v3948 = vlaneseq
    %v3949 = vshrl.u32 %v3948, 7
    %v3950 = vsub.s32 %v3947, %v3949
    %v3951 = vrot.slane %v3937, %v3950
    %v3952 = vcombine.low %v3944, %v3951
    %v3953 = vcombine.low %v1891, %v1893
    %v3954 = vcombine.low %v1962, %v1964
    %v3956 = vunpack.c.l.s4 1983009808
    %v3957 = vunpack.c.0.s8 %v3956
    %v3958 = vlaneseq
    %v3959 = vshrl.u32 %v3958, 7
    %v3960 = vsub.s32 %v3957, %v3959
    %v3961 = vrot.slane %v3953, %v3960
    %v3963 = vunpack.c.l.s4 1983009808
    %v3964 = vunpack.c.0.s8 %v3963
    %v3965 = vlaneseq
    %v3966 = vshrl.u32 %v3965, 7
    %v3967 = vsub.s32 %v3964, %v3966
    %v3968 = vrot.slane %v3954, %v3967
    %v3969 = vcombine.low %v3961, %v3968
    %v3970 = vcombine.low %v2033, %v2035
    %v3971 = vcombine.low %v2104, %v2106
    %v3973 = vunpack.c.l.s4 1983009808
    %v3974 = vunpack.c.0.s8 %v3973
    %v3975 = vlaneseq
    %v3976 = vshrl.u32 %v3975, 7
    %v3977 = vsub.s32 %v3974, %v3976
    %v3978 = vrot.slane %v3970, %v3977
    %v3980 = vunpack.c.l.s4 1983009808
    %v3981 = vunpack.c.0.s8 %v3980
    %v3982 = vlaneseq
    %v3983 = vshrl.u32 %v3982, 7
    %v3984 = vsub.s32 %v3981, %v3983
    %v3985 = vrot.slane %v3971, %v3984
    %v3986 = vcombine.low %v3978, %v3985
    %v3987 = vcombine.low %v2175, %v2177
    %v3988 = vcombine.low %v2246, %v2248
    %v3990 = vunpack.c.l.s4 1983009808
    %v3991 = vunpack.c.0.s8 %v3990
    %v3992 = vlaneseq
    %v3993 = vshrl.u32 %v3992, 7
    %v3994 = vsub.s32 %v3991, %v3993
    %v3995 = vrot.slane %v3987, %v3994
    %v3997 = vunpack.c.l.s4 1983009808
    %v3998 = vunpack.c.0.s8 %v3997
    %v3999 = vlaneseq
    %v4000 = vshrl.u32 %v3999, 7
    %v4001 = vsub.s32 %v3998, %v4000
    %v4002 = vrot.slane %v3988, %v4001
    %v4003 = vcombine.low %v3995, %v4002
    %v4004 = vcombine.low %v2317, %v2319
    %v4005 = vcombine.low %v2388, %v2390
    %v4007 = vunpack.c.l.s4 1983009808
    %v4008 = vunpack.c.0.s8 %v4007
    %v4009 = vlaneseq
    %v4010 = vshrl.u32 %v4009, 7
    %v4011 = vsub.s32 %v4008, %v4010
    %v4012 = vrot.slane %v4004, %v4011
    %v4014 = vunpack.c.l.s4 1983009808
    %v4015 = vunpack.c.0.s8 %v4014
    %v4016 = vlaneseq
    %v4017 = vshrl.u32 %v4016, 7
    %v4018 = vsub.s32 %v4015, %v4017
    %v4019 = vrot.slane %v4005, %v4018
    %v4020 = vcombine.low %v4012, %v4019
    %v4021 = vcombine.low %v2459, %v2461
    %v4022 = vcombine.low %v2530, %v2532
    %v4024 = vunpack.c.l.s4 1983009808
    %v4025 = vunpack.c.0.s8 %v4024
    %v4026 = vlaneseq
    %v4027 = vshrl.u32 %v4026, 7
    %v4028 = vsub.s32 %v4025, %v4027
    %v4029 = vrot.slane %v4021, %v4028
    %v4031 = vunpack.c.l.s4 1983009808
    %v4032 = vunpack.c.0.s8 %v4031
    %v4033 = vlaneseq
    %v4034 = vshrl.u32 %v4033, 7
    %v4035 = vsub.s32 %v4032, %v4034
    %v4036 = vrot.slane %v4022, %v4035
    %v4037 = vcombine.low %v4029, %v4036
    %v4038 = vcombine.low %v2601, %v2603
    %v4039 = vcombine.low %v2672, %v2674
    %v4041 = vunpack.c.l.s4 1983009808
    %v4042 = vunpack.c.0.s8 %v4041
    %v4043 = vlaneseq
    %v4044 = vshrl.u32 %v4043, 7
    %v4045 = vsub.s32 %v4042, %v4044
    %v4046 = vrot.slane %v4038, %v4045
    %v4048 = vunpack.c.l.s4 1983009808
    %v4049 = vunpack.c.0.s8 %v4048
    %v4050 = vlaneseq
    %v4051 = vshrl.u32 %v4050, 7
    %v4052 = vsub.s32 %v4049, %v4051
    %v4053 = vrot.slane %v4039, %v4052
    %v4054 = vcombine.low %v4046, %v4053
    %v4055 = vcombine.low %v2743, %v2745
    %v4056 = vcombine.low %v2814, %v2816
    %v4058 = vunpack.c.l.s4 1983009808
    %v4059 = vunpack.c.0.s8 %v4058
    %v4060 = vlaneseq
    %v4061 = vshrl.u32 %v4060, 7
    %v4062 = vsub.s32 %v4059, %v4061
    %v4063 = vrot.slane %v4055, %v4062
    %v4065 = vunpack.c.l.s4 1983009808
    %v4066 = vunpack.c.0.s8 %v4065
    %v4067 = vlaneseq
    %v4068 = vshrl.u32 %v4067, 7
    %v4069 = vsub.s32 %v4066, %v4068
    %v4070 = vrot.slane %v4056, %v4069
    %v4071 = vcombine.low %v4063, %v4070
    %v4072 = vcombine.low %v2885, %v2887
    %v4073 = vcombine.low %v2956, %v2958
    %v4075 = vunpack.c.l.s4 1983009808
    %v4076 = vunpack.c.0.s8 %v4075
    %v4077 = vlaneseq
    %v4078 = vshrl.u32 %v4077, 7
    %v4079 = vsub.s32 %v4076, %v4078
    %v4080 = vrot.slane %v4072, %v4079
    %v4082 = vunpack.c.l.s4 1983009808
    %v4083 = vunpack.c.0.s8 %v4082
    %v4084 = vlaneseq
    %v4085 = vshrl.u32 %v4084, 7
    %v4086 = vsub.s32 %v4083, %v4085
    %v4087 = vrot.slane %v4073, %v4086
    %v4088 = vcombine.low %v4080, %v4087
    %v4089 = vcombine.low %v3027, %v3029
    %v4090 = vcombine.low %v3098, %v3100
    %v4092 = vunpack.c.l.s4 1983009808
    %v4093 = vunpack.c.0.s8 %v4092
    %v4094 = vlaneseq
    %v4095 = vshrl.u32 %v4094, 7
    %v4096 = vsub.s32 %v4093, %v4095
    %v4097 = vrot.slane %v4089, %v4096
    %v4099 = vunpack.c.l.s4 1983009808
    %v4100 = vunpack.c.0.s8 %v4099
    %v4101 = vlaneseq
    %v4102 = vshrl.u32 %v4101, 7
    %v4103 = vsub.s32 %v4100, %v4102
    %v4104 = vrot.slane %v4090, %v4103
    %v4105 = vcombine.low %v4097, %v4104
    %v4106 = vcombine.low %v3169, %v3171
    %v4107 = vcombine.low %v3240, %v3242
    %v4109 = vunpack.c.l.s4 1983009808
    %v4110 = vunpack.c.0.s8 %v4109
    %v4111 = vlaneseq
    %v4112 = vshrl.u32 %v4111, 7
    %v4113 = vsub.s32 %v4110, %v4112
    %v4114 = vrot.slane %v4106, %v4113
    %v4116 = vunpack.c.l.s4 1983009808
    %v4117 = vunpack.c.0.s8 %v4116
    %v4118 = vlaneseq
    %v4119 = vshrl.u32 %v4118, 7
    %v4120 = vsub.s32 %v4117, %v4119
    %v4121 = vrot.slane %v4107, %v4120
    %v4122 = vcombine.low %v4114, %v4121
    %v4123 = vcombine.low %v3311, %v3313
    %v4124 = vcombine.low %v3382, %v3384
    %v4126 = vunpack.c.l.s4 1983009808
    %v4127 = vunpack.c.0.s8 %v4126
    %v4128 = vlaneseq
    %v4129 = vshrl.u32 %v4128, 7
    %v4130 = vsub.s32 %v4127, %v4129
    %v4131 = vrot.slane %v4123, %v4130
    %v4133 = vunpack.c.l.s4 1983009808
    %v4134 = vunpack.c.0.s8 %v4133
    %v4135 = vlaneseq
    %v4136 = vshrl.u32 %v4135, 7
    %v4137 = vsub.s32 %v4134, %v4136
    %v4138 = vrot.slane %v4124, %v4137
    %v4139 = vcombine.low %v4131, %v4138
    %v4140 = vcombine.low %v3453, %v3455
    %v4141 = vcombine.low %v3524, %v3526
    %v4143 = vunpack.c.l.s4 1983009808
    %v4144 = vunpack.c.0.s8 %v4143
    %v4145 = vlaneseq
    %v4146 = vshrl.u32 %v4145, 7
    %v4147 = vsub.s32 %v4144, %v4146
    %v4148 = vrot.slane %v4140, %v4147
    %v4150 = vunpack.c.l.s4 1983009808
    %v4151 = vunpack.c.0.s8 %v4150
    %v4152 = vlaneseq
    %v4153 = vshrl.u32 %v4152, 7
    %v4154 = vsub.s32 %v4151, %v4153
    %v4155 = vrot.slane %v4141, %v4154
    %v4156 = vcombine.low %v4148, %v4155
    %v4157 = vcombine.low %v3595, %v3597
    %v4158 = vcombine.low %v3666, %v3668
    %v4160 = vunpack.c.l.s4 1983009808
    %v4161 = vunpack.c.0.s8 %v4160
    %v4162 = vlaneseq
    %v4163 = vshrl.u32 %v4162, 7
    %v4164 = vsub.s32 %v4161, %v4163
    %v4165 = vrot.slane %v4157, %v4164
    %v4167 = vunpack.c.l.s4 1983009808
    %v4168 = vunpack.c.0.s8 %v4167
    %v4169 = vlaneseq
    %v4170 = vshrl.u32 %v4169, 7
    %v4171 = vsub.s32 %v4168, %v4170
    %v4172 = vrot.slane %v4158, %v4171
    %v4173 = vcombine.low %v4165, %v4172
    %4198 = vst [vmem:[%s6] sm:$0xff] %v3782
    %4199 = vst [vmem:[%s6 + $0x8] sm:$0xff] %v3799
    %4200 = vst [vmem:[%s6 + $0x10] sm:$0xff] %v3816
    %4201 = vst [vmem:[%s6 + $0x18] sm:$0xff] %v3833
    %4202 = vst [vmem:[%s6 + $0x20] sm:$0xff] %v3850
    %4203 = vst [vmem:[%s6 + $0x28] sm:$0xff] %v3867
    %4204 = vst [vmem:[%s6 + $0x30] sm:$0xff] %v3884
    %4205 = vst [vmem:[%s6 + $0x38] sm:$0xff] %v3901
    %4206 = vst [vmem:[%s6 + $0x40] sm:$0xff] %v3918
    %4207 = vst [vmem:[%s6 + $0x48] sm:$0xff] %v3935
    %4208 = vst [vmem:[%s6 + $0x50] sm:$0xff] %v3952
    %4209 = vst [vmem:[%s6 + $0x58] sm:$0xff] %v3969
    %4210 = vst [vmem:[%s6 + $0x60] sm:$0xff] %v3986
    %4211 = vst [vmem:[%s6 + $0x68] sm:$0xff] %v4003
    %4212 = vst [vmem:[%s6 + $0x70] sm:$0xff] %v4020
    %4213 = vst [vmem:[%s6 + $0x78] sm:$0xff] %v4037
    %4214 = vst [vmem:[%s6 + $0x80] sm:$0xff] %v4054
    %4215 = vst [vmem:[%s6 + $0x88] sm:$0xff] %v4071
    %4216 = vst [vmem:[%s6 + $0x90] sm:$0xff] %v4088
    %4217 = vst [vmem:[%s6 + $0x98] sm:$0xff] %v4105
    %4218 = vst [vmem:[%s6 + $0xa0] sm:$0xff] %v4122
    %4219 = vst [vmem:[%s6 + $0xa8] sm:$0xff] %v4139
    %4220 = vst [vmem:[%s6 + $0xb0] sm:$0xff] %v4156
    %4221 = vst [vmem:[%s6 + $0xb8] sm:$0xff] %v4173
    // Predicated region
    $region38: #{lut4d_generator.1} parent=1 // pred_check
      _
    $region39: #{lut4d_generator.1} parent=1 // pred_check_branch
      %4223 = sbr.rel (0) target = $region41
    $region40: #{lut4d_generator.1} parent=1 // pred_region
      %s4225 = ssub.s32 32, 32
      %4226 = vsyncadd [#allocation4], %s4225
      %s4228 = sshll.u32 [#allocation10], 4
      %s4229 = int_to_ptr.vmem [resolvable:$true] %s4228
      %4231 = dma.vmem_to_hbm [thread:$0]  %s4229, 32, %s5, [#allocation4]
    $region41: #{lut4d_generator.1} parent=1 // pred_fallthru
      _
    // Predicated region
    $region42: #{lut4d_generator.1} parent=1 // pred_check
      _
    $region43: #{lut4d_generator.1} parent=1 // pred_check_branch
      %4233 = sbr.rel (0) target = $region45
    $region44: #{lut4d_generator.1} parent=1 // pred_region
      _
    $region45: #{lut4d_generator.1} parent=1 // pred_fallthru
      _
    // Predicated region
    $region46: #{lut4d_generator.1} parent=1 // pred_check
      _
    $region47: #{lut4d_generator.1} parent=1 // pred_check_branch
      %4235 = sbr.rel (0) target = $region49
    $region48: #{lut4d_generator.1} parent=1 // pred_region
      %4236 = dma.done [#allocation4], 32
    $region49: #{lut4d_generator.1} parent=1 // pred_fallthru
      _
    // Predicated region
    $region50: #{lut4d_generator.1} parent=1 // pred_check
      _
    $region51: #{lut4d_generator.1} parent=1 // pred_check_branch
      %4238 = sbr.rel (0) target = $region53
    $region52: #{lut4d_generator.1} parent=1 // pred_region
      _
    $region53: #{lut4d_generator.1} parent=1 // pred_fallthru
      _
    %4239 = vsyncpa [#allocation3], 1
    %4240 = vsyncpa [#allocation6], 1
    %4241 = vsyncpa [#allocation9], 1
    %4242 = vsyncpa [#allocation4], 1

</llo_original>
